<compile_context>
chip_gen: v6e
topology: v6e:2x2x1
jax: 0.10.0
libtpu: 0.0.40
codegen_flags: <defaults>
</compile_context>

<pallas_src>
import functools

import jax
import jax.numpy as jnp
from jax import lax
from jax.experimental import pallas as pl
from jax.experimental.pallas import tpu as pltpu

BN_EPS = 1e-5


# ----------------------------------------------------------------------------
# Pallas kernel: whole GlobalAttentionUpsample forward for one batch element
# ----------------------------------------------------------------------------
def _gau_kernel(xh_ref, xp_ref, w_ref, sl_ref, bl_ref,
                whc_ref, sh_ref, bh_ref, wup_ref, su_ref, bu_ref,
                o_ref, *, H, W):
    C = o_ref.shape[-1]

    # ---- global context branch (f32): pool -> conv_high(center tap) -> up ----
    xh = xh_ref[0]                                           # (Hh*Wh, Ch) f32
    pooled = jnp.mean(xh, axis=0, keepdims=True)             # (1, Ch)
    oh = jnp.maximum(
        jnp.dot(pooled, whc_ref[...], preferred_element_type=jnp.float32)
        * sh_ref[...] + bh_ref[...], 0.0)                    # (1, C)  attention vec
    up = jnp.maximum(
        jnp.dot(oh, wup_ref[...], preferred_element_type=jnp.float32)
        * su_ref[...] + bu_ref[...], 0.0)                    # (1, C)  up branch vec

    # ---- conv_low: 3x3 conv as 9 shifted bf16 tap-GEMMs, f32 accumulator ----
    xp = xp_ref[0]                                           # (H+2, W+2, C) bf16
    acc = jnp.zeros((H * W, C), jnp.float32)
    for di in range(3):
        for dj in range(3):
            win = xp[di:di + H, dj:dj + W, :].reshape(H * W, C)   # static slice
            acc = acc + jnp.dot(win, w_ref[di * 3 + dj],
                                preferred_element_type=jnp.float32)

    # ---- fused epilogue: BN + ReLU, attention multiply, + up branch, ReLU ----
    out_low = jnp.maximum(acc * sl_ref[...] + bl_ref[...], 0.0)   # conv_low BN+ReLU
    merged = jnp.maximum(out_low * oh, 0.0)                       # relu(out_low * out_high)
    o_ref[...] = jnp.maximum(merged + up, 0.0)                    # relu(merge + up(...))


def _gau_pallas(xh, xp, prep, H, W):
    B, HhWh, Ch = xh.shape
    Hp, Wp = xp.shape[1], xp.shape[2]
    Cl = prep["w_taps"].shape[-1]

    kernel = functools.partial(_gau_kernel, H=H, W=W)

    flops = B * (18 * H * W * Cl * Cl + 2 * Ch * Cl + 2 * Cl * Cl)
    bytes_accessed = (xh.size * 4 + xp.size * 2 + prep["w_taps"].size * 2
                      + B * H * W * Cl * 4 + 8 * Cl * 4 + Ch * Cl * 4 + Cl * Cl * 4)

    return pl.pallas_call(
        kernel,
        out_shape=jax.ShapeDtypeStruct((B * H * W, Cl), jnp.float32),
        grid=(B,),
        in_specs=[
            pl.BlockSpec((1, HhWh, Ch), lambda b: (b, 0, 0)),      # x_high (B,HhWh,Ch) f32
            pl.BlockSpec((1, Hp, Wp, Cl), lambda b: (b, 0, 0, 0)),  # padded x_low (bf16)
            pl.BlockSpec((9, Cl, Cl), lambda b: (0, 0, 0)),         # conv_low taps (bf16)
            pl.BlockSpec((1, Cl), lambda b: (0, 0)),                # conv_low BN scale
            pl.BlockSpec((1, Cl), lambda b: (0, 0)),                # conv_low BN bias
            pl.BlockSpec((Ch, Cl), lambda b: (0, 0)),               # conv_high center tap
            pl.BlockSpec((1, Cl), lambda b: (0, 0)),                # conv_high BN scale
            pl.BlockSpec((1, Cl), lambda b: (0, 0)),                # conv_high BN bias
            pl.BlockSpec((Ch, Cl), lambda b: (0, 0)),               # up 1x1 weight
            pl.BlockSpec((1, Cl), lambda b: (0, 0)),                # up BN scale
            pl.BlockSpec((1, Cl), lambda b: (0, 0)),                # up BN bias
        ],
        out_specs=pl.BlockSpec((H * W, Cl), lambda b: (b, 0)),
        compiler_params=pltpu.CompilerParams(
            dimension_semantics=("parallel",),
            vmem_limit_bytes=32 * 1024 * 1024),
        cost_estimate=pl.CostEstimate(flops=flops, transcendentals=0,
                                      bytes_accessed=bytes_accessed),
    )(xh, xp, prep["w_taps"], prep["s_low"], prep["b_low"],
      prep["w_hc"], prep["s_high"], prep["b_high"],
      prep["w_up"], prep["s_up"], prep["b_up"])


# ----------------------------------------------------------------------------
# Parameter preparation (done once, outside the per-call jit path)
# ----------------------------------------------------------------------------
def fold_bn(p):
    scale = p["gamma"] / jnp.sqrt(p["var"] + BN_EPS)
    bias = p["beta"] - p["mean"] * scale
    return scale, bias


def prepare_params(params):
    p_low, p_high, p_up = params["conv_low"], params["conv_high"], params["up"]
    s_l, b_l = fold_bn(p_low)
    s_h, b_h = fold_bn(p_high)
    s_u, b_u = fold_bn(p_up)
    cin, cout = p_low["w"].shape[1], p_low["w"].shape[0]
    # conv_low OIHW -> (tap, Cin, Cout), bf16 for the MXU
    w_taps = jnp.transpose(p_low["w"], (2, 3, 1, 0)).reshape(9, cin, cout)
    # conv_high acts on a 1x1 input with pad=1 -> only the centre tap matters
    w_hc = jnp.transpose(p_high["w"][:, :, 1, 1], (1, 0))        # (Ch, Cl)
    # up is a 1x1 conv on the (spatially constant) upsampled context
    w_up = jnp.transpose(p_up["w"][:, :, 0, 0], (1, 0))          # (Ch, Cl)
    return {
        "w_taps": w_taps.astype(jnp.bfloat16),
        "s_low": s_l.reshape(1, -1).astype(jnp.float32),
        "b_low": b_l.reshape(1, -1).astype(jnp.float32),
        "w_hc": w_hc.astype(jnp.float32),
        "s_high": s_h.reshape(1, -1).astype(jnp.float32),
        "b_high": b_h.reshape(1, -1).astype(jnp.float32),
        "w_up": w_up.astype(jnp.float32),
        "s_up": s_u.reshape(1, -1).astype(jnp.float32),
        "b_up": b_u.reshape(1, -1).astype(jnp.float32),
    }


# ----------------------------------------------------------------------------
# Forward pass (NCHW in / NCHW out, Pallas path)
# ----------------------------------------------------------------------------
@jax.jit
def gau_forward(x_high, x_low, prep):
    B, Cl, H, W = x_low.shape
    Ch = x_high.shape[1]
    # NHWC internally
    xh = jnp.transpose(x_high, (0, 2, 3, 1)).astype(jnp.float32).reshape(B, -1, Ch)
    xl = jnp.transpose(x_low, (0, 2, 3, 1)).astype(jnp.float32)
    xp = jnp.pad(xl, ((0, 0), (1, 1), (1, 1), (0, 0))).astype(jnp.bfloat16)
    out2d = _gau_pallas(xh, xp, prep, H, W)              # (B*H*W, Cl) f32
    out = out2d.reshape(B, H, W, Cl)
    return jnp.transpose(out, (0, 3, 1, 2))              # back to NCHW


# ----------------------------------------------------------------------------
# Deterministic synthetic parameters (BN in eval mode, bias-free convs)
# ----------------------------------------------------------------------------
def _conv_bn_params(key, cout, cin, k):
    k1, k2, k3, k4, k5 = jax.random.split(key, 5)
    return {
        "w": jax.random.normal(k1, (cout, cin, k, k), jnp.float32) * 0.1,
        "gamma": jax.random.uniform(k2, (cout,), jnp.float32, minval=0.5, maxval=1.5),
        "beta": jax.random.normal(k3, (cout,), jnp.float32) * 0.1,
        "mean": jax.random.normal(k4, (cout,), jnp.float32) * 0.1,
        "var": jax.random.uniform(k5, (cout,), jnp.float32, minval=0.5, maxval=1.5),
    }


def init_params(key, high_dims, low_dims):
    k1, k2, k3 = jax.random.split(key, 3)
    return {
        "conv_low": _conv_bn_params(k1, low_dims, low_dims, 3),
        "conv_high": _conv_bn_params(k2, low_dims, high_dims, 3),
        "up": _conv_bn_params(k3, low_dims, high_dims, 1),
    }


# ----------------------------------------------------------------------------
# Pure-JAX reference (mirrors the PyTorch module exactly; f32)
# ----------------------------------------------------------------------------
def ref_forward(x_high, x_low, params):
    def conv_bn_relu(x, p, pad):
        y = lax.conv_general_dilated(
            x, p["w"], (1, 1), [(pad, pad), (pad, pad)],
            dimension_numbers=("NCHW", "OIHW", "NCHW"),
            precision=lax.Precision.HIGHEST)
        s, b = fold_bn(p)
        return jnp.maximum(y * s[None, :, None, None] + b[None, :, None, None], 0.0)

    out_low = conv_bn_relu(x_low, params["conv_low"], 1)
    pooled = jnp.mean(x_high, axis=(2, 3), keepdims=True)            # AdaptiveAvgPool2d(1)
    out_high = conv_bn_relu(pooled, params["conv_high"], 1)          # (B, Cl, 1, 1)
    out_merge = jnp.maximum(out_low * out_high, 0.0)
    # bilinear, align_corners=True from a 1x1 source is exactly a broadcast
    B, Cl = out_high.shape[0], out_high.shape[1]
    H, W = x_low.shape[2], x_low.shape[3]
    out_high_up = jnp.broadcast_to(out_high, (B, Cl, H, W))
    up = conv_bn_relu(out_high_up, params["up"], 0)
    return jnp.maximum(out_merge + up, 0.0)


# ----------------------------------------------------------------------------
if __name__ == "__main__":
    key = jax.random.PRNGKey(0)
    kx1, kx2, kp = jax.random.split(key, 3)

    # The module's `up` conv only type-checks when high_dims == low_dims
    # (it is applied to the low_dims-channel upsampled context), so use equal dims.
    B, high_dims, low_dims = 2, 32, 32
    Hh, Wh = 8, 8          # high-level (coarse) feature map
    H, W = 16, 16          # low-level (fine) feature map

    x_high = jax.random.normal(kx1, (B, high_dims, Hh, Wh), jnp.float32)  # NCHW
    x_low = jax.random.normal(kx2, (B, low_dims, H, W), jnp.float32)      # NCHW

    params = init_params(kp, high_dims, low_dims)
    prep = prepare_params(params)        # fold BN / transpose weights / cast bf16 once

    out = gau_forward(x_high, x_low, prep)
    out = jax.block_until_ready(out)

    ref = jax.block_until_ready(ref_forward(x_high, x_low, params))
    assert out.shape == (B, low_dims, H, W), out.shape
    err = float(jnp.max(jnp.abs(out - ref)))
    # bf16 MXU path for conv_low -> relaxed tolerance (f32 accumulation keeps it tight)
    if not (err < 5e-2):
        raise SystemExit(f"mismatch vs reference: max abs err = {err}")

    print("KERNEL_OK")
</pallas_src>

<mosaic_0001>
module attributes {stable_mosaic.version = 11 : i64} {
  func.func @_gau_kernel(%arg0: i32, %arg1: memref<1x64x32xf32, #tpu.memory_space<vmem>>, %arg2: memref<1x18x18x32xbf16, #tpu.memory_space<vmem>>, %arg3: memref<9x32x32xbf16, #tpu.memory_space<vmem>>, %arg4: memref<1x32xf32, #tpu.memory_space<vmem>>, %arg5: memref<1x32xf32, #tpu.memory_space<vmem>>, %arg6: memref<32x32xf32, #tpu.memory_space<vmem>>, %arg7: memref<1x32xf32, #tpu.memory_space<vmem>>, %arg8: memref<1x32xf32, #tpu.memory_space<vmem>>, %arg9: memref<32x32xf32, #tpu.memory_space<vmem>>, %arg10: memref<1x32xf32, #tpu.memory_space<vmem>>, %arg11: memref<1x32xf32, #tpu.memory_space<vmem>>, %arg12: memref<256x32xf32, #tpu.memory_space<vmem>>) attributes {dimension_semantics = [#tpu.dimension_semantics<parallel>], iteration_bounds = array<i64: 2>, scalar_prefetch = 0 : i64, scratch_operands = 0 : i64, tpu.core_type = #tpu.core_type<tc>, window_params = [{transform_indices = @transform_0, window_bounds = array<i64: 1, 64, 32>}, {transform_indices = @transform_1, window_bounds = array<i64: 1, 18, 18, 32>}, {pipeline_mode = #tpu.pipeline_mode<synchronous>, transform_indices = @transform_2, window_bounds = array<i64: 9, 32, 32>}, {pipeline_mode = #tpu.pipeline_mode<synchronous>, transform_indices = @transform_3, window_bounds = array<i64: 1, 32>}, {pipeline_mode = #tpu.pipeline_mode<synchronous>, transform_indices = @transform_4, window_bounds = array<i64: 1, 32>}, {pipeline_mode = #tpu.pipeline_mode<synchronous>, transform_indices = @transform_5, window_bounds = array<i64: 32, 32>}, {pipeline_mode = #tpu.pipeline_mode<synchronous>, transform_indices = @transform_6, window_bounds = array<i64: 1, 32>}, {pipeline_mode = #tpu.pipeline_mode<synchronous>, transform_indices = @transform_7, window_bounds = array<i64: 1, 32>}, {pipeline_mode = #tpu.pipeline_mode<synchronous>, transform_indices = @transform_8, window_bounds = array<i64: 32, 32>}, {pipeline_mode = #tpu.pipeline_mode<synchronous>, transform_indices = @transform_9, window_bounds = array<i64: 1, 32>}, {pipeline_mode = #tpu.pipeline_mode<synchronous>, transform_indices = @transform_10, window_bounds = array<i64: 1, 32>}, {transform_indices = @transform_11, window_bounds = array<i64: 256, 32>}]} {
    %c0 = arith.constant 0 : index
    %c0_0 = arith.constant 0 : index
    %c0_1 = arith.constant 0 : index
    %0 = vector.load %arg1[%c0, %c0_0, %c0_1] : memref<1x64x32xf32, #tpu.memory_space<vmem>>, vector<1x64x32xf32>
    %1 = vector.shape_cast %0 : vector<1x64x32xf32> to vector<64x32xf32>
    %cst = arith.constant dense<0.000000e+00> : vector<32xf32>
    %2 = vector.multi_reduction <add>, %1, %cst [0] : vector<64x32xf32> to vector<32xf32>
    %3 = vector.shape_cast %2 : vector<32xf32> to vector<1x32xf32>
    %cst_2 = arith.constant 6.400000e+01 : f32
    %4 = vector.broadcast %cst_2 : f32 to vector<1x32xf32>
    %5 = arith.divf %3, %4 : vector<1x32xf32>
    %c0_3 = arith.constant 0 : index
    %c0_4 = arith.constant 0 : index
    %6 = vector.load %arg6[%c0_3, %c0_4] : memref<32x32xf32, #tpu.memory_space<vmem>>, vector<32x32xf32>
    %cst_5 = arith.constant dense<0.000000e+00> : vector<1x32xf32>
    %7 = tpu.matmul %5, %6, %cst_5 {dimension_numbers = #tpu.dot_dimension_numbers<[1], [0], [0], [1], [0, 0, 1, 1], [], []>} : vector<1x32xf32>, vector<32x32xf32>, vector<1x32xf32> -> vector<1x32xf32>
    %c0_6 = arith.constant 0 : index
    %c0_7 = arith.constant 0 : index
    %8 = vector.load %arg7[%c0_6, %c0_7] : memref<1x32xf32, #tpu.memory_space<vmem>>, vector<1x32xf32>
    %9 = arith.mulf %7, %8 : vector<1x32xf32>
    %c0_8 = arith.constant 0 : index
    %c0_9 = arith.constant 0 : index
    %10 = vector.load %arg8[%c0_8, %c0_9] : memref<1x32xf32, #tpu.memory_space<vmem>>, vector<1x32xf32>
    %11 = arith.addf %9, %10 : vector<1x32xf32>
    %cst_10 = arith.constant 0.000000e+00 : f32
    %12 = vector.broadcast %cst_10 : f32 to vector<1x32xf32>
    %13 = arith.maximumf %11, %12 : vector<1x32xf32>
    %c0_11 = arith.constant 0 : index
    %c0_12 = arith.constant 0 : index
    %14 = vector.load %arg9[%c0_11, %c0_12] : memref<32x32xf32, #tpu.memory_space<vmem>>, vector<32x32xf32>
    %cst_13 = arith.constant dense<0.000000e+00> : vector<1x32xf32>
    %15 = tpu.matmul %13, %14, %cst_13 {dimension_numbers = #tpu.dot_dimension_numbers<[1], [0], [0], [1], [0, 0, 1, 1], [], []>} : vector<1x32xf32>, vector<32x32xf32>, vector<1x32xf32> -> vector<1x32xf32>
    %c0_14 = arith.constant 0 : index
    %c0_15 = arith.constant 0 : index
    %16 = vector.load %arg10[%c0_14, %c0_15] : memref<1x32xf32, #tpu.memory_space<vmem>>, vector<1x32xf32>
    %17 = arith.mulf %15, %16 : vector<1x32xf32>
    %c0_16 = arith.constant 0 : index
    %c0_17 = arith.constant 0 : index
    %18 = vector.load %arg11[%c0_16, %c0_17] : memref<1x32xf32, #tpu.memory_space<vmem>>, vector<1x32xf32>
    %19 = arith.addf %17, %18 : vector<1x32xf32>
    %cst_18 = arith.constant 0.000000e+00 : f32
    %20 = vector.broadcast %cst_18 : f32 to vector<1x32xf32>
    %21 = arith.maximumf %19, %20 : vector<1x32xf32>
    %c0_19 = arith.constant 0 : index
    %c0_20 = arith.constant 0 : index
    %c0_21 = arith.constant 0 : index
    %c0_22 = arith.constant 0 : index
    %22 = vector.load %arg2[%c0_19, %c0_20, %c0_21, %c0_22] : memref<1x18x18x32xbf16, #tpu.memory_space<vmem>>, vector<1x18x18x32xbf16>
    %23 = vector.shape_cast %22 : vector<1x18x18x32xbf16> to vector<18x18x32xbf16>
    %cst_23 = arith.constant 0.000000e+00 : f32
    %24 = vector.broadcast %cst_23 : f32 to vector<256x32xf32>
    %25 = vector.extract_strided_slice %23 {offsets = [0, 0, 0], sizes = [16, 16, 32], strides = [1, 1, 1]} : vector<18x18x32xbf16> to vector<16x16x32xbf16>
    %26 = vector.shape_cast %25 : vector<16x16x32xbf16> to vector<256x32xbf16>
    %c0_24 = arith.constant 0 : index
    %c0_25 = arith.constant 0 : index
    %c0_26 = arith.constant 0 : index
    %27 = vector.load %arg3[%c0_24, %c0_25, %c0_26] : memref<9x32x32xbf16, #tpu.memory_space<vmem>>, vector<1x32x32xbf16>
    %28 = vector.shape_cast %27 : vector<1x32x32xbf16> to vector<32x32xbf16>
    %cst_27 = arith.constant dense<0.000000e+00> : vector<256x32xf32>
    %29 = tpu.matmul %26, %28, %cst_27 {dimension_numbers = #tpu.dot_dimension_numbers<[1], [0], [0], [1], [0, 0, 1, 1], [], []>} : vector<256x32xbf16>, vector<32x32xbf16>, vector<256x32xf32> -> vector<256x32xf32>
    %30 = arith.addf %24, %29 : vector<256x32xf32>
    %31 = vector.extract_strided_slice %23 {offsets = [0, 1, 0], sizes = [16, 16, 32], strides = [1, 1, 1]} : vector<18x18x32xbf16> to vector<16x16x32xbf16>
    %32 = vector.shape_cast %31 : vector<16x16x32xbf16> to vector<256x32xbf16>
    %c1 = arith.constant 1 : index
    %c0_28 = arith.constant 0 : index
    %c0_29 = arith.constant 0 : index
    %33 = vector.load %arg3[%c1, %c0_28, %c0_29] : memref<9x32x32xbf16, #tpu.memory_space<vmem>>, vector<1x32x32xbf16>
    %34 = vector.shape_cast %33 : vector<1x32x32xbf16> to vector<32x32xbf16>
    %cst_30 = arith.constant dense<0.000000e+00> : vector<256x32xf32>
    %35 = tpu.matmul %32, %34, %cst_30 {dimension_numbers = #tpu.dot_dimension_numbers<[1], [0], [0], [1], [0, 0, 1, 1], [], []>} : vector<256x32xbf16>, vector<32x32xbf16>, vector<256x32xf32> -> vector<256x32xf32>
    %36 = arith.addf %30, %35 : vector<256x32xf32>
    %37 = vector.extract_strided_slice %23 {offsets = [0, 2, 0], sizes = [16, 16, 32], strides = [1, 1, 1]} : vector<18x18x32xbf16> to vector<16x16x32xbf16>
    %38 = vector.shape_cast %37 : vector<16x16x32xbf16> to vector<256x32xbf16>
    %c2 = arith.constant 2 : index
    %c0_31 = arith.constant 0 : index
    %c0_32 = arith.constant 0 : index
    %39 = vector.load %arg3[%c2, %c0_31, %c0_32] : memref<9x32x32xbf16, #tpu.memory_space<vmem>>, vector<1x32x32xbf16>
    %40 = vector.shape_cast %39 : vector<1x32x32xbf16> to vector<32x32xbf16>
    %cst_33 = arith.constant dense<0.000000e+00> : vector<256x32xf32>
    %41 = tpu.matmul %38, %40, %cst_33 {dimension_numbers = #tpu.dot_dimension_numbers<[1], [0], [0], [1], [0, 0, 1, 1], [], []>} : vector<256x32xbf16>, vector<32x32xbf16>, vector<256x32xf32> -> vector<256x32xf32>
    %42 = arith.addf %36, %41 : vector<256x32xf32>
    %43 = vector.extract_strided_slice %23 {offsets = [1, 0, 0], sizes = [16, 16, 32], strides = [1, 1, 1]} : vector<18x18x32xbf16> to vector<16x16x32xbf16>
    %44 = vector.shape_cast %43 : vector<16x16x32xbf16> to vector<256x32xbf16>
    %c3 = arith.constant 3 : index
    %c0_34 = arith.constant 0 : index
    %c0_35 = arith.constant 0 : index
    %45 = vector.load %arg3[%c3, %c0_34, %c0_35] : memref<9x32x32xbf16, #tpu.memory_space<vmem>>, vector<1x32x32xbf16>
    %46 = vector.shape_cast %45 : vector<1x32x32xbf16> to vector<32x32xbf16>
    %cst_36 = arith.constant dense<0.000000e+00> : vector<256x32xf32>
    %47 = tpu.matmul %44, %46, %cst_36 {dimension_numbers = #tpu.dot_dimension_numbers<[1], [0], [0], [1], [0, 0, 1, 1], [], []>} : vector<256x32xbf16>, vector<32x32xbf16>, vector<256x32xf32> -> vector<256x32xf32>
    %48 = arith.addf %42, %47 : vector<256x32xf32>
    %49 = vector.extract_strided_slice %23 {offsets = [1, 1, 0], sizes = [16, 16, 32], strides = [1, 1, 1]} : vector<18x18x32xbf16> to vector<16x16x32xbf16>
    %50 = vector.shape_cast %49 : vector<16x16x32xbf16> to vector<256x32xbf16>
    %c4 = arith.constant 4 : index
    %c0_37 = arith.constant 0 : index
    %c0_38 = arith.constant 0 : index
    %51 = vector.load %arg3[%c4, %c0_37, %c0_38] : memref<9x32x32xbf16, #tpu.memory_space<vmem>>, vector<1x32x32xbf16>
    %52 = vector.shape_cast %51 : vector<1x32x32xbf16> to vector<32x32xbf16>
    %cst_39 = arith.constant dense<0.000000e+00> : vector<256x32xf32>
    %53 = tpu.matmul %50, %52, %cst_39 {dimension_numbers = #tpu.dot_dimension_numbers<[1], [0], [0], [1], [0, 0, 1, 1], [], []>} : vector<256x32xbf16>, vector<32x32xbf16>, vector<256x32xf32> -> vector<256x32xf32>
    %54 = arith.addf %48, %53 : vector<256x32xf32>
    %55 = vector.extract_strided_slice %23 {offsets = [1, 2, 0], sizes = [16, 16, 32], strides = [1, 1, 1]} : vector<18x18x32xbf16> to vector<16x16x32xbf16>
    %56 = vector.shape_cast %55 : vector<16x16x32xbf16> to vector<256x32xbf16>
    %c5 = arith.constant 5 : index
    %c0_40 = arith.constant 0 : index
    %c0_41 = arith.constant 0 : index
    %57 = vector.load %arg3[%c5, %c0_40, %c0_41] : memref<9x32x32xbf16, #tpu.memory_space<vmem>>, vector<1x32x32xbf16>
    %58 = vector.shape_cast %57 : vector<1x32x32xbf16> to vector<32x32xbf16>
    %cst_42 = arith.constant dense<0.000000e+00> : vector<256x32xf32>
    %59 = tpu.matmul %56, %58, %cst_42 {dimension_numbers = #tpu.dot_dimension_numbers<[1], [0], [0], [1], [0, 0, 1, 1], [], []>} : vector<256x32xbf16>, vector<32x32xbf16>, vector<256x32xf32> -> vector<256x32xf32>
    %60 = arith.addf %54, %59 : vector<256x32xf32>
    %61 = vector.extract_strided_slice %23 {offsets = [2, 0, 0], sizes = [16, 16, 32], strides = [1, 1, 1]} : vector<18x18x32xbf16> to vector<16x16x32xbf16>
    %62 = vector.shape_cast %61 : vector<16x16x32xbf16> to vector<256x32xbf16>
    %c6 = arith.constant 6 : index
    %c0_43 = arith.constant 0 : index
    %c0_44 = arith.constant 0 : index
    %63 = vector.load %arg3[%c6, %c0_43, %c0_44] : memref<9x32x32xbf16, #tpu.memory_space<vmem>>, vector<1x32x32xbf16>
    %64 = vector.shape_cast %63 : vector<1x32x32xbf16> to vector<32x32xbf16>
    %cst_45 = arith.constant dense<0.000000e+00> : vector<256x32xf32>
    %65 = tpu.matmul %62, %64, %cst_45 {dimension_numbers = #tpu.dot_dimension_numbers<[1], [0], [0], [1], [0, 0, 1, 1], [], []>} : vector<256x32xbf16>, vector<32x32xbf16>, vector<256x32xf32> -> vector<256x32xf32>
    %66 = arith.addf %60, %65 : vector<256x32xf32>
    %67 = vector.extract_strided_slice %23 {offsets = [2, 1, 0], sizes = [16, 16, 32], strides = [1, 1, 1]} : vector<18x18x32xbf16> to vector<16x16x32xbf16>
    %68 = vector.shape_cast %67 : vector<16x16x32xbf16> to vector<256x32xbf16>
    %c7 = arith.constant 7 : index
    %c0_46 = arith.constant 0 : index
    %c0_47 = arith.constant 0 : index
    %69 = vector.load %arg3[%c7, %c0_46, %c0_47] : memref<9x32x32xbf16, #tpu.memory_space<vmem>>, vector<1x32x32xbf16>
    %70 = vector.shape_cast %69 : vector<1x32x32xbf16> to vector<32x32xbf16>
    %cst_48 = arith.constant dense<0.000000e+00> : vector<256x32xf32>
    %71 = tpu.matmul %68, %70, %cst_48 {dimension_numbers = #tpu.dot_dimension_numbers<[1], [0], [0], [1], [0, 0, 1, 1], [], []>} : vector<256x32xbf16>, vector<32x32xbf16>, vector<256x32xf32> -> vector<256x32xf32>
    %72 = arith.addf %66, %71 : vector<256x32xf32>
    %73 = vector.extract_strided_slice %23 {offsets = [2, 2, 0], sizes = [16, 16, 32], strides = [1, 1, 1]} : vector<18x18x32xbf16> to vector<16x16x32xbf16>
    %74 = vector.shape_cast %73 : vector<16x16x32xbf16> to vector<256x32xbf16>
    %c8 = arith.constant 8 : index
    %c0_49 = arith.constant 0 : index
    %c0_50 = arith.constant 0 : index
    %75 = vector.load %arg3[%c8, %c0_49, %c0_50] : memref<9x32x32xbf16, #tpu.memory_space<vmem>>, vector<1x32x32xbf16>
    %76 = vector.shape_cast %75 : vector<1x32x32xbf16> to vector<32x32xbf16>
    %cst_51 = arith.constant dense<0.000000e+00> : vector<256x32xf32>
    %77 = tpu.matmul %74, %76, %cst_51 {dimension_numbers = #tpu.dot_dimension_numbers<[1], [0], [0], [1], [0, 0, 1, 1], [], []>} : vector<256x32xbf16>, vector<32x32xbf16>, vector<256x32xf32> -> vector<256x32xf32>
    %78 = arith.addf %72, %77 : vector<256x32xf32>
    %c0_52 = arith.constant 0 : index
    %c0_53 = arith.constant 0 : index
    %79 = vector.load %arg4[%c0_52, %c0_53] : memref<1x32xf32, #tpu.memory_space<vmem>>, vector<1x32xf32>
    %80 = vector.broadcast %79 : vector<1x32xf32> to vector<256x32xf32>
    %81 = arith.mulf %78, %80 : vector<256x32xf32>
    %c0_54 = arith.constant 0 : index
    %c0_55 = arith.constant 0 : index
    %82 = vector.load %arg5[%c0_54, %c0_55] : memref<1x32xf32, #tpu.memory_space<vmem>>, vector<1x32xf32>
    %83 = vector.broadcast %82 : vector<1x32xf32> to vector<256x32xf32>
    %84 = arith.addf %81, %83 : vector<256x32xf32>
    %cst_56 = arith.constant 0.000000e+00 : f32
    %85 = vector.broadcast %cst_56 : f32 to vector<256x32xf32>
    %86 = arith.maximumf %84, %85 : vector<256x32xf32>
    %87 = vector.broadcast %13 : vector<1x32xf32> to vector<256x32xf32>
    %88 = arith.mulf %86, %87 : vector<256x32xf32>
    %cst_57 = arith.constant 0.000000e+00 : f32
    %89 = vector.broadcast %cst_57 : f32 to vector<256x32xf32>
    %90 = arith.maximumf %88, %89 : vector<256x32xf32>
    %91 = vector.broadcast %21 : vector<1x32xf32> to vector<256x32xf32>
    %92 = arith.addf %90, %91 : vector<256x32xf32>
    %cst_58 = arith.constant 0.000000e+00 : f32
    %93 = vector.broadcast %cst_58 : f32 to vector<256x32xf32>
    %94 = arith.maximumf %92, %93 : vector<256x32xf32>
    %c0_59 = arith.constant 0 : index
    %c0_60 = arith.constant 0 : index
    %95 = vector.load %arg12[%c0_59, %c0_60] : memref<256x32xf32, #tpu.memory_space<vmem>>, vector<256x32xf32>
    tpu.vector_store %arg12[%c0_59, %c0_60], %94 {strides = array<i32>} : memref<256x32xf32, #tpu.memory_space<vmem>>, vector<256x32xf32>,
    return
  }
  func.func @transform_0(%arg0: i32) -> (i32, i32, i32) {
    %c0_i32 = arith.constant 0 : i32
    %c0_i32_0 = arith.constant 0 : i32
    %c0_i32_1 = arith.constant 0 : i32
    return %arg0, %c0_i32, %c0_i32_0 : i32, i32, i32
  }
  func.func @transform_1(%arg0: i32) -> (i32, i32, i32, i32) {
    %c0_i32 = arith.constant 0 : i32
    %c0_i32_0 = arith.constant 0 : i32
    %c0_i32_1 = arith.constant 0 : i32
    %c0_i32_2 = arith.constant 0 : i32
    return %arg0, %c0_i32, %c0_i32_0, %c0_i32_1 : i32, i32, i32, i32
  }
  func.func @transform_2(%arg0: i32) -> (i32, i32, i32) {
    %c0_i32 = arith.constant 0 : i32
    %c0_i32_0 = arith.constant 0 : i32
    %c0_i32_1 = arith.constant 0 : i32
    %c0_i32_2 = arith.constant 0 : i32
    return %c0_i32, %c0_i32_0, %c0_i32_1 : i32, i32, i32
  }
  func.func @transform_3(%arg0: i32) -> (i32, i32) {
    %c0_i32 = arith.constant 0 : i32
    %c0_i32_0 = arith.constant 0 : i32
    %c0_i32_1 = arith.constant 0 : i32
    return %c0_i32, %c0_i32_0 : i32, i32
  }
  func.func @transform_4(%arg0: i32) -> (i32, i32) {
    %c0_i32 = arith.constant 0 : i32
    %c0_i32_0 = arith.constant 0 : i32
    %c0_i32_1 = arith.constant 0 : i32
    return %c0_i32, %c0_i32_0 : i32, i32
  }
  func.func @transform_5(%arg0: i32) -> (i32, i32) {
    %c0_i32 = arith.constant 0 : i32
    %c0_i32_0 = arith.constant 0 : i32
    %c0_i32_1 = arith.constant 0 : i32
    return %c0_i32, %c0_i32_0 : i32, i32
  }
  func.func @transform_6(%arg0: i32) -> (i32, i32) {
    %c0_i32 = arith.constant 0 : i32
    %c0_i32_0 = arith.constant 0 : i32
    %c0_i32_1 = arith.constant 0 : i32
    return %c0_i32, %c0_i32_0 : i32, i32
  }
  func.func @transform_7(%arg0: i32) -> (i32, i32) {
    %c0_i32 = arith.constant 0 : i32
    %c0_i32_0 = arith.constant 0 : i32
    %c0_i32_1 = arith.constant 0 : i32
    return %c0_i32, %c0_i32_0 : i32, i32
  }
  func.func @transform_8(%arg0: i32) -> (i32, i32) {
    %c0_i32 = arith.constant 0 : i32
    %c0_i32_0 = arith.constant 0 : i32
    %c0_i32_1 = arith.constant 0 : i32
    return %c0_i32, %c0_i32_0 : i32, i32
  }
  func.func @transform_9(%arg0: i32) -> (i32, i32) {
    %c0_i32 = arith.constant 0 : i32
    %c0_i32_0 = arith.constant 0 : i32
    %c0_i32_1 = arith.constant 0 : i32
    return %c0_i32, %c0_i32_0 : i32, i32
  }
  func.func @transform_10(%arg0: i32) -> (i32, i32) {
    %c0_i32 = arith.constant 0 : i32
    %c0_i32_0 = arith.constant 0 : i32
    %c0_i32_1 = arith.constant 0 : i32
    return %c0_i32, %c0_i32_0 : i32, i32
  }
  func.func @transform_11(%arg0: i32) -> (i32, i32) {
    %c0_i32 = arith.constant 0 : i32
    %c0_i32_0 = arith.constant 0 : i32
    return %arg0, %c0_i32 : i32, i32
  }
}

</mosaic_0001>

<llo_original>
// kernel: gau_forward.1
$region0: #{gau_forward.1}
  #allocation0 [shape = 'u32[]', space=smem, size = 0x4, offset = 0x4, fixed_abs, tag = 'smem constant byte address 0x4 - core index']
  #allocation1 [shape = 'u32[144,128]{1,0:T(1,128)}', space=vmem, size = 0x12000, scoped, tag = 'internal scratch']
  %s0 = inlined_call_operand.vmem [shape: f32[2,64,32], index: 0, kind: input, shape index: {}]
  %s1 = inlined_call_operand.vmem [shape: bf16[2,18,18,32], index: 1, kind: input, shape index: {}]
  %s2 = inlined_call_operand.vmem [shape: bf16[9,32,32], index: 2, kind: input, shape index: {}]
  %s3 = inlined_call_operand.vmem [shape: f32[1,32], index: 3, kind: input, shape index: {}]
  %s4 = inlined_call_operand.vmem [shape: f32[1,32], index: 4, kind: input, shape index: {}]
  %s5 = inlined_call_operand.vmem [shape: f32[32,32], index: 5, kind: input, shape index: {}]
  %s6 = inlined_call_operand.vmem [shape: f32[1,32], index: 6, kind: input, shape index: {}]
  %s7 = inlined_call_operand.vmem [shape: f32[1,32], index: 7, kind: input, shape index: {}]
  %s8 = inlined_call_operand.vmem [shape: f32[32,32], index: 8, kind: input, shape index: {}]
  %s9 = inlined_call_operand.vmem [shape: f32[1,32], index: 9, kind: input, shape index: {}]
  %s10 = inlined_call_operand.vmem [shape: f32[1,32], index: 10, kind: input, shape index: {}]
  %s11 = inlined_call_operand.hbm [shape: f32[512,32], index: 11, kind: output, shape index: {}]
  %s12 = sld [smem:[#allocation0]]
  $region77: #{gau_forward.1} parent=0
    _
  %s14 = ssub.s32 1, %s12
  %s15 = scalar_select 0, %s14, %s12
  $region1: #{gau_forward.1} parent=0
    #allocation2 [shape = 'u8[262144]{0}', space=vmem, size = 0x40000, scoped, tag = 'output window, operand 0']
    #allocation3 [shape = 's32[2]{0}', space=sflag, size = 0x8, scoped, tag = 'scoped memory for gau_forward.1']
    %16 = vsyncpa [#allocation3], 0
    %s17 = scalar_lea.sflag [#allocation3], 1
    %18 = vsyncpa %s17, 0
    loop: start=0, step=1, limit=4
    $region2: #{gau_forward.1} parent=1 // loop_pre_header
      _
    $region3: #{gau_forward.1} parent=1 // loop_header
      %s20 = sphi 0, %s24
      %p21 = scmp.ge.s32.totalorder %s20, 4
      %s30 = sphi 0, %s32
      %s33 = sphi 0, %s30
      %s34 = sphi 0, %s33
      %s50 = sphi 0, %s34
      %s56 = sphi 0, %s58
      %s59 = sphi 0, %s56
      %s60 = sphi 0, %s59
      %s76 = sphi 0, %s60
      %s80 = sphi 0, %s80
      %s82 = sphi 0, %s80
      %s83 = sphi 0, %s82
      %s97 = sphi 0, %s83
      %s101 = sphi 0, %s101
      %s103 = sphi 0, %s101
      %s104 = sphi 0, %s103
      %s118 = sphi 0, %s104
      %s122 = sphi 0, %s122
      %s124 = sphi 0, %s122
      %s125 = sphi 0, %s124
      %s139 = sphi 0, %s125
      %s143 = sphi 0, %s143
      %s145 = sphi 0, %s143
      %s146 = sphi 0, %s145
      %s160 = sphi 0, %s146
      %s164 = sphi 0, %s164
      %s166 = sphi 0, %s164
      %s167 = sphi 0, %s166
      %s181 = sphi 0, %s167
      %s185 = sphi 0, %s185
      %s187 = sphi 0, %s185
      %s188 = sphi 0, %s187
      %s202 = sphi 0, %s188
      %s206 = sphi 0, %s206
      %s208 = sphi 0, %s206
      %s209 = sphi 0, %s208
      %s223 = sphi 0, %s209
      %s227 = sphi 0, %s227
      %s229 = sphi 0, %s227
      %s230 = sphi 0, %s229
      %s244 = sphi 0, %s230
      %s248 = sphi 0, %s248
      %s250 = sphi 0, %s248
      %s251 = sphi 0, %s250
      %s265 = sphi 0, %s251
      %s271 = sphi 0, %s273
      %s274 = sphi 0, %s271
      %s275 = sphi 0, %s274
      %s291 = sphi 0, %s275
    $region4: #{gau_forward.1} parent=1 // loop_header_branch
      %23 = sbr.rel (%p21) target = $region8
    $region5: #{gau_forward.1} parent=1 // loop_body
      %s25 = ssub.s32 %s20, 1
      %s26 = ssub.s32 %s20, 2
      %s27 = sadd.s32 %s20, 1
      %s28 = ssub.s32 %s20, %s27
      %p29 = scmp.eq.s32.totalorder %s28, 0
      %s31 = sadd.s32 %s30, 1
      %s32 = scalar_select %p29, %s30, %s31
      %p35 = pneg %p29
      %p36 = scmp.eq.s32.totalorder %s20, 1
      %p37 = por %p35, %p36
      %p38 = scmp.ne.s32.totalorder %s30, %s33
      %p39 = scmp.eq.s32.totalorder %s20, 0
      %p40 = por %p38, %p39
      %p41 = scmp.ne.s32.totalorder %s30, %s33
      %p42 = scmp.eq.s32.totalorder %s25, 1
      %p43 = por %p41, %p42
      %p44 = scmp.ne.s32.totalorder %s33, %s34
      %p45 = scmp.eq.s32.totalorder %s25, 0
      %p46 = por %p44, %p45
      %p47 = scmp.ne.s32.totalorder %s33, %s34
      %p48 = scmp.eq.s32.totalorder %s26, 1
      %p49 = por %p47, %p48
      %p51 = scmp.ne.s32.totalorder %s34, %s50
      %p52 = scmp.eq.s32.totalorder %s26, 0
      %p53 = por %p51, %p52
      %s54 = ssub.s32 %s20, %s27
      %p55 = scmp.eq.s32.totalorder %s54, 0
      %s57 = sadd.s32 %s56, 1
      %s58 = scalar_select %p55, %s56, %s57
      %p61 = pneg %p55
      %p62 = scmp.eq.s32.totalorder %s20, 1
      %p63 = por %p61, %p62
      %p64 = scmp.ne.s32.totalorder %s56, %s59
      %p65 = scmp.eq.s32.totalorder %s20, 0
      %p66 = por %p64, %p65
      %p67 = scmp.ne.s32.totalorder %s56, %s59
      %p68 = scmp.eq.s32.totalorder %s25, 1
      %p69 = por %p67, %p68
      %p70 = scmp.ne.s32.totalorder %s59, %s60
      %p71 = scmp.eq.s32.totalorder %s25, 0
      %p72 = por %p70, %p71
      %p73 = scmp.ne.s32.totalorder %s59, %s60
      %p74 = scmp.eq.s32.totalorder %s26, 1
      %p75 = por %p73, %p74
      %p77 = scmp.ne.s32.totalorder %s60, %s76
      %p78 = scmp.eq.s32.totalorder %s26, 0
      %p79 = por %p77, %p78
      %s81 = sadd.s32 %s80, 1
      %p84 = scmp.eq.s32.totalorder %s20, 1
      %p85 = scmp.ne.s32.totalorder %s80, %s82
      %p86 = scmp.eq.s32.totalorder %s20, 0
      %p87 = por %p85, %p86
      %p88 = scmp.ne.s32.totalorder %s80, %s82
      %p89 = scmp.eq.s32.totalorder %s25, 1
      %p90 = por %p88, %p89
      %p91 = scmp.ne.s32.totalorder %s82, %s83
      %p92 = scmp.eq.s32.totalorder %s25, 0
      %p93 = por %p91, %p92
      %p94 = scmp.ne.s32.totalorder %s82, %s83
      %p95 = scmp.eq.s32.totalorder %s26, 1
      %p96 = por %p94, %p95
      %p98 = scmp.ne.s32.totalorder %s83, %s97
      %p99 = scmp.eq.s32.totalorder %s26, 0
      %p100 = por %p98, %p99
      %s102 = sadd.s32 %s101, 1
      %p105 = scmp.eq.s32.totalorder %s20, 1
      %p106 = scmp.ne.s32.totalorder %s101, %s103
      %p107 = scmp.eq.s32.totalorder %s20, 0
      %p108 = por %p106, %p107
      %p109 = scmp.ne.s32.totalorder %s101, %s103
      %p110 = scmp.eq.s32.totalorder %s25, 1
      %p111 = por %p109, %p110
      %p112 = scmp.ne.s32.totalorder %s103, %s104
      %p113 = scmp.eq.s32.totalorder %s25, 0
      %p114 = por %p112, %p113
      %p115 = scmp.ne.s32.totalorder %s103, %s104
      %p116 = scmp.eq.s32.totalorder %s26, 1
      %p117 = por %p115, %p116
      %p119 = scmp.ne.s32.totalorder %s104, %s118
      %p120 = scmp.eq.s32.totalorder %s26, 0
      %p121 = por %p119, %p120
      %s123 = sadd.s32 %s122, 1
      %p126 = scmp.eq.s32.totalorder %s20, 1
      %p127 = scmp.ne.s32.totalorder %s122, %s124
      %p128 = scmp.eq.s32.totalorder %s20, 0
      %p129 = por %p127, %p128
      %p130 = scmp.ne.s32.totalorder %s122, %s124
      %p131 = scmp.eq.s32.totalorder %s25, 1
      %p132 = por %p130, %p131
      %p133 = scmp.ne.s32.totalorder %s124, %s125
      %p134 = scmp.eq.s32.totalorder %s25, 0
      %p135 = por %p133, %p134
      %p136 = scmp.ne.s32.totalorder %s124, %s125
      %p137 = scmp.eq.s32.totalorder %s26, 1
      %p138 = por %p136, %p137
      %p140 = scmp.ne.s32.totalorder %s125, %s139
      %p141 = scmp.eq.s32.totalorder %s26, 0
      %p142 = por %p140, %p141
      %s144 = sadd.s32 %s143, 1
      %p147 = scmp.eq.s32.totalorder %s20, 1
      %p148 = scmp.ne.s32.totalorder %s143, %s145
      %p149 = scmp.eq.s32.totalorder %s20, 0
      %p150 = por %p148, %p149
      %p151 = scmp.ne.s32.totalorder %s143, %s145
      %p152 = scmp.eq.s32.totalorder %s25, 1
      %p153 = por %p151, %p152
      %p154 = scmp.ne.s32.totalorder %s145, %s146
      %p155 = scmp.eq.s32.totalorder %s25, 0
      %p156 = por %p154, %p155
      %p157 = scmp.ne.s32.totalorder %s145, %s146
      %p158 = scmp.eq.s32.totalorder %s26, 1
      %p159 = por %p157, %p158
      %p161 = scmp.ne.s32.totalorder %s146, %s160
      %p162 = scmp.eq.s32.totalorder %s26, 0
      %p163 = por %p161, %p162
      %s165 = sadd.s32 %s164, 1
      %p168 = scmp.eq.s32.totalorder %s20, 1
      %p169 = scmp.ne.s32.totalorder %s164, %s166
      %p170 = scmp.eq.s32.totalorder %s20, 0
      %p171 = por %p169, %p170
      %p172 = scmp.ne.s32.totalorder %s164, %s166
      %p173 = scmp.eq.s32.totalorder %s25, 1
      %p174 = por %p172, %p173
      %p175 = scmp.ne.s32.totalorder %s166, %s167
      %p176 = scmp.eq.s32.totalorder %s25, 0
      %p177 = por %p175, %p176
      %p178 = scmp.ne.s32.totalorder %s166, %s167
      %p179 = scmp.eq.s32.totalorder %s26, 1
      %p180 = por %p178, %p179
      %p182 = scmp.ne.s32.totalorder %s167, %s181
      %p183 = scmp.eq.s32.totalorder %s26, 0
      %p184 = por %p182, %p183
      %s186 = sadd.s32 %s185, 1
      %p189 = scmp.eq.s32.totalorder %s20, 1
      %p190 = scmp.ne.s32.totalorder %s185, %s187
      %p191 = scmp.eq.s32.totalorder %s20, 0
      %p192 = por %p190, %p191
      %p193 = scmp.ne.s32.totalorder %s185, %s187
      %p194 = scmp.eq.s32.totalorder %s25, 1
      %p195 = por %p193, %p194
      %p196 = scmp.ne.s32.totalorder %s187, %s188
      %p197 = scmp.eq.s32.totalorder %s25, 0
      %p198 = por %p196, %p197
      %p199 = scmp.ne.s32.totalorder %s187, %s188
      %p200 = scmp.eq.s32.totalorder %s26, 1
      %p201 = por %p199, %p200
      %p203 = scmp.ne.s32.totalorder %s188, %s202
      %p204 = scmp.eq.s32.totalorder %s26, 0
      %p205 = por %p203, %p204
      %s207 = sadd.s32 %s206, 1
      %p210 = scmp.eq.s32.totalorder %s20, 1
      %p211 = scmp.ne.s32.totalorder %s206, %s208
      %p212 = scmp.eq.s32.totalorder %s20, 0
      %p213 = por %p211, %p212
      %p214 = scmp.ne.s32.totalorder %s206, %s208
      %p215 = scmp.eq.s32.totalorder %s25, 1
      %p216 = por %p214, %p215
      %p217 = scmp.ne.s32.totalorder %s208, %s209
      %p218 = scmp.eq.s32.totalorder %s25, 0
      %p219 = por %p217, %p218
      %p220 = scmp.ne.s32.totalorder %s208, %s209
      %p221 = scmp.eq.s32.totalorder %s26, 1
      %p222 = por %p220, %p221
      %p224 = scmp.ne.s32.totalorder %s209, %s223
      %p225 = scmp.eq.s32.totalorder %s26, 0
      %p226 = por %p224, %p225
      %s228 = sadd.s32 %s227, 1
      %p231 = scmp.eq.s32.totalorder %s20, 1
      %p232 = scmp.ne.s32.totalorder %s227, %s229
      %p233 = scmp.eq.s32.totalorder %s20, 0
      %p234 = por %p232, %p233
      %p235 = scmp.ne.s32.totalorder %s227, %s229
      %p236 = scmp.eq.s32.totalorder %s25, 1
      %p237 = por %p235, %p236
      %p238 = scmp.ne.s32.totalorder %s229, %s230
      %p239 = scmp.eq.s32.totalorder %s25, 0
      %p240 = por %p238, %p239
      %p241 = scmp.ne.s32.totalorder %s229, %s230
      %p242 = scmp.eq.s32.totalorder %s26, 1
      %p243 = por %p241, %p242
      %p245 = scmp.ne.s32.totalorder %s230, %s244
      %p246 = scmp.eq.s32.totalorder %s26, 0
      %p247 = por %p245, %p246
      %s249 = sadd.s32 %s248, 1
      %p252 = scmp.eq.s32.totalorder %s20, 1
      %p253 = scmp.ne.s32.totalorder %s248, %s250
      %p254 = scmp.eq.s32.totalorder %s20, 0
      %p255 = por %p253, %p254
      %p256 = scmp.ne.s32.totalorder %s248, %s250
      %p257 = scmp.eq.s32.totalorder %s25, 1
      %p258 = por %p256, %p257
      %p259 = scmp.ne.s32.totalorder %s250, %s251
      %p260 = scmp.eq.s32.totalorder %s25, 0
      %p261 = por %p259, %p260
      %p262 = scmp.ne.s32.totalorder %s250, %s251
      %p263 = scmp.eq.s32.totalorder %s26, 1
      %p264 = por %p262, %p263
      %p266 = scmp.ne.s32.totalorder %s251, %s265
      %p267 = scmp.eq.s32.totalorder %s26, 0
      %p268 = por %p266, %p267
      %s269 = ssub.s32 %s20, %s27
      %p270 = scmp.eq.s32.totalorder %s269, 0
      %s272 = sadd.s32 %s271, 1
      %s273 = scalar_select %p270, %s271, %s272
      %p276 = pneg %p270
      %p277 = scmp.eq.s32.totalorder %s20, 1
      %p278 = por %p276, %p277
      %p279 = scmp.ne.s32.totalorder %s271, %s274
      %p280 = scmp.eq.s32.totalorder %s20, 0
      %p281 = por %p279, %p280
      %p282 = scmp.ne.s32.totalorder %s271, %s274
      %p283 = scmp.eq.s32.totalorder %s25, 1
      %p284 = por %p282, %p283
      %p285 = scmp.ne.s32.totalorder %s274, %s275
      %p286 = scmp.eq.s32.totalorder %s25, 0
      %p287 = por %p285, %p286
      %p288 = scmp.ne.s32.totalorder %s274, %s275
      %p289 = scmp.eq.s32.totalorder %s26, 1
      %p290 = por %p288, %p289
      %p292 = scmp.ne.s32.totalorder %s275, %s291
      %p293 = scmp.eq.s32.totalorder %s26, 0
      %p294 = por %p292, %p293
      %p295 = scmp.le.s32.totalorder 1, %s20
      %p296 = scmp.lt.s32.totalorder %s20, 3
      %p297 = pnand %p295, %p296
      %p298 = pneg %p297
      // Predicated region
      $region9: #{gau_forward.1} parent=5 // pred_check
        _
      $region10: #{gau_forward.1} parent=5 // pred_check_branch
        %300 = sbr.rel (%p297) target = $region12
      $region11: #{gau_forward.1} parent=5 // pred_region
        %s301 = ssub.s32 %s20, 1
        // Predicated region
        $region13: #{gau_forward.1} parent=11 // pred_check
          %p302 = pneg %p93
        $region14: #{gau_forward.1} parent=11 // pred_check_branch
          %304 = sbr.rel (%p302) target = $region16
        $region15: #{gau_forward.1} parent=11 // pred_region
          _
        $region16: #{gau_forward.1} parent=11 // pred_fallthru
          _
        // Predicated region
        $region17: #{gau_forward.1} parent=11 // pred_check
          %p305 = pneg %p114
        $region18: #{gau_forward.1} parent=11 // pred_check_branch
          %307 = sbr.rel (%p305) target = $region20
        $region19: #{gau_forward.1} parent=11 // pred_region
          _
        $region20: #{gau_forward.1} parent=11 // pred_fallthru
          _
        // Predicated region
        $region21: #{gau_forward.1} parent=11 // pred_check
          %p308 = pneg %p135
        $region22: #{gau_forward.1} parent=11 // pred_check_branch
          %310 = sbr.rel (%p308) target = $region24
        $region23: #{gau_forward.1} parent=11 // pred_region
          _
        $region24: #{gau_forward.1} parent=11 // pred_fallthru
          _
        // Predicated region
        $region25: #{gau_forward.1} parent=11 // pred_check
          %p311 = pneg %p156
        $region26: #{gau_forward.1} parent=11 // pred_check_branch
          %313 = sbr.rel (%p311) target = $region28
        $region27: #{gau_forward.1} parent=11 // pred_region
          _
        $region28: #{gau_forward.1} parent=11 // pred_fallthru
          _
        // Predicated region
        $region29: #{gau_forward.1} parent=11 // pred_check
          %p314 = pneg %p177
        $region30: #{gau_forward.1} parent=11 // pred_check_branch
          %316 = sbr.rel (%p314) target = $region32
        $region31: #{gau_forward.1} parent=11 // pred_region
          _
        $region32: #{gau_forward.1} parent=11 // pred_fallthru
          _
        // Predicated region
        $region33: #{gau_forward.1} parent=11 // pred_check
          %p317 = pneg %p198
        $region34: #{gau_forward.1} parent=11 // pred_check_branch
          %319 = sbr.rel (%p317) target = $region36
        $region35: #{gau_forward.1} parent=11 // pred_region
          _
        $region36: #{gau_forward.1} parent=11 // pred_fallthru
          _
        // Predicated region
        $region37: #{gau_forward.1} parent=11 // pred_check
          %p320 = pneg %p219
        $region38: #{gau_forward.1} parent=11 // pred_check_branch
          %322 = sbr.rel (%p320) target = $region40
        $region39: #{gau_forward.1} parent=11 // pred_region
          _
        $region40: #{gau_forward.1} parent=11 // pred_fallthru
          _
        // Predicated region
        $region41: #{gau_forward.1} parent=11 // pred_check
          %p323 = pneg %p240
        $region42: #{gau_forward.1} parent=11 // pred_check_branch
          %325 = sbr.rel (%p323) target = $region44
        $region43: #{gau_forward.1} parent=11 // pred_region
          _
        $region44: #{gau_forward.1} parent=11 // pred_fallthru
          _
        // Predicated region
        $region45: #{gau_forward.1} parent=11 // pred_check
          %p326 = pneg %p261
        $region46: #{gau_forward.1} parent=11 // pred_check_branch
          %328 = sbr.rel (%p326) target = $region48
        $region47: #{gau_forward.1} parent=11 // pred_region
          _
        $region48: #{gau_forward.1} parent=11 // pred_fallthru
          _
      $region12: #{gau_forward.1} parent=5 // pred_fallthru
        _
      %p329 = scmp.lt.s32.totalorder %s20, 2
      // Predicated region
      $region49: #{gau_forward.1} parent=5 // pred_check
        %p330 = pneg %p329
      $region50: #{gau_forward.1} parent=5 // pred_check_branch
        %332 = sbr.rel (%p330) target = $region52
      $region51: #{gau_forward.1} parent=5 // pred_region
        // Predicated region
        $region53: #{gau_forward.1} parent=51 // pred_check
          %p333 = pneg %p40
        $region54: #{gau_forward.1} parent=51 // pred_check_branch
          %335 = sbr.rel (%p333) target = $region56
        $region55: #{gau_forward.1} parent=51 // pred_region
          %p336 = scmp.lt.s32.totalorder %s20, 1
          %s337 = scalar_select %p336, %s20, 1
          %s338 = smul.addr %s337, 8
          %s339 = smul.addr %s338, 8
          %s340 = scalar_lea.vmem %s0, %s339
        $region56: #{gau_forward.1} parent=51 // pred_fallthru
          _
        // Predicated region
        $region57: #{gau_forward.1} parent=51 // pred_check
          %p341 = pneg %p66
        $region58: #{gau_forward.1} parent=51 // pred_check_branch
          %343 = sbr.rel (%p341) target = $region60
        $region59: #{gau_forward.1} parent=51 // pred_region
          %p344 = scmp.lt.s32.totalorder %s20, 1
          %s345 = scalar_select %p344, %s20, 1
          %s346 = smul.addr %s345, 54
          %s347 = smul.addr %s346, 4
          %s348 = scalar_lea.vmem %s1, %s347
        $region60: #{gau_forward.1} parent=51 // pred_fallthru
          _
      $region52: #{gau_forward.1} parent=5 // pred_fallthru
        _
      %p349 = scmp.le.s32.totalorder 1, %s20
      %p350 = scmp.lt.s32.totalorder %s20, 3
      %p351 = pnand %p349, %p350
      %p352 = pneg %p351
      // Predicated region
      $region61: #{gau_forward.1} parent=5 // pred_check
        _
      $region62: #{gau_forward.1} parent=5 // pred_check_branch
        %354 = sbr.rel (%p351) target = $region64
      $region63: #{gau_forward.1} parent=5 // pred_region
        %s355 = ssub.s32 %s20, 1
        %p356 = scmp.lt.s32.totalorder %s25, 1
        %s357 = scalar_select %p356, %s25, 1
        %s358 = smul.addr %s357, 8
        %s359 = smul.addr %s358, 8
        %s360 = scalar_lea.vmem %s0, %s359
        %p361 = pneg %p46
        %p362 = pneg %p43
        %p363 = scmp.lt.s32.totalorder %s25, 1
        %s364 = scalar_select %p363, %s25, 1
        %s365 = smul.addr %s364, 54
        %s366 = smul.addr %s365, 4
        %s367 = scalar_lea.vmem %s1, %s366
        %p368 = pneg %p72
        %p369 = pneg %p69
        %p370 = pneg %p93
        %p371 = pneg %p90
        %p372 = pneg %p114
        %p373 = pneg %p111
        %p374 = pneg %p135
        %p375 = pneg %p132
        %p376 = pneg %p156
        %p377 = pneg %p153
        %p378 = pneg %p177
        %p379 = pneg %p174
        %p380 = pneg %p198
        %p381 = pneg %p195
        %p382 = pneg %p219
        %p383 = pneg %p216
        %p384 = pneg %p240
        %p385 = pneg %p237
        %p386 = pneg %p261
        %p387 = pneg %p258
        %p388 = pneg %p287
        %p389 = pneg %p284
        %s390 = sand.u32 %s274, 1
        %s391 = scalar_lea.sflag [#allocation3], %s390
        %s392 = sand.u32 %s274, 1
        %s393 = smul.addr %s392, 256
        %s394 = scalar_lea.vmem [#allocation2], %s393
        %p395 = scmp.lt.s32.totalorder %s25, 1
        %s396 = scalar_select %p395, %s25, 1
        %s397 = smul.addr %s396, 8
        %s398 = smul.addr %s397, 8
        %s399 = scalar_lea.vmem %s0, %s398
        %p400 = scmp.lt.s32.totalorder %s25, 1
        %s401 = scalar_select %p400, %s25, 1
        %s402 = smul.addr %s401, 54
        %s403 = smul.addr %s402, 4
        %s404 = scalar_lea.vmem %s1, %s403
        %s405 = smul.u32 32, %s25
        %v407 = vld [vmem:[%s399] sm:$0xff]
        %v408 = vld [vmem:[%s399 + $0x8] sm:$0xff]
        %v409 = vld [vmem:[%s399 + $0x10] sm:$0xff]
        %v410 = vld [vmem:[%s399 + $0x18] sm:$0xff]
        %v411 = vld [vmem:[%s399 + $0x20] sm:$0xff]
        %v412 = vld [vmem:[%s399 + $0x28] sm:$0xff]
        %v413 = vld [vmem:[%s399 + $0x30] sm:$0xff]
        %v414 = vld [vmem:[%s399 + $0x38] sm:$0xff]
        %vm415 = vcmask 261120
        %v416 = vsel %vm415, %v407, 0.0
        %v417 = vsel %vm415, %v408, 0.0
        %v418 = vadd.f32 %v416, %v417
        %v419 = vsel %vm415, %v409, 0.0
        %v420 = vadd.f32 %v418, %v419
        %v421 = vsel %vm415, %v410, 0.0
        %v422 = vadd.f32 %v420, %v421
        %v423 = vsel %vm415, %v411, 0.0
        %v424 = vadd.f32 %v422, %v423
        %v425 = vsel %vm415, %v412, 0.0
        %v426 = vadd.f32 %v424, %v425
        %v427 = vsel %vm415, %v413, 0.0
        %v428 = vadd.f32 %v426, %v427
        %v429 = vsel %vm415, %v414, 0.0
        %v430 = vadd.f32 %v428, %v429
        %v431 = vrot.slane %v430, 4
        %v432 = vadd.f32 %v430, %v431
        %v433 = vrot.slane %v432, 2
        %v434 = vadd.f32 %v432, %v433
        %v435 = vrot.slane %v434, 1
        %v436 = vadd.f32 %v434, %v435
        %v437 = vrcp.pop 64.0
        %v438 = vmul.f32 %v436, %v437
        %v439 = vld [vmem:[%s5] sm:$0xff]
        %v440 = vld [vmem:[%s5 + $0x8] sm:$0xff]
        %v441 = vld [vmem:[%s5 + $0x10] sm:$0xff]
        %v442 = vld [vmem:[%s5 + $0x18] sm:$0xff]
        %v444 = vsel %vm415, %v438, 0
        %446 = vmatprep.subr.mxu0 0.0
        %447 = vmatpush1.msra.mxu0 0.0
        %448 = vmatprep.subr.mxu0 0.0
        %449 = vmatpush1.msra.mxu0 0.0
        %450 = vmatprep.subr.mxu0 0.0
        %451 = vmatpush1.msra.mxu0 0.0
        %452 = vmatprep.subr.mxu0 0.0
        %453 = vmatpush1.msra.mxu0 0.0
        %454 = vmatprep.subr.mxu0 0.0
        %455 = vmatpush1.msra.mxu0 0.0
        %456 = vmatprep.subr.mxu0 0.0
        %457 = vmatpush1.msra.mxu0 0.0
        %458 = vmatprep.subr.mxu0 0.0
        %459 = vmatpush1.msra.mxu0 0.0
        %460 = vmatprep.subr.mxu0 0.0
        %461 = vmatpush1.msra.mxu0 0.0
        %462 = vmatprep.subr.mxu0 0.0
        %463 = vmatpush1.msra.mxu0 0.0
        %464 = vmatprep.subr.mxu0 0.0
        %465 = vmatpush1.msra.mxu0 0.0
        %466 = vmatprep.subr.mxu0 0.0
        %467 = vmatpush1.msra.mxu0 0.0
        %468 = vmatprep.subr.mxu0 0.0
        %469 = vmatpush1.msra.mxu0 0.0
        %470 = vmatprep.subr.mxu0 0.0
        %471 = vmatpush1.msra.mxu0 %v442
        %472 = vmatprep.subr.mxu0 0.0
        %473 = vmatpush1.msra.mxu0 %v441
        %474 = vmatprep.subr.mxu0 0.0
        %475 = vmatpush1.msra.mxu0 %v440
        %476 = vmatprep.subr.mxu0 0.0
        %477 = vmatpush1.msra.mxu0 %v439
        %478 = vmatprep.subr.mxu0 0.0
        %479 = vmatpush2.msra.mxu0 0.0
        %480 = vmatprep.subr.mxu0 0.0
        %481 = vmatpush2.msra.mxu0 0.0
        %482 = vmatprep.subr.mxu0 0.0
        %483 = vmatpush2.msra.mxu0 0.0
        %484 = vmatprep.subr.mxu0 0.0
        %485 = vmatpush2.msra.mxu0 0.0
        %486 = vmatprep.subr.mxu0 0.0
        %487 = vmatpush2.msra.mxu0 0.0
        %488 = vmatprep.subr.mxu0 0.0
        %489 = vmatpush2.msra.mxu0 0.0
        %490 = vmatprep.subr.mxu0 0.0
        %491 = vmatpush2.msra.mxu0 0.0
        %492 = vmatprep.subr.mxu0 0.0
        %493 = vmatpush2.msra.mxu0 0.0
        %494 = vmatprep.subr.mxu0 0.0
        %495 = vmatpush2.msra.mxu0 0.0
        %496 = vmatprep.subr.mxu0 0.0
        %497 = vmatpush2.msra.mxu0 0.0
        %498 = vmatprep.subr.mxu0 0.0
        %499 = vmatpush2.msra.mxu0 0.0
        %500 = vmatprep.subr.mxu0 0.0
        %501 = vmatpush2.msra.mxu0 0.0
        %502 = vmatprep.subr.mxu0 0.0
        %503 = vmatpush2.msra.mxu0 0.0
        %504 = vmatprep.subr.mxu0 0.0
        %505 = vmatpush2.msra.mxu0 0.0
        %506 = vmatprep.subr.mxu0 0.0
        %507 = vmatpush2.msra.mxu0 0.0
        %508 = vmatprep.subr.mxu0 0.0
        %509 = vmatpush2.msra.mxu0 0.0
        %510 = vmatprep.mubr.f32.mxu0 0.0
        %511 = vmatmul.mubr.f32.gmra.mxu0 %v444
        %v512 = vpop.f32.mrf.mxu0
        %v513 = vadd.f32 0.0, %v512
        %v514 = vpop.f32.mrf.mxu0
        %515 = vdwg.mxu0
        %v516 = vld [vmem:[%s6] sm:$0x1]
        %v517 = vmul.f32 %v513, %v516
        %v518 = vld [vmem:[%s7] sm:$0x1]
        %v519 = vadd.f32 %v517, %v518
        %v520 = vmax.f32 %v519, 0.0
        %v521 = vld [vmem:[%s8] sm:$0xff]
        %v522 = vld [vmem:[%s8 + $0x8] sm:$0xff]
        %v523 = vld [vmem:[%s8 + $0x10] sm:$0xff]
        %v524 = vld [vmem:[%s8 + $0x18] sm:$0xff]
        %v526 = vsel %vm415, %v520, 0
        %528 = vmatprep.subr.mxu0 0.0
        %529 = vmatpush1.msra.mxu0 0.0
        %530 = vmatprep.subr.mxu0 0.0
        %531 = vmatpush1.msra.mxu0 0.0
        %532 = vmatprep.subr.mxu0 0.0
        %533 = vmatpush1.msra.mxu0 0.0
        %534 = vmatprep.subr.mxu0 0.0
        %535 = vmatpush1.msra.mxu0 0.0
        %536 = vmatprep.subr.mxu0 0.0
        %537 = vmatpush1.msra.mxu0 0.0
        %538 = vmatprep.subr.mxu0 0.0
        %539 = vmatpush1.msra.mxu0 0.0
        %540 = vmatprep.subr.mxu0 0.0
        %541 = vmatpush1.msra.mxu0 0.0
        %542 = vmatprep.subr.mxu0 0.0
        %543 = vmatpush1.msra.mxu0 0.0
        %544 = vmatprep.subr.mxu0 0.0
        %545 = vmatpush1.msra.mxu0 0.0
        %546 = vmatprep.subr.mxu0 0.0
        %547 = vmatpush1.msra.mxu0 0.0
        %548 = vmatprep.subr.mxu0 0.0
        %549 = vmatpush1.msra.mxu0 0.0
        %550 = vmatprep.subr.mxu0 0.0
        %551 = vmatpush1.msra.mxu0 0.0
        %552 = vmatprep.subr.mxu0 0.0
        %553 = vmatpush1.msra.mxu0 %v524
        %554 = vmatprep.subr.mxu0 0.0
        %555 = vmatpush1.msra.mxu0 %v523
        %556 = vmatprep.subr.mxu0 0.0
        %557 = vmatpush1.msra.mxu0 %v522
        %558 = vmatprep.subr.mxu0 0.0
        %559 = vmatpush1.msra.mxu0 %v521
        %560 = vmatprep.subr.mxu0 0.0
        %561 = vmatpush2.msra.mxu0 0.0
        %562 = vmatprep.subr.mxu0 0.0
        %563 = vmatpush2.msra.mxu0 0.0
        %564 = vmatprep.subr.mxu0 0.0
        %565 = vmatpush2.msra.mxu0 0.0
        %566 = vmatprep.subr.mxu0 0.0
        %567 = vmatpush2.msra.mxu0 0.0
        %568 = vmatprep.subr.mxu0 0.0
        %569 = vmatpush2.msra.mxu0 0.0
        %570 = vmatprep.subr.mxu0 0.0
        %571 = vmatpush2.msra.mxu0 0.0
        %572 = vmatprep.subr.mxu0 0.0
        %573 = vmatpush2.msra.mxu0 0.0
        %574 = vmatprep.subr.mxu0 0.0
        %575 = vmatpush2.msra.mxu0 0.0
        %576 = vmatprep.subr.mxu0 0.0
        %577 = vmatpush2.msra.mxu0 0.0
        %578 = vmatprep.subr.mxu0 0.0
        %579 = vmatpush2.msra.mxu0 0.0
        %580 = vmatprep.subr.mxu0 0.0
        %581 = vmatpush2.msra.mxu0 0.0
        %582 = vmatprep.subr.mxu0 0.0
        %583 = vmatpush2.msra.mxu0 0.0
        %584 = vmatprep.subr.mxu0 0.0
        %585 = vmatpush2.msra.mxu0 0.0
        %586 = vmatprep.subr.mxu0 0.0
        %587 = vmatpush2.msra.mxu0 0.0
        %588 = vmatprep.subr.mxu0 0.0
        %589 = vmatpush2.msra.mxu0 0.0
        %590 = vmatprep.subr.mxu0 0.0
        %591 = vmatpush2.msra.mxu0 0.0
        %592 = vmatprep.mubr.f32.mxu0 0.0
        %593 = vmatmul.mubr.f32.gmra.mxu0 %v526
        %v594 = vpop.f32.mrf.mxu0
        %v595 = vadd.f32 0.0, %v594
        %v596 = vpop.f32.mrf.mxu0
        %597 = vdwg.mxu0
        %v598 = vld [vmem:[%s9] sm:$0x1]
        %v599 = vmul.f32 %v595, %v598
        %v600 = vld [vmem:[%s10] sm:$0x1]
        %v601 = vadd.f32 %v599, %v600
        %v602 = vmax.f32 %v601, 0.0
        %v603 = vld [vmem:[%s404] sm:$0xf]
        %v604 = vld [vmem:[%s404 + $0x4] sm:$0xf]
        %v605 = vld [vmem:[%s404 + $0x8] sm:$0x1]
        %v606 = vld [vmem:[%s404 + $0xc] sm:$0xf]
        %v607 = vld [vmem:[%s404 + $0x10] sm:$0xf]
        %v608 = vld [vmem:[%s404 + $0x14] sm:$0x1]
        %v609 = vld [vmem:[%s404 + $0x18] sm:$0xf]
        %v610 = vld [vmem:[%s404 + $0x1c] sm:$0xf]
        %v611 = vld [vmem:[%s404 + $0x20] sm:$0x1]
        %v612 = vld [vmem:[%s404 + $0x24] sm:$0xf]
        %v613 = vld [vmem:[%s404 + $0x28] sm:$0xf]
        %v614 = vld [vmem:[%s404 + $0x2c] sm:$0x1]
        %v615 = vld [vmem:[%s404 + $0x30] sm:$0xf]
        %v616 = vld [vmem:[%s404 + $0x34] sm:$0xf]
        %v617 = vld [vmem:[%s404 + $0x38] sm:$0x1]
        %v618 = vld [vmem:[%s404 + $0x3c] sm:$0xf]
        %v619 = vld [vmem:[%s404 + $0x40] sm:$0xf]
        %v620 = vld [vmem:[%s404 + $0x44] sm:$0x1]
        %v621 = vld [vmem:[%s404 + $0x48] sm:$0xf]
        %v622 = vld [vmem:[%s404 + $0x4c] sm:$0xf]
        %v623 = vld [vmem:[%s404 + $0x50] sm:$0x1]
        %v624 = vld [vmem:[%s404 + $0x54] sm:$0xf]
        %v625 = vld [vmem:[%s404 + $0x58] sm:$0xf]
        %v626 = vld [vmem:[%s404 + $0x5c] sm:$0x1]
        %v627 = vld [vmem:[%s404 + $0x60] sm:$0xf]
        %v628 = vld [vmem:[%s404 + $0x64] sm:$0xf]
        %v629 = vld [vmem:[%s404 + $0x68] sm:$0x1]
        %v630 = vld [vmem:[%s404 + $0x6c] sm:$0xf]
        %v631 = vld [vmem:[%s404 + $0x70] sm:$0xf]
        %v632 = vld [vmem:[%s404 + $0x74] sm:$0x1]
        %v633 = vld [vmem:[%s404 + $0x78] sm:$0xf]
        %v634 = vld [vmem:[%s404 + $0x7c] sm:$0xf]
        %v635 = vld [vmem:[%s404 + $0x80] sm:$0x1]
        %v636 = vld [vmem:[%s404 + $0x84] sm:$0xf]
        %v637 = vld [vmem:[%s404 + $0x88] sm:$0xf]
        %v638 = vld [vmem:[%s404 + $0x8c] sm:$0x1]
        %v639 = vld [vmem:[%s404 + $0x90] sm:$0xf]
        %v640 = vld [vmem:[%s404 + $0x94] sm:$0xf]
        %v641 = vld [vmem:[%s404 + $0x98] sm:$0x1]
        %v642 = vld [vmem:[%s404 + $0x9c] sm:$0xf]
        %v643 = vld [vmem:[%s404 + $0xa0] sm:$0xf]
        %v644 = vld [vmem:[%s404 + $0xa4] sm:$0x1]
        %v645 = vld [vmem:[%s404 + $0xa8] sm:$0xf]
        %v646 = vld [vmem:[%s404 + $0xac] sm:$0xf]
        %v647 = vld [vmem:[%s404 + $0xb0] sm:$0x1]
        %v648 = vld [vmem:[%s404 + $0xb4] sm:$0xf]
        %v649 = vld [vmem:[%s404 + $0xb8] sm:$0xf]
        %v650 = vld [vmem:[%s404 + $0xbc] sm:$0x1]
        %v651 = vld [vmem:[%s404 + $0xc0] sm:$0xf]
        %v652 = vld [vmem:[%s404 + $0xc4] sm:$0xf]
        %v653 = vld [vmem:[%s404 + $0xc8] sm:$0x1]
        %v654 = vld [vmem:[%s404 + $0xcc] sm:$0xf]
        %v655 = vld [vmem:[%s404 + $0xd0] sm:$0xf]
        %v656 = vld [vmem:[%s404 + $0xd4] sm:$0x1]
        %v657 = vld [vmem:[%s2] sm:$0xf]
        %v658 = vld [vmem:[%s2 + $0x4] sm:$0xf]
        %v659 = vld [vmem:[%s2 + $0x8] sm:$0xf]
        %v660 = vld [vmem:[%s2 + $0xc] sm:$0xf]
        %vm661 = vsmask.f32 3328
        %vm662 = vsmask.f32 7440
        %vm663 = vmor %vm661, %vm662
        %v665 = vshrl.u32 %v603, 16
        %v667 = vrot.slane %v665, 4
        %v668 = vshll.u32 %v603, 16
        %v670 = vrot.slane %v668, 5
        %v671 = vor.u32 %v667, %v670
        %v672 = vrot.slane %v671, 4
        %v674 = vshll.u32 %v604, 16
        %v676 = vrot.slane %v674, 5
        %v677 = vsel %vm663, %v672, %v676
        %v678 = vshrl.u32 %v604, 16
        %v680 = vrot.slane %v678, 4
        %v681 = vor.u32 %v680, %v676
        %v682 = vrot.slane %v681, 4
        %v684 = vshll.u32 %v605, 16
        %v686 = vrot.slane %v684, 5
        %v687 = vsel %vm663, %v682, %v686
        %v689 = vshrl.u32 %v606, 16
        %v691 = vrot.slane %v689, 4
        %v692 = vshll.u32 %v606, 16
        %v694 = vrot.slane %v692, 5
        %v695 = vor.u32 %v691, %v694
        %v696 = vrot.slane %v695, 4
        %v698 = vshll.u32 %v607, 16
        %v700 = vrot.slane %v698, 5
        %v701 = vsel %vm663, %v696, %v700
        %v702 = vshrl.u32 %v607, 16
        %v704 = vrot.slane %v702, 4
        %v705 = vor.u32 %v704, %v700
        %v706 = vrot.slane %v705, 4
        %v708 = vshll.u32 %v608, 16
        %v710 = vrot.slane %v708, 5
        %v711 = vsel %vm663, %v706, %v710
        %v713 = vshrl.u32 %v609, 16
        %v715 = vrot.slane %v713, 4
        %v716 = vshll.u32 %v609, 16
        %v718 = vrot.slane %v716, 5
        %v719 = vor.u32 %v715, %v718
        %v720 = vrot.slane %v719, 4
        %v722 = vshll.u32 %v610, 16
        %v724 = vrot.slane %v722, 5
        %v725 = vsel %vm663, %v720, %v724
        %v726 = vshrl.u32 %v610, 16
        %v728 = vrot.slane %v726, 4
        %v729 = vor.u32 %v728, %v724
        %v730 = vrot.slane %v729, 4
        %v732 = vshll.u32 %v611, 16
        %v734 = vrot.slane %v732, 5
        %v735 = vsel %vm663, %v730, %v734
        %v737 = vshrl.u32 %v612, 16
        %v739 = vrot.slane %v737, 4
        %v740 = vshll.u32 %v612, 16
        %v742 = vrot.slane %v740, 5
        %v743 = vor.u32 %v739, %v742
        %v744 = vrot.slane %v743, 4
        %v746 = vshll.u32 %v613, 16
        %v748 = vrot.slane %v746, 5
        %v749 = vsel %vm663, %v744, %v748
        %v750 = vshrl.u32 %v613, 16
        %v752 = vrot.slane %v750, 4
        %v753 = vor.u32 %v752, %v748
        %v754 = vrot.slane %v753, 4
        %v756 = vshll.u32 %v614, 16
        %v758 = vrot.slane %v756, 5
        %v759 = vsel %vm663, %v754, %v758
        %v761 = vshrl.u32 %v615, 16
        %v763 = vrot.slane %v761, 4
        %v764 = vshll.u32 %v615, 16
        %v766 = vrot.slane %v764, 5
        %v767 = vor.u32 %v763, %v766
        %v768 = vrot.slane %v767, 4
        %v770 = vshll.u32 %v616, 16
        %v772 = vrot.slane %v770, 5
        %v773 = vsel %vm663, %v768, %v772
        %v774 = vshrl.u32 %v616, 16
        %v776 = vrot.slane %v774, 4
        %v777 = vor.u32 %v776, %v772
        %v778 = vrot.slane %v777, 4
        %v780 = vshll.u32 %v617, 16
        %v782 = vrot.slane %v780, 5
        %v783 = vsel %vm663, %v778, %v782
        %v785 = vshrl.u32 %v618, 16
        %v787 = vrot.slane %v785, 4
        %v788 = vshll.u32 %v618, 16
        %v790 = vrot.slane %v788, 5
        %v791 = vor.u32 %v787, %v790
        %v792 = vrot.slane %v791, 4
        %v794 = vshll.u32 %v619, 16
        %v796 = vrot.slane %v794, 5
        %v797 = vsel %vm663, %v792, %v796
        %v798 = vshrl.u32 %v619, 16
        %v800 = vrot.slane %v798, 4
        %v801 = vor.u32 %v800, %v796
        %v802 = vrot.slane %v801, 4
        %v804 = vshll.u32 %v620, 16
        %v806 = vrot.slane %v804, 5
        %v807 = vsel %vm663, %v802, %v806
        %v809 = vshrl.u32 %v621, 16
        %v811 = vrot.slane %v809, 4
        %v812 = vshll.u32 %v621, 16
        %v814 = vrot.slane %v812, 5
        %v815 = vor.u32 %v811, %v814
        %v816 = vrot.slane %v815, 4
        %v818 = vshll.u32 %v622, 16
        %v820 = vrot.slane %v818, 5
        %v821 = vsel %vm663, %v816, %v820
        %v822 = vshrl.u32 %v622, 16
        %v824 = vrot.slane %v822, 4
        %v825 = vor.u32 %v824, %v820
        %v826 = vrot.slane %v825, 4
        %v828 = vshll.u32 %v623, 16
        %v830 = vrot.slane %v828, 5
        %v831 = vsel %vm663, %v826, %v830
        %v833 = vshrl.u32 %v624, 16
        %v835 = vrot.slane %v833, 4
        %v836 = vshll.u32 %v624, 16
        %v838 = vrot.slane %v836, 5
        %v839 = vor.u32 %v835, %v838
        %v840 = vrot.slane %v839, 4
        %v842 = vshll.u32 %v625, 16
        %v844 = vrot.slane %v842, 5
        %v845 = vsel %vm663, %v840, %v844
        %v846 = vshrl.u32 %v625, 16
        %v848 = vrot.slane %v846, 4
        %v849 = vor.u32 %v848, %v844
        %v850 = vrot.slane %v849, 4
        %v852 = vshll.u32 %v626, 16
        %v854 = vrot.slane %v852, 5
        %v855 = vsel %vm663, %v850, %v854
        %v857 = vshrl.u32 %v627, 16
        %v859 = vrot.slane %v857, 4
        %v860 = vshll.u32 %v627, 16
        %v862 = vrot.slane %v860, 5
        %v863 = vor.u32 %v859, %v862
        %v864 = vrot.slane %v863, 4
        %v866 = vshll.u32 %v628, 16
        %v868 = vrot.slane %v866, 5
        %v869 = vsel %vm663, %v864, %v868
        %v870 = vshrl.u32 %v628, 16
        %v872 = vrot.slane %v870, 4
        %v873 = vor.u32 %v872, %v868
        %v874 = vrot.slane %v873, 4
        %v876 = vshll.u32 %v629, 16
        %v878 = vrot.slane %v876, 5
        %v879 = vsel %vm663, %v874, %v878
        %v881 = vshrl.u32 %v630, 16
        %v883 = vrot.slane %v881, 4
        %v884 = vshll.u32 %v630, 16
        %v886 = vrot.slane %v884, 5
        %v887 = vor.u32 %v883, %v886
        %v888 = vrot.slane %v887, 4
        %v890 = vshll.u32 %v631, 16
        %v892 = vrot.slane %v890, 5
        %v893 = vsel %vm663, %v888, %v892
        %v894 = vshrl.u32 %v631, 16
        %v896 = vrot.slane %v894, 4
        %v897 = vor.u32 %v896, %v892
        %v898 = vrot.slane %v897, 4
        %v900 = vshll.u32 %v632, 16
        %v902 = vrot.slane %v900, 5
        %v903 = vsel %vm663, %v898, %v902
        %v905 = vshrl.u32 %v633, 16
        %v907 = vrot.slane %v905, 4
        %v908 = vshll.u32 %v633, 16
        %v910 = vrot.slane %v908, 5
        %v911 = vor.u32 %v907, %v910
        %v912 = vrot.slane %v911, 4
        %v914 = vshll.u32 %v634, 16
        %v916 = vrot.slane %v914, 5
        %v917 = vsel %vm663, %v912, %v916
        %v918 = vshrl.u32 %v634, 16
        %v920 = vrot.slane %v918, 4
        %v921 = vor.u32 %v920, %v916
        %v922 = vrot.slane %v921, 4
        %v924 = vshll.u32 %v635, 16
        %v926 = vrot.slane %v924, 5
        %v927 = vsel %vm663, %v922, %v926
        %v929 = vshrl.u32 %v636, 16
        %v931 = vrot.slane %v929, 4
        %v932 = vshll.u32 %v636, 16
        %v934 = vrot.slane %v932, 5
        %v935 = vor.u32 %v931, %v934
        %v936 = vrot.slane %v935, 4
        %v938 = vshll.u32 %v637, 16
        %v940 = vrot.slane %v938, 5
        %v941 = vsel %vm663, %v936, %v940
        %v942 = vshrl.u32 %v637, 16
        %v944 = vrot.slane %v942, 4
        %v945 = vor.u32 %v944, %v940
        %v946 = vrot.slane %v945, 4
        %v948 = vshll.u32 %v638, 16
        %v950 = vrot.slane %v948, 5
        %v951 = vsel %vm663, %v946, %v950
        %v953 = vshrl.u32 %v639, 16
        %v955 = vrot.slane %v953, 4
        %v956 = vshll.u32 %v639, 16
        %v958 = vrot.slane %v956, 5
        %v959 = vor.u32 %v955, %v958
        %v960 = vrot.slane %v959, 4
        %v962 = vshll.u32 %v640, 16
        %v964 = vrot.slane %v962, 5
        %v965 = vsel %vm663, %v960, %v964
        %v966 = vshrl.u32 %v640, 16
        %v968 = vrot.slane %v966, 4
        %v969 = vor.u32 %v968, %v964
        %v970 = vrot.slane %v969, 4
        %v972 = vshll.u32 %v641, 16
        %v974 = vrot.slane %v972, 5
        %v975 = vsel %vm663, %v970, %v974
        %v977 = vshrl.u32 %v642, 16
        %v979 = vrot.slane %v977, 4
        %v980 = vshll.u32 %v642, 16
        %v982 = vrot.slane %v980, 5
        %v983 = vor.u32 %v979, %v982
        %v984 = vrot.slane %v983, 4
        %v986 = vshll.u32 %v643, 16
        %v988 = vrot.slane %v986, 5
        %v989 = vsel %vm663, %v984, %v988
        %v990 = vshrl.u32 %v643, 16
        %v992 = vrot.slane %v990, 4
        %v993 = vor.u32 %v992, %v988
        %v994 = vrot.slane %v993, 4
        %v996 = vshll.u32 %v644, 16
        %v998 = vrot.slane %v996, 5
        %v999 = vsel %vm663, %v994, %v998
        %v1001 = vshrl.u32 %v645, 16
        %v1003 = vrot.slane %v1001, 4
        %v1004 = vshll.u32 %v645, 16
        %v1006 = vrot.slane %v1004, 5
        %v1007 = vor.u32 %v1003, %v1006
        %v1008 = vrot.slane %v1007, 4
        %v1010 = vshll.u32 %v646, 16
        %v1012 = vrot.slane %v1010, 5
        %v1013 = vsel %vm663, %v1008, %v1012
        %v1014 = vshrl.u32 %v646, 16
        %v1016 = vrot.slane %v1014, 4
        %v1017 = vor.u32 %v1016, %v1012
        %v1018 = vrot.slane %v1017, 4
        %v1020 = vshll.u32 %v647, 16
        %v1022 = vrot.slane %v1020, 5
        %v1023 = vsel %vm663, %v1018, %v1022
        %v1025 = vshrl.u32 %v648, 16
        %v1027 = vrot.slane %v1025, 4
        %v1028 = vshll.u32 %v648, 16
        %v1030 = vrot.slane %v1028, 5
        %v1031 = vor.u32 %v1027, %v1030
        %v1032 = vrot.slane %v1031, 4
        %v1034 = vshll.u32 %v649, 16
        %v1036 = vrot.slane %v1034, 5
        %v1037 = vsel %vm663, %v1032, %v1036
        %v1038 = vshrl.u32 %v649, 16
        %v1040 = vrot.slane %v1038, 4
        %v1041 = vor.u32 %v1040, %v1036
        %v1042 = vrot.slane %v1041, 4
        %v1044 = vshll.u32 %v650, 16
        %v1046 = vrot.slane %v1044, 5
        %v1047 = vsel %vm663, %v1042, %v1046
        %s1048 = scalar_lea.vmem %s2, 16
        %v1049 = vld [vmem:[%s1048] sm:$0xf]
        %v1050 = vld [vmem:[%s1048 + $0x4] sm:$0xf]
        %v1051 = vld [vmem:[%s1048 + $0x8] sm:$0xf]
        %v1052 = vld [vmem:[%s1048 + $0xc] sm:$0xf]
        %v1053 = vunpack.c.l.b16 %v677
        %v1054 = vunpack.c.l.b16 %v687
        %v1055 = vunpack.c.l.b16 %v701
        %v1056 = vunpack.c.l.b16 %v711
        %v1057 = vunpack.c.l.b16 %v725
        %v1058 = vunpack.c.l.b16 %v735
        %v1059 = vunpack.c.l.b16 %v749
        %v1060 = vunpack.c.l.b16 %v759
        %v1061 = vunpack.c.l.b16 %v773
        %v1062 = vunpack.c.l.b16 %v783
        %v1063 = vunpack.c.l.b16 %v797
        %v1064 = vunpack.c.l.b16 %v807
        %v1065 = vunpack.c.l.b16 %v821
        %v1066 = vunpack.c.l.b16 %v831
        %v1067 = vunpack.c.l.b16 %v845
        %v1068 = vunpack.c.l.b16 %v855
        %v1069 = vunpack.c.l.b16 %v869
        %v1070 = vunpack.c.l.b16 %v879
        %v1071 = vunpack.c.l.b16 %v893
        %v1072 = vunpack.c.l.b16 %v903
        %v1073 = vunpack.c.l.b16 %v917
        %v1074 = vunpack.c.l.b16 %v927
        %v1075 = vunpack.c.l.b16 %v941
        %v1076 = vunpack.c.l.b16 %v951
        %v1077 = vunpack.c.l.b16 %v965
        %v1078 = vunpack.c.l.b16 %v975
        %v1079 = vunpack.c.l.b16 %v989
        %v1080 = vunpack.c.l.b16 %v999
        %v1081 = vunpack.c.l.b16 %v1013
        %v1082 = vunpack.c.l.b16 %v1023
        %v1083 = vunpack.c.l.b16 %v1037
        %v1084 = vunpack.c.l.b16 %v1047
        %v1085 = vpack.c.b16 %v1054, %v1053
        %v1086 = vpack.c.b16 %v1056, %v1055
        %v1087 = vpack.c.b16 %v1058, %v1057
        %v1088 = vpack.c.b16 %v1060, %v1059
        %v1089 = vpack.c.b16 %v1062, %v1061
        %v1090 = vpack.c.b16 %v1064, %v1063
        %v1091 = vpack.c.b16 %v1066, %v1065
        %v1092 = vpack.c.b16 %v1068, %v1067
        %v1093 = vpack.c.b16 %v1070, %v1069
        %v1094 = vpack.c.b16 %v1072, %v1071
        %v1095 = vpack.c.b16 %v1074, %v1073
        %v1096 = vpack.c.b16 %v1076, %v1075
        %v1097 = vpack.c.b16 %v1078, %v1077
        %v1098 = vpack.c.b16 %v1080, %v1079
        %v1099 = vpack.c.b16 %v1082, %v1081
        %v1100 = vpack.c.b16 %v1084, %v1083
        %v1105 = vunpack.c.l.b16 %v1049
        %v1106 = vunpack.c.l.b16 %v1050
        %v1107 = vunpack.c.l.b16 %v1051
        %v1108 = vunpack.c.l.b16 %v1052
        %v1109 = vpack.c.b16 %v1106, %v1105
        %v1110 = vpack.c.b16 %v1108, %v1107
        %v1114 = vsel %vm415, %v1085, 0
        %v1117 = vsel %vm415, %v1086, 0
        %v1120 = vsel %vm415, %v1087, 0
        %v1123 = vsel %vm415, %v1088, 0
        %v1126 = vsel %vm415, %v1089, 0
        %v1129 = vsel %vm415, %v1090, 0
        %v1132 = vsel %vm415, %v1091, 0
        %v1135 = vsel %vm415, %v1092, 0
        %v1138 = vsel %vm415, %v1093, 0
        %v1141 = vsel %vm415, %v1094, 0
        %v1144 = vsel %vm415, %v1095, 0
        %v1147 = vsel %vm415, %v1096, 0
        %v1150 = vsel %vm415, %v1097, 0
        %v1153 = vsel %vm415, %v1098, 0
        %v1156 = vsel %vm415, %v1099, 0
        %v1159 = vsel %vm415, %v1100, 0
        %1161 = vmatprep.subr.bf16.mxu0 0
        %1162 = vmatpush1.bf16.msra.mxu0 0
        %1163 = vmatprep.subr.bf16.mxu0 0
        %1164 = vmatpush1.bf16.msra.mxu0 0
        %1165 = vmatprep.subr.bf16.mxu0 0
        %1166 = vmatpush1.bf16.msra.mxu0 0
        %1167 = vmatprep.subr.bf16.mxu0 0
        %1168 = vmatpush1.bf16.msra.mxu0 0
        %1169 = vmatprep.subr.bf16.mxu0 0
        %1170 = vmatpush1.bf16.msra.mxu0 0
        %1171 = vmatprep.subr.bf16.mxu0 0
        %1172 = vmatpush1.bf16.msra.mxu0 0
        %1173 = vmatprep.subr.bf16.mxu0 0
        %1174 = vmatpush1.bf16.msra.mxu0 %v1110
        %1175 = vmatprep.subr.bf16.mxu0 0
        %1176 = vmatpush1.bf16.msra.mxu0 %v1109
        %1177 = vmatprep.subr.bf16.mxu0 0
        %1178 = vmatpush2.bf16.msra.mxu0 0
        %1179 = vmatprep.subr.bf16.mxu0 0
        %1180 = vmatpush2.bf16.msra.mxu0 0
        %1181 = vmatprep.subr.bf16.mxu0 0
        %1182 = vmatpush2.bf16.msra.mxu0 0
        %1183 = vmatprep.subr.bf16.mxu0 0
        %1184 = vmatpush2.bf16.msra.mxu0 0
        %1185 = vmatprep.subr.bf16.mxu0 0
        %1186 = vmatpush2.bf16.msra.mxu0 0
        %1187 = vmatprep.subr.bf16.mxu0 0
        %1188 = vmatpush2.bf16.msra.mxu0 0
        %1189 = vmatprep.subr.bf16.mxu0 0
        %1190 = vmatpush2.bf16.msra.mxu0 0
        %1191 = vmatprep.subr.bf16.mxu0 0
        %1192 = vmatpush2.bf16.msra.mxu0 0
        %1193 = vmatprep.mubr.bf16.mxu0 0
        %1194 = vmatmul.mubr.bf16.gmra.mxu0 %v1114
        %v1195 = vpop.f32.mrf.mxu0
        %v1196 = vadd.f32 0.0, %v1195
        %v1197 = vpop.f32.mrf.mxu0
        %v1198 = vpop.f32.mrf.mxu0
        %v1199 = vadd.f32 0.0, %v1198
        %v1200 = vpop.f32.mrf.mxu0
        %1201 = vmatprep.mubr.bf16.mxu0 0
        %1202 = vmatmul.mubr.bf16.gmra.mxu0 %v1117
        %v1203 = vpop.f32.mrf.mxu0
        %v1204 = vadd.f32 0.0, %v1203
        %v1205 = vpop.f32.mrf.mxu0
        %v1206 = vpop.f32.mrf.mxu0
        %v1207 = vadd.f32 0.0, %v1206
        %v1208 = vpop.f32.mrf.mxu0
        %1209 = vmatprep.mubr.bf16.mxu0 0
        %1210 = vmatmul.mubr.bf16.gmra.mxu0 %v1120
        %v1211 = vpop.f32.mrf.mxu0
        %v1212 = vadd.f32 0.0, %v1211
        %v1213 = vpop.f32.mrf.mxu0
        %v1214 = vpop.f32.mrf.mxu0
        %v1215 = vadd.f32 0.0, %v1214
        %v1216 = vpop.f32.mrf.mxu0
        %1217 = vmatprep.mubr.bf16.mxu0 0
        %1218 = vmatmul.mubr.bf16.gmra.mxu0 %v1123
        %v1219 = vpop.f32.mrf.mxu0
        %v1220 = vadd.f32 0.0, %v1219
        %v1221 = vpop.f32.mrf.mxu0
        %v1222 = vpop.f32.mrf.mxu0
        %v1223 = vadd.f32 0.0, %v1222
        %v1224 = vpop.f32.mrf.mxu0
        %1225 = vmatprep.mubr.bf16.mxu0 0
        %1226 = vmatmul.mubr.bf16.gmra.mxu0 %v1126
        %v1227 = vpop.f32.mrf.mxu0
        %v1228 = vadd.f32 0.0, %v1227
        %v1229 = vpop.f32.mrf.mxu0
        %v1230 = vpop.f32.mrf.mxu0
        %v1231 = vadd.f32 0.0, %v1230
        %v1232 = vpop.f32.mrf.mxu0
        %1233 = vmatprep.mubr.bf16.mxu0 0
        %1234 = vmatmul.mubr.bf16.gmra.mxu0 %v1129
        %v1235 = vpop.f32.mrf.mxu0
        %v1236 = vadd.f32 0.0, %v1235
        %v1237 = vpop.f32.mrf.mxu0
        %v1238 = vpop.f32.mrf.mxu0
        %v1239 = vadd.f32 0.0, %v1238
        %v1240 = vpop.f32.mrf.mxu0
        %1241 = vmatprep.mubr.bf16.mxu0 0
        %1242 = vmatmul.mubr.bf16.gmra.mxu0 %v1132
        %v1243 = vpop.f32.mrf.mxu0
        %v1244 = vadd.f32 0.0, %v1243
        %v1245 = vpop.f32.mrf.mxu0
        %v1246 = vpop.f32.mrf.mxu0
        %v1247 = vadd.f32 0.0, %v1246
        %v1248 = vpop.f32.mrf.mxu0
        %1249 = vmatprep.mubr.bf16.mxu0 0
        %1250 = vmatmul.mubr.bf16.gmra.mxu0 %v1135
        %v1251 = vpop.f32.mrf.mxu0
        %v1252 = vadd.f32 0.0, %v1251
        %v1253 = vpop.f32.mrf.mxu0
        %v1254 = vpop.f32.mrf.mxu0
        %v1255 = vadd.f32 0.0, %v1254
        %v1256 = vpop.f32.mrf.mxu0
        %1257 = vmatprep.mubr.bf16.mxu0 0
        %1258 = vmatmul.mubr.bf16.gmra.mxu0 %v1138
        %v1259 = vpop.f32.mrf.mxu0
        %v1260 = vadd.f32 0.0, %v1259
        %v1261 = vpop.f32.mrf.mxu0
        %v1262 = vpop.f32.mrf.mxu0
        %v1263 = vadd.f32 0.0, %v1262
        %v1264 = vpop.f32.mrf.mxu0
        %1265 = vmatprep.mubr.bf16.mxu0 0
        %1266 = vmatmul.mubr.bf16.gmra.mxu0 %v1141
        %v1267 = vpop.f32.mrf.mxu0
        %v1268 = vadd.f32 0.0, %v1267
        %v1269 = vpop.f32.mrf.mxu0
        %v1270 = vpop.f32.mrf.mxu0
        %v1271 = vadd.f32 0.0, %v1270
        %v1272 = vpop.f32.mrf.mxu0
        %1273 = vmatprep.mubr.bf16.mxu0 0
        %1274 = vmatmul.mubr.bf16.gmra.mxu0 %v1144
        %v1275 = vpop.f32.mrf.mxu0
        %v1276 = vadd.f32 0.0, %v1275
        %v1277 = vpop.f32.mrf.mxu0
        %v1278 = vpop.f32.mrf.mxu0
        %v1279 = vadd.f32 0.0, %v1278
        %v1280 = vpop.f32.mrf.mxu0
        %1281 = vmatprep.mubr.bf16.mxu0 0
        %1282 = vmatmul.mubr.bf16.gmra.mxu0 %v1147
        %v1283 = vpop.f32.mrf.mxu0
        %v1284 = vadd.f32 0.0, %v1283
        %v1285 = vpop.f32.mrf.mxu0
        %v1286 = vpop.f32.mrf.mxu0
        %v1287 = vadd.f32 0.0, %v1286
        %v1288 = vpop.f32.mrf.mxu0
        %1289 = vmatprep.mubr.bf16.mxu0 0
        %1290 = vmatmul.mubr.bf16.gmra.mxu0 %v1150
        %v1291 = vpop.f32.mrf.mxu0
        %v1292 = vadd.f32 0.0, %v1291
        %v1293 = vpop.f32.mrf.mxu0
        %v1294 = vpop.f32.mrf.mxu0
        %v1295 = vadd.f32 0.0, %v1294
        %v1296 = vpop.f32.mrf.mxu0
        %1297 = vmatprep.mubr.bf16.mxu0 0
        %1298 = vmatmul.mubr.bf16.gmra.mxu0 %v1153
        %v1299 = vpop.f32.mrf.mxu0
        %v1300 = vadd.f32 0.0, %v1299
        %v1301 = vpop.f32.mrf.mxu0
        %v1302 = vpop.f32.mrf.mxu0
        %v1303 = vadd.f32 0.0, %v1302
        %v1304 = vpop.f32.mrf.mxu0
        %1305 = vmatprep.mubr.bf16.mxu0 0
        %1306 = vmatmul.mubr.bf16.gmra.mxu0 %v1156
        %v1307 = vpop.f32.mrf.mxu0
        %v1308 = vadd.f32 0.0, %v1307
        %v1309 = vpop.f32.mrf.mxu0
        %v1310 = vpop.f32.mrf.mxu0
        %v1311 = vadd.f32 0.0, %v1310
        %v1312 = vpop.f32.mrf.mxu0
        %1313 = vmatprep.mubr.bf16.mxu0 0
        %1314 = vmatmul.mubr.bf16.gmra.mxu0 %v1159
        %v1315 = vpop.f32.mrf.mxu0
        %v1316 = vadd.f32 0.0, %v1315
        %v1317 = vpop.f32.mrf.mxu0
        %v1318 = vpop.f32.mrf.mxu0
        %v1319 = vadd.f32 0.0, %v1318
        %v1320 = vpop.f32.mrf.mxu0
        %1321 = vdwg.mxu0
        %v1354 = vunpack.c.l.b16 %v603
        %v1355 = vunpack.c.l.b16 %v604
        %v1356 = vunpack.c.l.b16 %v606
        %v1357 = vunpack.c.l.b16 %v607
        %v1358 = vunpack.c.l.b16 %v609
        %v1359 = vunpack.c.l.b16 %v610
        %v1360 = vunpack.c.l.b16 %v612
        %v1361 = vunpack.c.l.b16 %v613
        %v1362 = vunpack.c.l.b16 %v615
        %v1363 = vunpack.c.l.b16 %v616
        %v1364 = vunpack.c.l.b16 %v618
        %v1365 = vunpack.c.l.b16 %v619
        %v1366 = vunpack.c.l.b16 %v621
        %v1367 = vunpack.c.l.b16 %v622
        %v1368 = vunpack.c.l.b16 %v624
        %v1369 = vunpack.c.l.b16 %v625
        %v1370 = vunpack.c.l.b16 %v627
        %v1371 = vunpack.c.l.b16 %v628
        %v1372 = vunpack.c.l.b16 %v630
        %v1373 = vunpack.c.l.b16 %v631
        %v1374 = vunpack.c.l.b16 %v633
        %v1375 = vunpack.c.l.b16 %v634
        %v1376 = vunpack.c.l.b16 %v636
        %v1377 = vunpack.c.l.b16 %v637
        %v1378 = vunpack.c.l.b16 %v639
        %v1379 = vunpack.c.l.b16 %v640
        %v1380 = vunpack.c.l.b16 %v642
        %v1381 = vunpack.c.l.b16 %v643
        %v1382 = vunpack.c.l.b16 %v645
        %v1383 = vunpack.c.l.b16 %v646
        %v1384 = vunpack.c.l.b16 %v648
        %v1385 = vunpack.c.l.b16 %v649
        %v1386 = vpack.c.b16 %v1355, %v1354
        %v1387 = vpack.c.b16 %v1357, %v1356
        %v1388 = vpack.c.b16 %v1359, %v1358
        %v1389 = vpack.c.b16 %v1361, %v1360
        %v1390 = vpack.c.b16 %v1363, %v1362
        %v1391 = vpack.c.b16 %v1365, %v1364
        %v1392 = vpack.c.b16 %v1367, %v1366
        %v1393 = vpack.c.b16 %v1369, %v1368
        %v1394 = vpack.c.b16 %v1371, %v1370
        %v1395 = vpack.c.b16 %v1373, %v1372
        %v1396 = vpack.c.b16 %v1375, %v1374
        %v1397 = vpack.c.b16 %v1377, %v1376
        %v1398 = vpack.c.b16 %v1379, %v1378
        %v1399 = vpack.c.b16 %v1381, %v1380
        %v1400 = vpack.c.b16 %v1383, %v1382
        %v1401 = vpack.c.b16 %v1385, %v1384
        %v1406 = vunpack.c.l.b16 %v657
        %v1407 = vunpack.c.l.b16 %v658
        %v1408 = vunpack.c.l.b16 %v659
        %v1409 = vunpack.c.l.b16 %v660
        %v1410 = vpack.c.b16 %v1407, %v1406
        %v1411 = vpack.c.b16 %v1409, %v1408
        %v1415 = vsel %vm415, %v1386, 0
        %v1418 = vsel %vm415, %v1387, 0
        %v1421 = vsel %vm415, %v1388, 0
        %v1424 = vsel %vm415, %v1389, 0
        %v1427 = vsel %vm415, %v1390, 0
        %v1430 = vsel %vm415, %v1391, 0
        %v1433 = vsel %vm415, %v1392, 0
        %v1436 = vsel %vm415, %v1393, 0
        %v1439 = vsel %vm415, %v1394, 0
        %v1442 = vsel %vm415, %v1395, 0
        %v1445 = vsel %vm415, %v1396, 0
        %v1448 = vsel %vm415, %v1397, 0
        %v1451 = vsel %vm415, %v1398, 0
        %v1454 = vsel %vm415, %v1399, 0
        %v1457 = vsel %vm415, %v1400, 0
        %v1460 = vsel %vm415, %v1401, 0
        %1462 = vmatprep.subr.bf16.mxu0 0
        %1463 = vmatpush1.bf16.msra.mxu0 0
        %1464 = vmatprep.subr.bf16.mxu0 0
        %1465 = vmatpush1.bf16.msra.mxu0 0
        %1466 = vmatprep.subr.bf16.mxu0 0
        %1467 = vmatpush1.bf16.msra.mxu0 0
        %1468 = vmatprep.subr.bf16.mxu0 0
        %1469 = vmatpush1.bf16.msra.mxu0 0
        %1470 = vmatprep.subr.bf16.mxu0 0
        %1471 = vmatpush1.bf16.msra.mxu0 0
        %1472 = vmatprep.subr.bf16.mxu0 0
        %1473 = vmatpush1.bf16.msra.mxu0 0
        %1474 = vmatprep.subr.bf16.mxu0 0
        %1475 = vmatpush1.bf16.msra.mxu0 %v1411
        %1476 = vmatprep.subr.bf16.mxu0 0
        %1477 = vmatpush1.bf16.msra.mxu0 %v1410
        %1478 = vmatprep.subr.bf16.mxu0 0
        %1479 = vmatpush2.bf16.msra.mxu0 0
        %1480 = vmatprep.subr.bf16.mxu0 0
        %1481 = vmatpush2.bf16.msra.mxu0 0
        %1482 = vmatprep.subr.bf16.mxu0 0
        %1483 = vmatpush2.bf16.msra.mxu0 0
        %1484 = vmatprep.subr.bf16.mxu0 0
        %1485 = vmatpush2.bf16.msra.mxu0 0
        %1486 = vmatprep.subr.bf16.mxu0 0
        %1487 = vmatpush2.bf16.msra.mxu0 0
        %1488 = vmatprep.subr.bf16.mxu0 0
        %1489 = vmatpush2.bf16.msra.mxu0 0
        %1490 = vmatprep.subr.bf16.mxu0 0
        %1491 = vmatpush2.bf16.msra.mxu0 0
        %1492 = vmatprep.subr.bf16.mxu0 0
        %1493 = vmatpush2.bf16.msra.mxu0 0
        %1494 = vmatprep.mubr.bf16.mxu0 0
        %1495 = vmatmul.mubr.bf16.gmra.mxu0 %v1415
        %v1496 = vpop.f32.mrf.mxu0
        %v1497 = vadd.f32 %v1196, %v1496
        %v1498 = vpop.f32.mrf.mxu0
        %v1499 = vpop.f32.mrf.mxu0
        %v1500 = vadd.f32 %v1199, %v1499
        %v1501 = vpop.f32.mrf.mxu0
        %1502 = vmatprep.mubr.bf16.mxu0 0
        %1503 = vmatmul.mubr.bf16.gmra.mxu0 %v1418
        %v1504 = vpop.f32.mrf.mxu0
        %v1505 = vadd.f32 %v1204, %v1504
        %v1506 = vpop.f32.mrf.mxu0
        %v1507 = vpop.f32.mrf.mxu0
        %v1508 = vadd.f32 %v1207, %v1507
        %v1509 = vpop.f32.mrf.mxu0
        %1510 = vmatprep.mubr.bf16.mxu0 0
        %1511 = vmatmul.mubr.bf16.gmra.mxu0 %v1421
        %v1512 = vpop.f32.mrf.mxu0
        %v1513 = vadd.f32 %v1212, %v1512
        %v1514 = vpop.f32.mrf.mxu0
        %v1515 = vpop.f32.mrf.mxu0
        %v1516 = vadd.f32 %v1215, %v1515
        %v1517 = vpop.f32.mrf.mxu0
        %1518 = vmatprep.mubr.bf16.mxu0 0
        %1519 = vmatmul.mubr.bf16.gmra.mxu0 %v1424
        %v1520 = vpop.f32.mrf.mxu0
        %v1521 = vadd.f32 %v1220, %v1520
        %v1522 = vpop.f32.mrf.mxu0
        %v1523 = vpop.f32.mrf.mxu0
        %v1524 = vadd.f32 %v1223, %v1523
        %v1525 = vpop.f32.mrf.mxu0
        %1526 = vmatprep.mubr.bf16.mxu0 0
        %1527 = vmatmul.mubr.bf16.gmra.mxu0 %v1427
        %v1528 = vpop.f32.mrf.mxu0
        %v1529 = vadd.f32 %v1228, %v1528
        %v1530 = vpop.f32.mrf.mxu0
        %v1531 = vpop.f32.mrf.mxu0
        %v1532 = vadd.f32 %v1231, %v1531
        %v1533 = vpop.f32.mrf.mxu0
        %1534 = vmatprep.mubr.bf16.mxu0 0
        %1535 = vmatmul.mubr.bf16.gmra.mxu0 %v1430
        %v1536 = vpop.f32.mrf.mxu0
        %v1537 = vadd.f32 %v1236, %v1536
        %v1538 = vpop.f32.mrf.mxu0
        %v1539 = vpop.f32.mrf.mxu0
        %v1540 = vadd.f32 %v1239, %v1539
        %v1541 = vpop.f32.mrf.mxu0
        %1542 = vmatprep.mubr.bf16.mxu0 0
        %1543 = vmatmul.mubr.bf16.gmra.mxu0 %v1433
        %v1544 = vpop.f32.mrf.mxu0
        %v1545 = vadd.f32 %v1244, %v1544
        %v1546 = vpop.f32.mrf.mxu0
        %v1547 = vpop.f32.mrf.mxu0
        %v1548 = vadd.f32 %v1247, %v1547
        %v1549 = vpop.f32.mrf.mxu0
        %1550 = vmatprep.mubr.bf16.mxu0 0
        %1551 = vmatmul.mubr.bf16.gmra.mxu0 %v1436
        %v1552 = vpop.f32.mrf.mxu0
        %v1553 = vadd.f32 %v1252, %v1552
        %v1554 = vpop.f32.mrf.mxu0
        %v1555 = vpop.f32.mrf.mxu0
        %v1556 = vadd.f32 %v1255, %v1555
        %v1557 = vpop.f32.mrf.mxu0
        %1558 = vmatprep.mubr.bf16.mxu0 0
        %1559 = vmatmul.mubr.bf16.gmra.mxu0 %v1439
        %v1560 = vpop.f32.mrf.mxu0
        %v1561 = vadd.f32 %v1260, %v1560
        %v1562 = vpop.f32.mrf.mxu0
        %v1563 = vpop.f32.mrf.mxu0
        %v1564 = vadd.f32 %v1263, %v1563
        %v1565 = vpop.f32.mrf.mxu0
        %1566 = vmatprep.mubr.bf16.mxu0 0
        %1567 = vmatmul.mubr.bf16.gmra.mxu0 %v1442
        %v1568 = vpop.f32.mrf.mxu0
        %v1569 = vadd.f32 %v1268, %v1568
        %v1570 = vpop.f32.mrf.mxu0
        %v1571 = vpop.f32.mrf.mxu0
        %v1572 = vadd.f32 %v1271, %v1571
        %v1573 = vpop.f32.mrf.mxu0
        %1574 = vmatprep.mubr.bf16.mxu0 0
        %1575 = vmatmul.mubr.bf16.gmra.mxu0 %v1445
        %v1576 = vpop.f32.mrf.mxu0
        %v1577 = vadd.f32 %v1276, %v1576
        %v1578 = vpop.f32.mrf.mxu0
        %v1579 = vpop.f32.mrf.mxu0
        %v1580 = vadd.f32 %v1279, %v1579
        %v1581 = vpop.f32.mrf.mxu0
        %1582 = vmatprep.mubr.bf16.mxu0 0
        %1583 = vmatmul.mubr.bf16.gmra.mxu0 %v1448
        %v1584 = vpop.f32.mrf.mxu0
        %v1585 = vadd.f32 %v1284, %v1584
        %v1586 = vpop.f32.mrf.mxu0
        %v1587 = vpop.f32.mrf.mxu0
        %v1588 = vadd.f32 %v1287, %v1587
        %v1589 = vpop.f32.mrf.mxu0
        %1590 = vmatprep.mubr.bf16.mxu0 0
        %1591 = vmatmul.mubr.bf16.gmra.mxu0 %v1451
        %v1592 = vpop.f32.mrf.mxu0
        %v1593 = vadd.f32 %v1292, %v1592
        %v1594 = vpop.f32.mrf.mxu0
        %v1595 = vpop.f32.mrf.mxu0
        %v1596 = vadd.f32 %v1295, %v1595
        %v1597 = vpop.f32.mrf.mxu0
        %1598 = vmatprep.mubr.bf16.mxu0 0
        %1599 = vmatmul.mubr.bf16.gmra.mxu0 %v1454
        %v1600 = vpop.f32.mrf.mxu0
        %v1601 = vadd.f32 %v1300, %v1600
        %v1602 = vpop.f32.mrf.mxu0
        %v1603 = vpop.f32.mrf.mxu0
        %v1604 = vadd.f32 %v1303, %v1603
        %v1605 = vpop.f32.mrf.mxu0
        %1606 = vmatprep.mubr.bf16.mxu0 0
        %1607 = vmatmul.mubr.bf16.gmra.mxu0 %v1457
        %v1608 = vpop.f32.mrf.mxu0
        %v1609 = vadd.f32 %v1308, %v1608
        %v1610 = vpop.f32.mrf.mxu0
        %v1611 = vpop.f32.mrf.mxu0
        %v1612 = vadd.f32 %v1311, %v1611
        %v1613 = vpop.f32.mrf.mxu0
        %1614 = vmatprep.mubr.bf16.mxu0 0
        %1615 = vmatmul.mubr.bf16.gmra.mxu0 %v1460
        %v1616 = vpop.f32.mrf.mxu0
        %v1617 = vadd.f32 %v1316, %v1616
        %v1618 = vpop.f32.mrf.mxu0
        %v1619 = vpop.f32.mrf.mxu0
        %v1620 = vadd.f32 %v1319, %v1619
        %v1621 = vpop.f32.mrf.mxu0
        %1622 = vdwg.mxu0
        %vm1639 = vcmask 1042432
        %vm1640 = vcmask 1046532
        %vm1641 = vmor %vm1639, %vm1640
        %v1642 = vrot.slane %v603, 5
        %v1643 = vrot.slane %v1642, 4
        %v1644 = vrot.slane %v604, 5
        %v1645 = vsel %vm1641, %v1643, %v1644
        %v1646 = vrot.slane %v1644, 4
        %v1647 = vrot.slane %v605, 5
        %v1648 = vsel %vm1641, %v1646, %v1647
        %v1649 = vrot.slane %v606, 5
        %v1650 = vrot.slane %v1649, 4
        %v1651 = vrot.slane %v607, 5
        %v1652 = vsel %vm1641, %v1650, %v1651
        %v1653 = vrot.slane %v1651, 4
        %v1654 = vrot.slane %v608, 5
        %v1655 = vsel %vm1641, %v1653, %v1654
        %v1656 = vrot.slane %v609, 5
        %v1657 = vrot.slane %v1656, 4
        %v1658 = vrot.slane %v610, 5
        %v1659 = vsel %vm1641, %v1657, %v1658
        %v1660 = vrot.slane %v1658, 4
        %v1661 = vrot.slane %v611, 5
        %v1662 = vsel %vm1641, %v1660, %v1661
        %v1663 = vrot.slane %v612, 5
        %v1664 = vrot.slane %v1663, 4
        %v1665 = vrot.slane %v613, 5
        %v1666 = vsel %vm1641, %v1664, %v1665
        %v1667 = vrot.slane %v1665, 4
        %v1668 = vrot.slane %v614, 5
        %v1669 = vsel %vm1641, %v1667, %v1668
        %v1670 = vrot.slane %v615, 5
        %v1671 = vrot.slane %v1670, 4
        %v1672 = vrot.slane %v616, 5
        %v1673 = vsel %vm1641, %v1671, %v1672
        %v1674 = vrot.slane %v1672, 4
        %v1675 = vrot.slane %v617, 5
        %v1676 = vsel %vm1641, %v1674, %v1675
        %v1677 = vrot.slane %v618, 5
        %v1678 = vrot.slane %v1677, 4
        %v1679 = vrot.slane %v619, 5
        %v1680 = vsel %vm1641, %v1678, %v1679
        %v1681 = vrot.slane %v1679, 4
        %v1682 = vrot.slane %v620, 5
        %v1683 = vsel %vm1641, %v1681, %v1682
        %v1684 = vrot.slane %v621, 5
        %v1685 = vrot.slane %v1684, 4
        %v1686 = vrot.slane %v622, 5
        %v1687 = vsel %vm1641, %v1685, %v1686
        %v1688 = vrot.slane %v1686, 4
        %v1689 = vrot.slane %v623, 5
        %v1690 = vsel %vm1641, %v1688, %v1689
        %v1691 = vrot.slane %v624, 5
        %v1692 = vrot.slane %v1691, 4
        %v1693 = vrot.slane %v625, 5
        %v1694 = vsel %vm1641, %v1692, %v1693
        %v1695 = vrot.slane %v1693, 4
        %v1696 = vrot.slane %v626, 5
        %v1697 = vsel %vm1641, %v1695, %v1696
        %v1698 = vrot.slane %v627, 5
        %v1699 = vrot.slane %v1698, 4
        %v1700 = vrot.slane %v628, 5
        %v1701 = vsel %vm1641, %v1699, %v1700
        %v1702 = vrot.slane %v1700, 4
        %v1703 = vrot.slane %v629, 5
        %v1704 = vsel %vm1641, %v1702, %v1703
        %v1705 = vrot.slane %v630, 5
        %v1706 = vrot.slane %v1705, 4
        %v1707 = vrot.slane %v631, 5
        %v1708 = vsel %vm1641, %v1706, %v1707
        %v1709 = vrot.slane %v1707, 4
        %v1710 = vrot.slane %v632, 5
        %v1711 = vsel %vm1641, %v1709, %v1710
        %v1712 = vrot.slane %v633, 5
        %v1713 = vrot.slane %v1712, 4
        %v1714 = vrot.slane %v634, 5
        %v1715 = vsel %vm1641, %v1713, %v1714
        %v1716 = vrot.slane %v1714, 4
        %v1717 = vrot.slane %v635, 5
        %v1718 = vsel %vm1641, %v1716, %v1717
        %v1719 = vrot.slane %v636, 5
        %v1720 = vrot.slane %v1719, 4
        %v1721 = vrot.slane %v637, 5
        %v1722 = vsel %vm1641, %v1720, %v1721
        %v1723 = vrot.slane %v1721, 4
        %v1724 = vrot.slane %v638, 5
        %v1725 = vsel %vm1641, %v1723, %v1724
        %v1726 = vrot.slane %v639, 5
        %v1727 = vrot.slane %v1726, 4
        %v1728 = vrot.slane %v640, 5
        %v1729 = vsel %vm1641, %v1727, %v1728
        %v1730 = vrot.slane %v1728, 4
        %v1731 = vrot.slane %v641, 5
        %v1732 = vsel %vm1641, %v1730, %v1731
        %v1733 = vrot.slane %v642, 5
        %v1734 = vrot.slane %v1733, 4
        %v1735 = vrot.slane %v643, 5
        %v1736 = vsel %vm1641, %v1734, %v1735
        %v1737 = vrot.slane %v1735, 4
        %v1738 = vrot.slane %v644, 5
        %v1739 = vsel %vm1641, %v1737, %v1738
        %v1740 = vrot.slane %v645, 5
        %v1741 = vrot.slane %v1740, 4
        %v1742 = vrot.slane %v646, 5
        %v1743 = vsel %vm1641, %v1741, %v1742
        %v1744 = vrot.slane %v1742, 4
        %v1745 = vrot.slane %v647, 5
        %v1746 = vsel %vm1641, %v1744, %v1745
        %v1747 = vrot.slane %v648, 5
        %v1748 = vrot.slane %v1747, 4
        %v1749 = vrot.slane %v649, 5
        %v1750 = vsel %vm1641, %v1748, %v1749
        %v1751 = vrot.slane %v1749, 4
        %v1752 = vrot.slane %v650, 5
        %v1753 = vsel %vm1641, %v1751, %v1752
        %s1754 = scalar_lea.vmem %s2, 32
        %v1755 = vld [vmem:[%s1754] sm:$0xf]
        %v1756 = vld [vmem:[%s1754 + $0x4] sm:$0xf]
        %v1757 = vld [vmem:[%s1754 + $0x8] sm:$0xf]
        %v1758 = vld [vmem:[%s1754 + $0xc] sm:$0xf]
        %v1759 = vunpack.c.l.b16 %v1645
        %v1760 = vunpack.c.l.b16 %v1648
        %v1761 = vunpack.c.l.b16 %v1652
        %v1762 = vunpack.c.l.b16 %v1655
        %v1763 = vunpack.c.l.b16 %v1659
        %v1764 = vunpack.c.l.b16 %v1662
        %v1765 = vunpack.c.l.b16 %v1666
        %v1766 = vunpack.c.l.b16 %v1669
        %v1767 = vunpack.c.l.b16 %v1673
        %v1768 = vunpack.c.l.b16 %v1676
        %v1769 = vunpack.c.l.b16 %v1680
        %v1770 = vunpack.c.l.b16 %v1683
        %v1771 = vunpack.c.l.b16 %v1687
        %v1772 = vunpack.c.l.b16 %v1690
        %v1773 = vunpack.c.l.b16 %v1694
        %v1774 = vunpack.c.l.b16 %v1697
        %v1775 = vunpack.c.l.b16 %v1701
        %v1776 = vunpack.c.l.b16 %v1704
        %v1777 = vunpack.c.l.b16 %v1708
        %v1778 = vunpack.c.l.b16 %v1711
        %v1779 = vunpack.c.l.b16 %v1715
        %v1780 = vunpack.c.l.b16 %v1718
        %v1781 = vunpack.c.l.b16 %v1722
        %v1782 = vunpack.c.l.b16 %v1725
        %v1783 = vunpack.c.l.b16 %v1729
        %v1784 = vunpack.c.l.b16 %v1732
        %v1785 = vunpack.c.l.b16 %v1736
        %v1786 = vunpack.c.l.b16 %v1739
        %v1787 = vunpack.c.l.b16 %v1743
        %v1788 = vunpack.c.l.b16 %v1746
        %v1789 = vunpack.c.l.b16 %v1750
        %v1790 = vunpack.c.l.b16 %v1753
        %v1791 = vpack.c.b16 %v1760, %v1759
        %v1792 = vpack.c.b16 %v1762, %v1761
        %v1793 = vpack.c.b16 %v1764, %v1763
        %v1794 = vpack.c.b16 %v1766, %v1765
        %v1795 = vpack.c.b16 %v1768, %v1767
        %v1796 = vpack.c.b16 %v1770, %v1769
        %v1797 = vpack.c.b16 %v1772, %v1771
        %v1798 = vpack.c.b16 %v1774, %v1773
        %v1799 = vpack.c.b16 %v1776, %v1775
        %v1800 = vpack.c.b16 %v1778, %v1777
        %v1801 = vpack.c.b16 %v1780, %v1779
        %v1802 = vpack.c.b16 %v1782, %v1781
        %v1803 = vpack.c.b16 %v1784, %v1783
        %v1804 = vpack.c.b16 %v1786, %v1785
        %v1805 = vpack.c.b16 %v1788, %v1787
        %v1806 = vpack.c.b16 %v1790, %v1789
        %v1811 = vunpack.c.l.b16 %v1755
        %v1812 = vunpack.c.l.b16 %v1756
        %v1813 = vunpack.c.l.b16 %v1757
        %v1814 = vunpack.c.l.b16 %v1758
        %v1815 = vpack.c.b16 %v1812, %v1811
        %v1816 = vpack.c.b16 %v1814, %v1813
        %v1820 = vsel %vm415, %v1791, 0
        %v1823 = vsel %vm415, %v1792, 0
        %v1826 = vsel %vm415, %v1793, 0
        %v1829 = vsel %vm415, %v1794, 0
        %v1832 = vsel %vm415, %v1795, 0
        %v1835 = vsel %vm415, %v1796, 0
        %v1838 = vsel %vm415, %v1797, 0
        %v1841 = vsel %vm415, %v1798, 0
        %v1844 = vsel %vm415, %v1799, 0
        %v1847 = vsel %vm415, %v1800, 0
        %v1850 = vsel %vm415, %v1801, 0
        %v1853 = vsel %vm415, %v1802, 0
        %v1856 = vsel %vm415, %v1803, 0
        %v1859 = vsel %vm415, %v1804, 0
        %v1862 = vsel %vm415, %v1805, 0
        %v1865 = vsel %vm415, %v1806, 0
        %1867 = vmatprep.subr.bf16.mxu0 0
        %1868 = vmatpush1.bf16.msra.mxu0 0
        %1869 = vmatprep.subr.bf16.mxu0 0
        %1870 = vmatpush1.bf16.msra.mxu0 0
        %1871 = vmatprep.subr.bf16.mxu0 0
        %1872 = vmatpush1.bf16.msra.mxu0 0
        %1873 = vmatprep.subr.bf16.mxu0 0
        %1874 = vmatpush1.bf16.msra.mxu0 0
        %1875 = vmatprep.subr.bf16.mxu0 0
        %1876 = vmatpush1.bf16.msra.mxu0 0
        %1877 = vmatprep.subr.bf16.mxu0 0
        %1878 = vmatpush1.bf16.msra.mxu0 0
        %1879 = vmatprep.subr.bf16.mxu0 0
        %1880 = vmatpush1.bf16.msra.mxu0 %v1816
        %1881 = vmatprep.subr.bf16.mxu0 0
        %1882 = vmatpush1.bf16.msra.mxu0 %v1815
        %1883 = vmatprep.subr.bf16.mxu0 0
        %1884 = vmatpush2.bf16.msra.mxu0 0
        %1885 = vmatprep.subr.bf16.mxu0 0
        %1886 = vmatpush2.bf16.msra.mxu0 0
        %1887 = vmatprep.subr.bf16.mxu0 0
        %1888 = vmatpush2.bf16.msra.mxu0 0
        %1889 = vmatprep.subr.bf16.mxu0 0
        %1890 = vmatpush2.bf16.msra.mxu0 0
        %1891 = vmatprep.subr.bf16.mxu0 0
        %1892 = vmatpush2.bf16.msra.mxu0 0
        %1893 = vmatprep.subr.bf16.mxu0 0
        %1894 = vmatpush2.bf16.msra.mxu0 0
        %1895 = vmatprep.subr.bf16.mxu0 0
        %1896 = vmatpush2.bf16.msra.mxu0 0
        %1897 = vmatprep.subr.bf16.mxu0 0
        %1898 = vmatpush2.bf16.msra.mxu0 0
        %1899 = vmatprep.mubr.bf16.mxu0 0
        %1900 = vmatmul.mubr.bf16.gmra.mxu0 %v1820
        %v1901 = vpop.f32.mrf.mxu0
        %v1902 = vadd.f32 0.0, %v1901
        %v1903 = vpop.f32.mrf.mxu0
        %v1904 = vpop.f32.mrf.mxu0
        %v1905 = vadd.f32 0.0, %v1904
        %v1906 = vpop.f32.mrf.mxu0
        %1907 = vmatprep.mubr.bf16.mxu0 0
        %1908 = vmatmul.mubr.bf16.gmra.mxu0 %v1823
        %v1909 = vpop.f32.mrf.mxu0
        %v1910 = vadd.f32 0.0, %v1909
        %v1911 = vpop.f32.mrf.mxu0
        %v1912 = vpop.f32.mrf.mxu0
        %v1913 = vadd.f32 0.0, %v1912
        %v1914 = vpop.f32.mrf.mxu0
        %1915 = vmatprep.mubr.bf16.mxu0 0
        %1916 = vmatmul.mubr.bf16.gmra.mxu0 %v1826
        %v1917 = vpop.f32.mrf.mxu0
        %v1918 = vadd.f32 0.0, %v1917
        %v1919 = vpop.f32.mrf.mxu0
        %v1920 = vpop.f32.mrf.mxu0
        %v1921 = vadd.f32 0.0, %v1920
        %v1922 = vpop.f32.mrf.mxu0
        %1923 = vmatprep.mubr.bf16.mxu0 0
        %1924 = vmatmul.mubr.bf16.gmra.mxu0 %v1829
        %v1925 = vpop.f32.mrf.mxu0
        %v1926 = vadd.f32 0.0, %v1925
        %v1927 = vpop.f32.mrf.mxu0
        %v1928 = vpop.f32.mrf.mxu0
        %v1929 = vadd.f32 0.0, %v1928
        %v1930 = vpop.f32.mrf.mxu0
        %1931 = vmatprep.mubr.bf16.mxu0 0
        %1932 = vmatmul.mubr.bf16.gmra.mxu0 %v1832
        %v1933 = vpop.f32.mrf.mxu0
        %v1934 = vadd.f32 0.0, %v1933
        %v1935 = vpop.f32.mrf.mxu0
        %v1936 = vpop.f32.mrf.mxu0
        %v1937 = vadd.f32 0.0, %v1936
        %v1938 = vpop.f32.mrf.mxu0
        %1939 = vmatprep.mubr.bf16.mxu0 0
        %1940 = vmatmul.mubr.bf16.gmra.mxu0 %v1835
        %v1941 = vpop.f32.mrf.mxu0
        %v1942 = vadd.f32 0.0, %v1941
        %v1943 = vpop.f32.mrf.mxu0
        %v1944 = vpop.f32.mrf.mxu0
        %v1945 = vadd.f32 0.0, %v1944
        %v1946 = vpop.f32.mrf.mxu0
        %1947 = vmatprep.mubr.bf16.mxu0 0
        %1948 = vmatmul.mubr.bf16.gmra.mxu0 %v1838
        %v1949 = vpop.f32.mrf.mxu0
        %v1950 = vadd.f32 0.0, %v1949
        %v1951 = vpop.f32.mrf.mxu0
        %v1952 = vpop.f32.mrf.mxu0
        %v1953 = vadd.f32 0.0, %v1952
        %v1954 = vpop.f32.mrf.mxu0
        %1955 = vmatprep.mubr.bf16.mxu0 0
        %1956 = vmatmul.mubr.bf16.gmra.mxu0 %v1841
        %v1957 = vpop.f32.mrf.mxu0
        %v1958 = vadd.f32 0.0, %v1957
        %v1959 = vpop.f32.mrf.mxu0
        %v1960 = vpop.f32.mrf.mxu0
        %v1961 = vadd.f32 0.0, %v1960
        %v1962 = vpop.f32.mrf.mxu0
        %1963 = vmatprep.mubr.bf16.mxu0 0
        %1964 = vmatmul.mubr.bf16.gmra.mxu0 %v1844
        %v1965 = vpop.f32.mrf.mxu0
        %v1966 = vadd.f32 0.0, %v1965
        %v1967 = vpop.f32.mrf.mxu0
        %v1968 = vpop.f32.mrf.mxu0
        %v1969 = vadd.f32 0.0, %v1968
        %v1970 = vpop.f32.mrf.mxu0
        %1971 = vmatprep.mubr.bf16.mxu0 0
        %1972 = vmatmul.mubr.bf16.gmra.mxu0 %v1847
        %v1973 = vpop.f32.mrf.mxu0
        %v1974 = vadd.f32 0.0, %v1973
        %v1975 = vpop.f32.mrf.mxu0
        %v1976 = vpop.f32.mrf.mxu0
        %v1977 = vadd.f32 0.0, %v1976
        %v1978 = vpop.f32.mrf.mxu0
        %1979 = vmatprep.mubr.bf16.mxu0 0
        %1980 = vmatmul.mubr.bf16.gmra.mxu0 %v1850
        %v1981 = vpop.f32.mrf.mxu0
        %v1982 = vadd.f32 0.0, %v1981
        %v1983 = vpop.f32.mrf.mxu0
        %v1984 = vpop.f32.mrf.mxu0
        %v1985 = vadd.f32 0.0, %v1984
        %v1986 = vpop.f32.mrf.mxu0
        %1987 = vmatprep.mubr.bf16.mxu0 0
        %1988 = vmatmul.mubr.bf16.gmra.mxu0 %v1853
        %v1989 = vpop.f32.mrf.mxu0
        %v1990 = vadd.f32 0.0, %v1989
        %v1991 = vpop.f32.mrf.mxu0
        %v1992 = vpop.f32.mrf.mxu0
        %v1993 = vadd.f32 0.0, %v1992
        %v1994 = vpop.f32.mrf.mxu0
        %1995 = vmatprep.mubr.bf16.mxu0 0
        %1996 = vmatmul.mubr.bf16.gmra.mxu0 %v1856
        %v1997 = vpop.f32.mrf.mxu0
        %v1998 = vadd.f32 0.0, %v1997
        %v1999 = vpop.f32.mrf.mxu0
        %v2000 = vpop.f32.mrf.mxu0
        %v2001 = vadd.f32 0.0, %v2000
        %v2002 = vpop.f32.mrf.mxu0
        %2003 = vmatprep.mubr.bf16.mxu0 0
        %2004 = vmatmul.mubr.bf16.gmra.mxu0 %v1859
        %v2005 = vpop.f32.mrf.mxu0
        %v2006 = vadd.f32 0.0, %v2005
        %v2007 = vpop.f32.mrf.mxu0
        %v2008 = vpop.f32.mrf.mxu0
        %v2009 = vadd.f32 0.0, %v2008
        %v2010 = vpop.f32.mrf.mxu0
        %2011 = vmatprep.mubr.bf16.mxu0 0
        %2012 = vmatmul.mubr.bf16.gmra.mxu0 %v1862
        %v2013 = vpop.f32.mrf.mxu0
        %v2014 = vadd.f32 0.0, %v2013
        %v2015 = vpop.f32.mrf.mxu0
        %v2016 = vpop.f32.mrf.mxu0
        %v2017 = vadd.f32 0.0, %v2016
        %v2018 = vpop.f32.mrf.mxu0
        %2019 = vmatprep.mubr.bf16.mxu0 0
        %2020 = vmatmul.mubr.bf16.gmra.mxu0 %v1865
        %v2021 = vpop.f32.mrf.mxu0
        %v2022 = vadd.f32 0.0, %v2021
        %v2023 = vpop.f32.mrf.mxu0
        %v2024 = vpop.f32.mrf.mxu0
        %v2025 = vadd.f32 0.0, %v2024
        %v2026 = vpop.f32.mrf.mxu0
        %2027 = vdwg.mxu0
        %v2028 = vadd.f32 %v1497, %v1902
        %v2029 = vadd.f32 %v1500, %v1905
        %v2030 = vadd.f32 %v1505, %v1910
        %v2031 = vadd.f32 %v1508, %v1913
        %v2032 = vadd.f32 %v1513, %v1918
        %v2033 = vadd.f32 %v1516, %v1921
        %v2034 = vadd.f32 %v1521, %v1926
        %v2035 = vadd.f32 %v1524, %v1929
        %v2036 = vadd.f32 %v1529, %v1934
        %v2037 = vadd.f32 %v1532, %v1937
        %v2038 = vadd.f32 %v1537, %v1942
        %v2039 = vadd.f32 %v1540, %v1945
        %v2040 = vadd.f32 %v1545, %v1950
        %v2041 = vadd.f32 %v1548, %v1953
        %v2042 = vadd.f32 %v1553, %v1958
        %v2043 = vadd.f32 %v1556, %v1961
        %v2044 = vadd.f32 %v1561, %v1966
        %v2045 = vadd.f32 %v1564, %v1969
        %v2046 = vadd.f32 %v1569, %v1974
        %v2047 = vadd.f32 %v1572, %v1977
        %v2048 = vadd.f32 %v1577, %v1982
        %v2049 = vadd.f32 %v1580, %v1985
        %v2050 = vadd.f32 %v1585, %v1990
        %v2051 = vadd.f32 %v1588, %v1993
        %v2052 = vadd.f32 %v1593, %v1998
        %v2053 = vadd.f32 %v1596, %v2001
        %v2054 = vadd.f32 %v1601, %v2006
        %v2055 = vadd.f32 %v1604, %v2009
        %v2056 = vadd.f32 %v1609, %v2014
        %v2057 = vadd.f32 %v1612, %v2017
        %v2058 = vadd.f32 %v1617, %v2022
        %v2059 = vadd.f32 %v1620, %v2025
        %s2060 = scalar_lea.vmem %s2, 48
        %v2061 = vld [vmem:[%s2060] sm:$0xf]
        %v2062 = vld [vmem:[%s2060 + $0x4] sm:$0xf]
        %v2063 = vld [vmem:[%s2060 + $0x8] sm:$0xf]
        %v2064 = vld [vmem:[%s2060 + $0xc] sm:$0xf]
        %v2067 = vunpack.c.l.b16 %v651
        %v2068 = vunpack.c.l.b16 %v652
        %v2069 = vpack.c.b16 %v2068, %v2067
        %v2074 = vunpack.c.l.b16 %v2061
        %v2075 = vunpack.c.l.b16 %v2062
        %v2076 = vunpack.c.l.b16 %v2063
        %v2077 = vunpack.c.l.b16 %v2064
        %v2078 = vpack.c.b16 %v2075, %v2074
        %v2079 = vpack.c.b16 %v2077, %v2076
        %v2083 = vsel %vm415, %v2069, 0
        %2085 = vmatprep.subr.bf16.mxu0 0
        %2086 = vmatpush1.bf16.msra.mxu0 0
        %2087 = vmatprep.subr.bf16.mxu0 0
        %2088 = vmatpush1.bf16.msra.mxu0 0
        %2089 = vmatprep.subr.bf16.mxu0 0
        %2090 = vmatpush1.bf16.msra.mxu0 0
        %2091 = vmatprep.subr.bf16.mxu0 0
        %2092 = vmatpush1.bf16.msra.mxu0 0
        %2093 = vmatprep.subr.bf16.mxu0 0
        %2094 = vmatpush1.bf16.msra.mxu0 0
        %2095 = vmatprep.subr.bf16.mxu0 0
        %2096 = vmatpush1.bf16.msra.mxu0 0
        %2097 = vmatprep.subr.bf16.mxu0 0
        %2098 = vmatpush1.bf16.msra.mxu0 %v2079
        %2099 = vmatprep.subr.bf16.mxu0 0
        %2100 = vmatpush1.bf16.msra.mxu0 %v2078
        %2101 = vmatprep.subr.bf16.mxu0 0
        %2102 = vmatpush2.bf16.msra.mxu0 0
        %2103 = vmatprep.subr.bf16.mxu0 0
        %2104 = vmatpush2.bf16.msra.mxu0 0
        %2105 = vmatprep.subr.bf16.mxu0 0
        %2106 = vmatpush2.bf16.msra.mxu0 0
        %2107 = vmatprep.subr.bf16.mxu0 0
        %2108 = vmatpush2.bf16.msra.mxu0 0
        %2109 = vmatprep.subr.bf16.mxu0 0
        %2110 = vmatpush2.bf16.msra.mxu0 0
        %2111 = vmatprep.subr.bf16.mxu0 0
        %2112 = vmatpush2.bf16.msra.mxu0 0
        %2113 = vmatprep.subr.bf16.mxu0 0
        %2114 = vmatpush2.bf16.msra.mxu0 0
        %2115 = vmatprep.subr.bf16.mxu0 0
        %2116 = vmatpush2.bf16.msra.mxu0 0
        %2117 = vmatprep.mubr.bf16.mxu0 0
        %2118 = vmatmul.mubr.bf16.gmra.mxu0 %v1418
        %v2119 = vpop.f32.mrf.mxu0
        %v2120 = vadd.f32 0.0, %v2119
        %v2121 = vpop.f32.mrf.mxu0
        %v2122 = vpop.f32.mrf.mxu0
        %v2123 = vadd.f32 0.0, %v2122
        %v2124 = vpop.f32.mrf.mxu0
        %2125 = vmatprep.mubr.bf16.mxu0 0
        %2126 = vmatmul.mubr.bf16.gmra.mxu0 %v1421
        %v2127 = vpop.f32.mrf.mxu0
        %v2128 = vadd.f32 0.0, %v2127
        %v2129 = vpop.f32.mrf.mxu0
        %v2130 = vpop.f32.mrf.mxu0
        %v2131 = vadd.f32 0.0, %v2130
        %v2132 = vpop.f32.mrf.mxu0
        %2133 = vmatprep.mubr.bf16.mxu0 0
        %2134 = vmatmul.mubr.bf16.gmra.mxu0 %v1424
        %v2135 = vpop.f32.mrf.mxu0
        %v2136 = vadd.f32 0.0, %v2135
        %v2137 = vpop.f32.mrf.mxu0
        %v2138 = vpop.f32.mrf.mxu0
        %v2139 = vadd.f32 0.0, %v2138
        %v2140 = vpop.f32.mrf.mxu0
        %2141 = vmatprep.mubr.bf16.mxu0 0
        %2142 = vmatmul.mubr.bf16.gmra.mxu0 %v1427
        %v2143 = vpop.f32.mrf.mxu0
        %v2144 = vadd.f32 0.0, %v2143
        %v2145 = vpop.f32.mrf.mxu0
        %v2146 = vpop.f32.mrf.mxu0
        %v2147 = vadd.f32 0.0, %v2146
        %v2148 = vpop.f32.mrf.mxu0
        %2149 = vmatprep.mubr.bf16.mxu0 0
        %2150 = vmatmul.mubr.bf16.gmra.mxu0 %v1430
        %v2151 = vpop.f32.mrf.mxu0
        %v2152 = vadd.f32 0.0, %v2151
        %v2153 = vpop.f32.mrf.mxu0
        %v2154 = vpop.f32.mrf.mxu0
        %v2155 = vadd.f32 0.0, %v2154
        %v2156 = vpop.f32.mrf.mxu0
        %2157 = vmatprep.mubr.bf16.mxu0 0
        %2158 = vmatmul.mubr.bf16.gmra.mxu0 %v1433
        %v2159 = vpop.f32.mrf.mxu0
        %v2160 = vadd.f32 0.0, %v2159
        %v2161 = vpop.f32.mrf.mxu0
        %v2162 = vpop.f32.mrf.mxu0
        %v2163 = vadd.f32 0.0, %v2162
        %v2164 = vpop.f32.mrf.mxu0
        %2165 = vmatprep.mubr.bf16.mxu0 0
        %2166 = vmatmul.mubr.bf16.gmra.mxu0 %v1436
        %v2167 = vpop.f32.mrf.mxu0
        %v2168 = vadd.f32 0.0, %v2167
        %v2169 = vpop.f32.mrf.mxu0
        %v2170 = vpop.f32.mrf.mxu0
        %v2171 = vadd.f32 0.0, %v2170
        %v2172 = vpop.f32.mrf.mxu0
        %2173 = vmatprep.mubr.bf16.mxu0 0
        %2174 = vmatmul.mubr.bf16.gmra.mxu0 %v1439
        %v2175 = vpop.f32.mrf.mxu0
        %v2176 = vadd.f32 0.0, %v2175
        %v2177 = vpop.f32.mrf.mxu0
        %v2178 = vpop.f32.mrf.mxu0
        %v2179 = vadd.f32 0.0, %v2178
        %v2180 = vpop.f32.mrf.mxu0
        %2181 = vmatprep.mubr.bf16.mxu0 0
        %2182 = vmatmul.mubr.bf16.gmra.mxu0 %v1442
        %v2183 = vpop.f32.mrf.mxu0
        %v2184 = vadd.f32 0.0, %v2183
        %v2185 = vpop.f32.mrf.mxu0
        %v2186 = vpop.f32.mrf.mxu0
        %v2187 = vadd.f32 0.0, %v2186
        %v2188 = vpop.f32.mrf.mxu0
        %2189 = vmatprep.mubr.bf16.mxu0 0
        %2190 = vmatmul.mubr.bf16.gmra.mxu0 %v1445
        %v2191 = vpop.f32.mrf.mxu0
        %v2192 = vadd.f32 0.0, %v2191
        %v2193 = vpop.f32.mrf.mxu0
        %v2194 = vpop.f32.mrf.mxu0
        %v2195 = vadd.f32 0.0, %v2194
        %v2196 = vpop.f32.mrf.mxu0
        %2197 = vmatprep.mubr.bf16.mxu0 0
        %2198 = vmatmul.mubr.bf16.gmra.mxu0 %v1448
        %v2199 = vpop.f32.mrf.mxu0
        %v2200 = vadd.f32 0.0, %v2199
        %v2201 = vpop.f32.mrf.mxu0
        %v2202 = vpop.f32.mrf.mxu0
        %v2203 = vadd.f32 0.0, %v2202
        %v2204 = vpop.f32.mrf.mxu0
        %2205 = vmatprep.mubr.bf16.mxu0 0
        %2206 = vmatmul.mubr.bf16.gmra.mxu0 %v1451
        %v2207 = vpop.f32.mrf.mxu0
        %v2208 = vadd.f32 0.0, %v2207
        %v2209 = vpop.f32.mrf.mxu0
        %v2210 = vpop.f32.mrf.mxu0
        %v2211 = vadd.f32 0.0, %v2210
        %v2212 = vpop.f32.mrf.mxu0
        %2213 = vmatprep.mubr.bf16.mxu0 0
        %2214 = vmatmul.mubr.bf16.gmra.mxu0 %v1454
        %v2215 = vpop.f32.mrf.mxu0
        %v2216 = vadd.f32 0.0, %v2215
        %v2217 = vpop.f32.mrf.mxu0
        %v2218 = vpop.f32.mrf.mxu0
        %v2219 = vadd.f32 0.0, %v2218
        %v2220 = vpop.f32.mrf.mxu0
        %2221 = vmatprep.mubr.bf16.mxu0 0
        %2222 = vmatmul.mubr.bf16.gmra.mxu0 %v1457
        %v2223 = vpop.f32.mrf.mxu0
        %v2224 = vadd.f32 0.0, %v2223
        %v2225 = vpop.f32.mrf.mxu0
        %v2226 = vpop.f32.mrf.mxu0
        %v2227 = vadd.f32 0.0, %v2226
        %v2228 = vpop.f32.mrf.mxu0
        %2229 = vmatprep.mubr.bf16.mxu0 0
        %2230 = vmatmul.mubr.bf16.gmra.mxu0 %v1460
        %v2231 = vpop.f32.mrf.mxu0
        %v2232 = vadd.f32 0.0, %v2231
        %v2233 = vpop.f32.mrf.mxu0
        %v2234 = vpop.f32.mrf.mxu0
        %v2235 = vadd.f32 0.0, %v2234
        %v2236 = vpop.f32.mrf.mxu0
        %2237 = vmatprep.mubr.bf16.mxu0 0
        %2238 = vmatmul.mubr.bf16.gmra.mxu0 %v2083
        %v2239 = vpop.f32.mrf.mxu0
        %v2240 = vadd.f32 0.0, %v2239
        %v2241 = vpop.f32.mrf.mxu0
        %v2242 = vpop.f32.mrf.mxu0
        %v2243 = vadd.f32 0.0, %v2242
        %v2244 = vpop.f32.mrf.mxu0
        %2245 = vdwg.mxu0
        %v2246 = vadd.f32 %v2028, %v2120
        %v2247 = vadd.f32 %v2029, %v2123
        %v2248 = vadd.f32 %v2030, %v2128
        %v2249 = vadd.f32 %v2031, %v2131
        %v2250 = vadd.f32 %v2032, %v2136
        %v2251 = vadd.f32 %v2033, %v2139
        %v2252 = vadd.f32 %v2034, %v2144
        %v2253 = vadd.f32 %v2035, %v2147
        %v2254 = vadd.f32 %v2036, %v2152
        %v2255 = vadd.f32 %v2037, %v2155
        %v2256 = vadd.f32 %v2038, %v2160
        %v2257 = vadd.f32 %v2039, %v2163
        %v2258 = vadd.f32 %v2040, %v2168
        %v2259 = vadd.f32 %v2041, %v2171
        %v2260 = vadd.f32 %v2042, %v2176
        %v2261 = vadd.f32 %v2043, %v2179
        %v2262 = vadd.f32 %v2044, %v2184
        %v2263 = vadd.f32 %v2045, %v2187
        %v2264 = vadd.f32 %v2046, %v2192
        %v2265 = vadd.f32 %v2047, %v2195
        %v2266 = vadd.f32 %v2048, %v2200
        %v2267 = vadd.f32 %v2049, %v2203
        %v2268 = vadd.f32 %v2050, %v2208
        %v2269 = vadd.f32 %v2051, %v2211
        %v2270 = vadd.f32 %v2052, %v2216
        %v2271 = vadd.f32 %v2053, %v2219
        %v2272 = vadd.f32 %v2054, %v2224
        %v2273 = vadd.f32 %v2055, %v2227
        %v2274 = vadd.f32 %v2056, %v2232
        %v2275 = vadd.f32 %v2057, %v2235
        %v2276 = vadd.f32 %v2058, %v2240
        %v2277 = vadd.f32 %v2059, %v2243
        %v2279 = vshrl.u32 %v651, 16
        %v2281 = vrot.slane %v2279, 4
        %v2282 = vshll.u32 %v651, 16
        %v2284 = vrot.slane %v2282, 5
        %v2285 = vor.u32 %v2281, %v2284
        %v2286 = vrot.slane %v2285, 4
        %v2288 = vshll.u32 %v652, 16
        %v2290 = vrot.slane %v2288, 5
        %v2291 = vsel %vm663, %v2286, %v2290
        %v2292 = vshrl.u32 %v652, 16
        %v2294 = vrot.slane %v2292, 4
        %v2295 = vor.u32 %v2294, %v2290
        %v2296 = vrot.slane %v2295, 4
        %v2298 = vshll.u32 %v653, 16
        %v2300 = vrot.slane %v2298, 5
        %v2301 = vsel %vm663, %v2296, %v2300
        %s2302 = scalar_lea.vmem %s2, 64
        %v2303 = vld [vmem:[%s2302] sm:$0xf]
        %v2304 = vld [vmem:[%s2302 + $0x4] sm:$0xf]
        %v2305 = vld [vmem:[%s2302 + $0x8] sm:$0xf]
        %v2306 = vld [vmem:[%s2302 + $0xc] sm:$0xf]
        %v2307 = vunpack.c.l.b16 %v2291
        %v2308 = vunpack.c.l.b16 %v2301
        %v2309 = vpack.c.b16 %v2308, %v2307
        %v2314 = vunpack.c.l.b16 %v2303
        %v2315 = vunpack.c.l.b16 %v2304
        %v2316 = vunpack.c.l.b16 %v2305
        %v2317 = vunpack.c.l.b16 %v2306
        %v2318 = vpack.c.b16 %v2315, %v2314
        %v2319 = vpack.c.b16 %v2317, %v2316
        %v2323 = vsel %vm415, %v2309, 0
        %2325 = vmatprep.subr.bf16.mxu0 0
        %2326 = vmatpush1.bf16.msra.mxu0 0
        %2327 = vmatprep.subr.bf16.mxu0 0
        %2328 = vmatpush1.bf16.msra.mxu0 0
        %2329 = vmatprep.subr.bf16.mxu0 0
        %2330 = vmatpush1.bf16.msra.mxu0 0
        %2331 = vmatprep.subr.bf16.mxu0 0
        %2332 = vmatpush1.bf16.msra.mxu0 0
        %2333 = vmatprep.subr.bf16.mxu0 0
        %2334 = vmatpush1.bf16.msra.mxu0 0
        %2335 = vmatprep.subr.bf16.mxu0 0
        %2336 = vmatpush1.bf16.msra.mxu0 0
        %2337 = vmatprep.subr.bf16.mxu0 0
        %2338 = vmatpush1.bf16.msra.mxu0 %v2319
        %2339 = vmatprep.subr.bf16.mxu0 0
        %2340 = vmatpush1.bf16.msra.mxu0 %v2318
        %2341 = vmatprep.subr.bf16.mxu0 0
        %2342 = vmatpush2.bf16.msra.mxu0 0
        %2343 = vmatprep.subr.bf16.mxu0 0
        %2344 = vmatpush2.bf16.msra.mxu0 0
        %2345 = vmatprep.subr.bf16.mxu0 0
        %2346 = vmatpush2.bf16.msra.mxu0 0
        %2347 = vmatprep.subr.bf16.mxu0 0
        %2348 = vmatpush2.bf16.msra.mxu0 0
        %2349 = vmatprep.subr.bf16.mxu0 0
        %2350 = vmatpush2.bf16.msra.mxu0 0
        %2351 = vmatprep.subr.bf16.mxu0 0
        %2352 = vmatpush2.bf16.msra.mxu0 0
        %2353 = vmatprep.subr.bf16.mxu0 0
        %2354 = vmatpush2.bf16.msra.mxu0 0
        %2355 = vmatprep.subr.bf16.mxu0 0
        %2356 = vmatpush2.bf16.msra.mxu0 0
        %2357 = vmatprep.mubr.bf16.mxu0 0
        %2358 = vmatmul.mubr.bf16.gmra.mxu0 %v1117
        %v2359 = vpop.f32.mrf.mxu0
        %v2360 = vadd.f32 0.0, %v2359
        %v2361 = vpop.f32.mrf.mxu0
        %v2362 = vpop.f32.mrf.mxu0
        %v2363 = vadd.f32 0.0, %v2362
        %v2364 = vpop.f32.mrf.mxu0
        %2365 = vmatprep.mubr.bf16.mxu0 0
        %2366 = vmatmul.mubr.bf16.gmra.mxu0 %v1120
        %v2367 = vpop.f32.mrf.mxu0
        %v2368 = vadd.f32 0.0, %v2367
        %v2369 = vpop.f32.mrf.mxu0
        %v2370 = vpop.f32.mrf.mxu0
        %v2371 = vadd.f32 0.0, %v2370
        %v2372 = vpop.f32.mrf.mxu0
        %2373 = vmatprep.mubr.bf16.mxu0 0
        %2374 = vmatmul.mubr.bf16.gmra.mxu0 %v1123
        %v2375 = vpop.f32.mrf.mxu0
        %v2376 = vadd.f32 0.0, %v2375
        %v2377 = vpop.f32.mrf.mxu0
        %v2378 = vpop.f32.mrf.mxu0
        %v2379 = vadd.f32 0.0, %v2378
        %v2380 = vpop.f32.mrf.mxu0
        %2381 = vmatprep.mubr.bf16.mxu0 0
        %2382 = vmatmul.mubr.bf16.gmra.mxu0 %v1126
        %v2383 = vpop.f32.mrf.mxu0
        %v2384 = vadd.f32 0.0, %v2383
        %v2385 = vpop.f32.mrf.mxu0
        %v2386 = vpop.f32.mrf.mxu0
        %v2387 = vadd.f32 0.0, %v2386
        %v2388 = vpop.f32.mrf.mxu0
        %2389 = vmatprep.mubr.bf16.mxu0 0
        %2390 = vmatmul.mubr.bf16.gmra.mxu0 %v1129
        %v2391 = vpop.f32.mrf.mxu0
        %v2392 = vadd.f32 0.0, %v2391
        %v2393 = vpop.f32.mrf.mxu0
        %v2394 = vpop.f32.mrf.mxu0
        %v2395 = vadd.f32 0.0, %v2394
        %v2396 = vpop.f32.mrf.mxu0
        %2397 = vmatprep.mubr.bf16.mxu0 0
        %2398 = vmatmul.mubr.bf16.gmra.mxu0 %v1132
        %v2399 = vpop.f32.mrf.mxu0
        %v2400 = vadd.f32 0.0, %v2399
        %v2401 = vpop.f32.mrf.mxu0
        %v2402 = vpop.f32.mrf.mxu0
        %v2403 = vadd.f32 0.0, %v2402
        %v2404 = vpop.f32.mrf.mxu0
        %2405 = vmatprep.mubr.bf16.mxu0 0
        %2406 = vmatmul.mubr.bf16.gmra.mxu0 %v1135
        %v2407 = vpop.f32.mrf.mxu0
        %v2408 = vadd.f32 0.0, %v2407
        %v2409 = vpop.f32.mrf.mxu0
        %v2410 = vpop.f32.mrf.mxu0
        %v2411 = vadd.f32 0.0, %v2410
        %v2412 = vpop.f32.mrf.mxu0
        %2413 = vmatprep.mubr.bf16.mxu0 0
        %2414 = vmatmul.mubr.bf16.gmra.mxu0 %v1138
        %v2415 = vpop.f32.mrf.mxu0
        %v2416 = vadd.f32 0.0, %v2415
        %v2417 = vpop.f32.mrf.mxu0
        %v2418 = vpop.f32.mrf.mxu0
        %v2419 = vadd.f32 0.0, %v2418
        %v2420 = vpop.f32.mrf.mxu0
        %2421 = vmatprep.mubr.bf16.mxu0 0
        %2422 = vmatmul.mubr.bf16.gmra.mxu0 %v1141
        %v2423 = vpop.f32.mrf.mxu0
        %v2424 = vadd.f32 0.0, %v2423
        %v2425 = vpop.f32.mrf.mxu0
        %v2426 = vpop.f32.mrf.mxu0
        %v2427 = vadd.f32 0.0, %v2426
        %v2428 = vpop.f32.mrf.mxu0
        %2429 = vmatprep.mubr.bf16.mxu0 0
        %2430 = vmatmul.mubr.bf16.gmra.mxu0 %v1144
        %v2431 = vpop.f32.mrf.mxu0
        %v2432 = vadd.f32 0.0, %v2431
        %v2433 = vpop.f32.mrf.mxu0
        %v2434 = vpop.f32.mrf.mxu0
        %v2435 = vadd.f32 0.0, %v2434
        %v2436 = vpop.f32.mrf.mxu0
        %2437 = vmatprep.mubr.bf16.mxu0 0
        %2438 = vmatmul.mubr.bf16.gmra.mxu0 %v1147
        %v2439 = vpop.f32.mrf.mxu0
        %v2440 = vadd.f32 0.0, %v2439
        %v2441 = vpop.f32.mrf.mxu0
        %v2442 = vpop.f32.mrf.mxu0
        %v2443 = vadd.f32 0.0, %v2442
        %v2444 = vpop.f32.mrf.mxu0
        %2445 = vmatprep.mubr.bf16.mxu0 0
        %2446 = vmatmul.mubr.bf16.gmra.mxu0 %v1150
        %v2447 = vpop.f32.mrf.mxu0
        %v2448 = vadd.f32 0.0, %v2447
        %v2449 = vpop.f32.mrf.mxu0
        %v2450 = vpop.f32.mrf.mxu0
        %v2451 = vadd.f32 0.0, %v2450
        %v2452 = vpop.f32.mrf.mxu0
        %2453 = vmatprep.mubr.bf16.mxu0 0
        %2454 = vmatmul.mubr.bf16.gmra.mxu0 %v1153
        %v2455 = vpop.f32.mrf.mxu0
        %v2456 = vadd.f32 0.0, %v2455
        %v2457 = vpop.f32.mrf.mxu0
        %v2458 = vpop.f32.mrf.mxu0
        %v2459 = vadd.f32 0.0, %v2458
        %v2460 = vpop.f32.mrf.mxu0
        %2461 = vmatprep.mubr.bf16.mxu0 0
        %2462 = vmatmul.mubr.bf16.gmra.mxu0 %v1156
        %v2463 = vpop.f32.mrf.mxu0
        %v2464 = vadd.f32 0.0, %v2463
        %v2465 = vpop.f32.mrf.mxu0
        %v2466 = vpop.f32.mrf.mxu0
        %v2467 = vadd.f32 0.0, %v2466
        %v2468 = vpop.f32.mrf.mxu0
        %2469 = vmatprep.mubr.bf16.mxu0 0
        %2470 = vmatmul.mubr.bf16.gmra.mxu0 %v1159
        %v2471 = vpop.f32.mrf.mxu0
        %v2472 = vadd.f32 0.0, %v2471
        %v2473 = vpop.f32.mrf.mxu0
        %v2474 = vpop.f32.mrf.mxu0
        %v2475 = vadd.f32 0.0, %v2474
        %v2476 = vpop.f32.mrf.mxu0
        %2477 = vmatprep.mubr.bf16.mxu0 0
        %2478 = vmatmul.mubr.bf16.gmra.mxu0 %v2323
        %v2479 = vpop.f32.mrf.mxu0
        %v2480 = vadd.f32 0.0, %v2479
        %v2481 = vpop.f32.mrf.mxu0
        %v2482 = vpop.f32.mrf.mxu0
        %v2483 = vadd.f32 0.0, %v2482
        %v2484 = vpop.f32.mrf.mxu0
        %2485 = vdwg.mxu0
        %v2486 = vadd.f32 %v2246, %v2360
        %v2487 = vadd.f32 %v2247, %v2363
        %v2488 = vadd.f32 %v2248, %v2368
        %v2489 = vadd.f32 %v2249, %v2371
        %v2490 = vadd.f32 %v2250, %v2376
        %v2491 = vadd.f32 %v2251, %v2379
        %v2492 = vadd.f32 %v2252, %v2384
        %v2493 = vadd.f32 %v2253, %v2387
        %v2494 = vadd.f32 %v2254, %v2392
        %v2495 = vadd.f32 %v2255, %v2395
        %v2496 = vadd.f32 %v2256, %v2400
        %v2497 = vadd.f32 %v2257, %v2403
        %v2498 = vadd.f32 %v2258, %v2408
        %v2499 = vadd.f32 %v2259, %v2411
        %v2500 = vadd.f32 %v2260, %v2416
        %v2501 = vadd.f32 %v2261, %v2419
        %v2502 = vadd.f32 %v2262, %v2424
        %v2503 = vadd.f32 %v2263, %v2427
        %v2504 = vadd.f32 %v2264, %v2432
        %v2505 = vadd.f32 %v2265, %v2435
        %v2506 = vadd.f32 %v2266, %v2440
        %v2507 = vadd.f32 %v2267, %v2443
        %v2508 = vadd.f32 %v2268, %v2448
        %v2509 = vadd.f32 %v2269, %v2451
        %v2510 = vadd.f32 %v2270, %v2456
        %v2511 = vadd.f32 %v2271, %v2459
        %v2512 = vadd.f32 %v2272, %v2464
        %v2513 = vadd.f32 %v2273, %v2467
        %v2514 = vadd.f32 %v2274, %v2472
        %v2515 = vadd.f32 %v2275, %v2475
        %v2516 = vadd.f32 %v2276, %v2480
        %v2517 = vadd.f32 %v2277, %v2483
        %v2519 = vrot.slane %v651, 5
        %v2520 = vrot.slane %v2519, 4
        %v2521 = vrot.slane %v652, 5
        %v2522 = vsel %vm1641, %v2520, %v2521
        %v2523 = vrot.slane %v2521, 4
        %v2524 = vrot.slane %v653, 5
        %v2525 = vsel %vm1641, %v2523, %v2524
        %s2526 = scalar_lea.vmem %s2, 80
        %v2527 = vld [vmem:[%s2526] sm:$0xf]
        %v2528 = vld [vmem:[%s2526 + $0x4] sm:$0xf]
        %v2529 = vld [vmem:[%s2526 + $0x8] sm:$0xf]
        %v2530 = vld [vmem:[%s2526 + $0xc] sm:$0xf]
        %v2531 = vunpack.c.l.b16 %v2522
        %v2532 = vunpack.c.l.b16 %v2525
        %v2533 = vpack.c.b16 %v2532, %v2531
        %v2538 = vunpack.c.l.b16 %v2527
        %v2539 = vunpack.c.l.b16 %v2528
        %v2540 = vunpack.c.l.b16 %v2529
        %v2541 = vunpack.c.l.b16 %v2530
        %v2542 = vpack.c.b16 %v2539, %v2538
        %v2543 = vpack.c.b16 %v2541, %v2540
        %v2547 = vsel %vm415, %v2533, 0
        %2549 = vmatprep.subr.bf16.mxu0 0
        %2550 = vmatpush1.bf16.msra.mxu0 0
        %2551 = vmatprep.subr.bf16.mxu0 0
        %2552 = vmatpush1.bf16.msra.mxu0 0
        %2553 = vmatprep.subr.bf16.mxu0 0
        %2554 = vmatpush1.bf16.msra.mxu0 0
        %2555 = vmatprep.subr.bf16.mxu0 0
        %2556 = vmatpush1.bf16.msra.mxu0 0
        %2557 = vmatprep.subr.bf16.mxu0 0
        %2558 = vmatpush1.bf16.msra.mxu0 0
        %2559 = vmatprep.subr.bf16.mxu0 0
        %2560 = vmatpush1.bf16.msra.mxu0 0
        %2561 = vmatprep.subr.bf16.mxu0 0
        %2562 = vmatpush1.bf16.msra.mxu0 %v2543
        %2563 = vmatprep.subr.bf16.mxu0 0
        %2564 = vmatpush1.bf16.msra.mxu0 %v2542
        %2565 = vmatprep.subr.bf16.mxu0 0
        %2566 = vmatpush2.bf16.msra.mxu0 0
        %2567 = vmatprep.subr.bf16.mxu0 0
        %2568 = vmatpush2.bf16.msra.mxu0 0
        %2569 = vmatprep.subr.bf16.mxu0 0
        %2570 = vmatpush2.bf16.msra.mxu0 0
        %2571 = vmatprep.subr.bf16.mxu0 0
        %2572 = vmatpush2.bf16.msra.mxu0 0
        %2573 = vmatprep.subr.bf16.mxu0 0
        %2574 = vmatpush2.bf16.msra.mxu0 0
        %2575 = vmatprep.subr.bf16.mxu0 0
        %2576 = vmatpush2.bf16.msra.mxu0 0
        %2577 = vmatprep.subr.bf16.mxu0 0
        %2578 = vmatpush2.bf16.msra.mxu0 0
        %2579 = vmatprep.subr.bf16.mxu0 0
        %2580 = vmatpush2.bf16.msra.mxu0 0
        %2581 = vmatprep.mubr.bf16.mxu0 0
        %2582 = vmatmul.mubr.bf16.gmra.mxu0 %v1823
        %v2583 = vpop.f32.mrf.mxu0
        %v2584 = vadd.f32 0.0, %v2583
        %v2585 = vpop.f32.mrf.mxu0
        %v2586 = vpop.f32.mrf.mxu0
        %v2587 = vadd.f32 0.0, %v2586
        %v2588 = vpop.f32.mrf.mxu0
        %2589 = vmatprep.mubr.bf16.mxu0 0
        %2590 = vmatmul.mubr.bf16.gmra.mxu0 %v1826
        %v2591 = vpop.f32.mrf.mxu0
        %v2592 = vadd.f32 0.0, %v2591
        %v2593 = vpop.f32.mrf.mxu0
        %v2594 = vpop.f32.mrf.mxu0
        %v2595 = vadd.f32 0.0, %v2594
        %v2596 = vpop.f32.mrf.mxu0
        %2597 = vmatprep.mubr.bf16.mxu0 0
        %2598 = vmatmul.mubr.bf16.gmra.mxu0 %v1829
        %v2599 = vpop.f32.mrf.mxu0
        %v2600 = vadd.f32 0.0, %v2599
        %v2601 = vpop.f32.mrf.mxu0
        %v2602 = vpop.f32.mrf.mxu0
        %v2603 = vadd.f32 0.0, %v2602
        %v2604 = vpop.f32.mrf.mxu0
        %2605 = vmatprep.mubr.bf16.mxu0 0
        %2606 = vmatmul.mubr.bf16.gmra.mxu0 %v1832
        %v2607 = vpop.f32.mrf.mxu0
        %v2608 = vadd.f32 0.0, %v2607
        %v2609 = vpop.f32.mrf.mxu0
        %v2610 = vpop.f32.mrf.mxu0
        %v2611 = vadd.f32 0.0, %v2610
        %v2612 = vpop.f32.mrf.mxu0
        %2613 = vmatprep.mubr.bf16.mxu0 0
        %2614 = vmatmul.mubr.bf16.gmra.mxu0 %v1835
        %v2615 = vpop.f32.mrf.mxu0
        %v2616 = vadd.f32 0.0, %v2615
        %v2617 = vpop.f32.mrf.mxu0
        %v2618 = vpop.f32.mrf.mxu0
        %v2619 = vadd.f32 0.0, %v2618
        %v2620 = vpop.f32.mrf.mxu0
        %2621 = vmatprep.mubr.bf16.mxu0 0
        %2622 = vmatmul.mubr.bf16.gmra.mxu0 %v1838
        %v2623 = vpop.f32.mrf.mxu0
        %v2624 = vadd.f32 0.0, %v2623
        %v2625 = vpop.f32.mrf.mxu0
        %v2626 = vpop.f32.mrf.mxu0
        %v2627 = vadd.f32 0.0, %v2626
        %v2628 = vpop.f32.mrf.mxu0
        %2629 = vmatprep.mubr.bf16.mxu0 0
        %2630 = vmatmul.mubr.bf16.gmra.mxu0 %v1841
        %v2631 = vpop.f32.mrf.mxu0
        %v2632 = vadd.f32 0.0, %v2631
        %v2633 = vpop.f32.mrf.mxu0
        %v2634 = vpop.f32.mrf.mxu0
        %v2635 = vadd.f32 0.0, %v2634
        %v2636 = vpop.f32.mrf.mxu0
        %2637 = vmatprep.mubr.bf16.mxu0 0
        %2638 = vmatmul.mubr.bf16.gmra.mxu0 %v1844
        %v2639 = vpop.f32.mrf.mxu0
        %v2640 = vadd.f32 0.0, %v2639
        %v2641 = vpop.f32.mrf.mxu0
        %v2642 = vpop.f32.mrf.mxu0
        %v2643 = vadd.f32 0.0, %v2642
        %v2644 = vpop.f32.mrf.mxu0
        %2645 = vmatprep.mubr.bf16.mxu0 0
        %2646 = vmatmul.mubr.bf16.gmra.mxu0 %v1847
        %v2647 = vpop.f32.mrf.mxu0
        %v2648 = vadd.f32 0.0, %v2647
        %v2649 = vpop.f32.mrf.mxu0
        %v2650 = vpop.f32.mrf.mxu0
        %v2651 = vadd.f32 0.0, %v2650
        %v2652 = vpop.f32.mrf.mxu0
        %2653 = vmatprep.mubr.bf16.mxu0 0
        %2654 = vmatmul.mubr.bf16.gmra.mxu0 %v1850
        %v2655 = vpop.f32.mrf.mxu0
        %v2656 = vadd.f32 0.0, %v2655
        %v2657 = vpop.f32.mrf.mxu0
        %v2658 = vpop.f32.mrf.mxu0
        %v2659 = vadd.f32 0.0, %v2658
        %v2660 = vpop.f32.mrf.mxu0
        %2661 = vmatprep.mubr.bf16.mxu0 0
        %2662 = vmatmul.mubr.bf16.gmra.mxu0 %v1853
        %v2663 = vpop.f32.mrf.mxu0
        %v2664 = vadd.f32 0.0, %v2663
        %v2665 = vpop.f32.mrf.mxu0
        %v2666 = vpop.f32.mrf.mxu0
        %v2667 = vadd.f32 0.0, %v2666
        %v2668 = vpop.f32.mrf.mxu0
        %2669 = vmatprep.mubr.bf16.mxu0 0
        %2670 = vmatmul.mubr.bf16.gmra.mxu0 %v1856
        %v2671 = vpop.f32.mrf.mxu0
        %v2672 = vadd.f32 0.0, %v2671
        %v2673 = vpop.f32.mrf.mxu0
        %v2674 = vpop.f32.mrf.mxu0
        %v2675 = vadd.f32 0.0, %v2674
        %v2676 = vpop.f32.mrf.mxu0
        %2677 = vmatprep.mubr.bf16.mxu0 0
        %2678 = vmatmul.mubr.bf16.gmra.mxu0 %v1859
        %v2679 = vpop.f32.mrf.mxu0
        %v2680 = vadd.f32 0.0, %v2679
        %v2681 = vpop.f32.mrf.mxu0
        %v2682 = vpop.f32.mrf.mxu0
        %v2683 = vadd.f32 0.0, %v2682
        %v2684 = vpop.f32.mrf.mxu0
        %2685 = vmatprep.mubr.bf16.mxu0 0
        %2686 = vmatmul.mubr.bf16.gmra.mxu0 %v1862
        %v2687 = vpop.f32.mrf.mxu0
        %v2688 = vadd.f32 0.0, %v2687
        %v2689 = vpop.f32.mrf.mxu0
        %v2690 = vpop.f32.mrf.mxu0
        %v2691 = vadd.f32 0.0, %v2690
        %v2692 = vpop.f32.mrf.mxu0
        %2693 = vmatprep.mubr.bf16.mxu0 0
        %2694 = vmatmul.mubr.bf16.gmra.mxu0 %v1865
        %v2695 = vpop.f32.mrf.mxu0
        %v2696 = vadd.f32 0.0, %v2695
        %v2697 = vpop.f32.mrf.mxu0
        %v2698 = vpop.f32.mrf.mxu0
        %v2699 = vadd.f32 0.0, %v2698
        %v2700 = vpop.f32.mrf.mxu0
        %2701 = vmatprep.mubr.bf16.mxu0 0
        %2702 = vmatmul.mubr.bf16.gmra.mxu0 %v2547
        %v2703 = vpop.f32.mrf.mxu0
        %v2704 = vadd.f32 0.0, %v2703
        %v2705 = vpop.f32.mrf.mxu0
        %v2706 = vpop.f32.mrf.mxu0
        %v2707 = vadd.f32 0.0, %v2706
        %v2708 = vpop.f32.mrf.mxu0
        %2709 = vdwg.mxu0
        %v2710 = vadd.f32 %v2486, %v2584
        %v2711 = vadd.f32 %v2487, %v2587
        %v2712 = vadd.f32 %v2488, %v2592
        %v2713 = vadd.f32 %v2489, %v2595
        %v2714 = vadd.f32 %v2490, %v2600
        %v2715 = vadd.f32 %v2491, %v2603
        %v2716 = vadd.f32 %v2492, %v2608
        %v2717 = vadd.f32 %v2493, %v2611
        %v2718 = vadd.f32 %v2494, %v2616
        %v2719 = vadd.f32 %v2495, %v2619
        %v2720 = vadd.f32 %v2496, %v2624
        %v2721 = vadd.f32 %v2497, %v2627
        %v2722 = vadd.f32 %v2498, %v2632
        %v2723 = vadd.f32 %v2499, %v2635
        %v2724 = vadd.f32 %v2500, %v2640
        %v2725 = vadd.f32 %v2501, %v2643
        %v2726 = vadd.f32 %v2502, %v2648
        %v2727 = vadd.f32 %v2503, %v2651
        %v2728 = vadd.f32 %v2504, %v2656
        %v2729 = vadd.f32 %v2505, %v2659
        %v2730 = vadd.f32 %v2506, %v2664
        %v2731 = vadd.f32 %v2507, %v2667
        %v2732 = vadd.f32 %v2508, %v2672
        %v2733 = vadd.f32 %v2509, %v2675
        %v2734 = vadd.f32 %v2510, %v2680
        %v2735 = vadd.f32 %v2511, %v2683
        %v2736 = vadd.f32 %v2512, %v2688
        %v2737 = vadd.f32 %v2513, %v2691
        %v2738 = vadd.f32 %v2514, %v2696
        %v2739 = vadd.f32 %v2515, %v2699
        %v2740 = vadd.f32 %v2516, %v2704
        %v2741 = vadd.f32 %v2517, %v2707
        %s2742 = scalar_lea.vmem %s2, 96
        %v2743 = vld [vmem:[%s2742] sm:$0xf]
        %v2744 = vld [vmem:[%s2742 + $0x4] sm:$0xf]
        %v2745 = vld [vmem:[%s2742 + $0x8] sm:$0xf]
        %v2746 = vld [vmem:[%s2742 + $0xc] sm:$0xf]
        %v2749 = vunpack.c.l.b16 %v654
        %v2750 = vunpack.c.l.b16 %v655
        %v2751 = vpack.c.b16 %v2750, %v2749
        %v2756 = vunpack.c.l.b16 %v2743
        %v2757 = vunpack.c.l.b16 %v2744
        %v2758 = vunpack.c.l.b16 %v2745
        %v2759 = vunpack.c.l.b16 %v2746
        %v2760 = vpack.c.b16 %v2757, %v2756
        %v2761 = vpack.c.b16 %v2759, %v2758
        %v2765 = vsel %vm415, %v2751, 0
        %2767 = vmatprep.subr.bf16.mxu0 0
        %2768 = vmatpush1.bf16.msra.mxu0 0
        %2769 = vmatprep.subr.bf16.mxu0 0
        %2770 = vmatpush1.bf16.msra.mxu0 0
        %2771 = vmatprep.subr.bf16.mxu0 0
        %2772 = vmatpush1.bf16.msra.mxu0 0
        %2773 = vmatprep.subr.bf16.mxu0 0
        %2774 = vmatpush1.bf16.msra.mxu0 0
        %2775 = vmatprep.subr.bf16.mxu0 0
        %2776 = vmatpush1.bf16.msra.mxu0 0
        %2777 = vmatprep.subr.bf16.mxu0 0
        %2778 = vmatpush1.bf16.msra.mxu0 0
        %2779 = vmatprep.subr.bf16.mxu0 0
        %2780 = vmatpush1.bf16.msra.mxu0 %v2761
        %2781 = vmatprep.subr.bf16.mxu0 0
        %2782 = vmatpush1.bf16.msra.mxu0 %v2760
        %2783 = vmatprep.subr.bf16.mxu0 0
        %2784 = vmatpush2.bf16.msra.mxu0 0
        %2785 = vmatprep.subr.bf16.mxu0 0
        %2786 = vmatpush2.bf16.msra.mxu0 0
        %2787 = vmatprep.subr.bf16.mxu0 0
        %2788 = vmatpush2.bf16.msra.mxu0 0
        %2789 = vmatprep.subr.bf16.mxu0 0
        %2790 = vmatpush2.bf16.msra.mxu0 0
        %2791 = vmatprep.subr.bf16.mxu0 0
        %2792 = vmatpush2.bf16.msra.mxu0 0
        %2793 = vmatprep.subr.bf16.mxu0 0
        %2794 = vmatpush2.bf16.msra.mxu0 0
        %2795 = vmatprep.subr.bf16.mxu0 0
        %2796 = vmatpush2.bf16.msra.mxu0 0
        %2797 = vmatprep.subr.bf16.mxu0 0
        %2798 = vmatpush2.bf16.msra.mxu0 0
        %2799 = vmatprep.mubr.bf16.mxu0 0
        %2800 = vmatmul.mubr.bf16.gmra.mxu0 %v1421
        %v2801 = vpop.f32.mrf.mxu0
        %v2802 = vadd.f32 0.0, %v2801
        %v2803 = vpop.f32.mrf.mxu0
        %v2804 = vpop.f32.mrf.mxu0
        %v2805 = vadd.f32 0.0, %v2804
        %v2806 = vpop.f32.mrf.mxu0
        %2807 = vmatprep.mubr.bf16.mxu0 0
        %2808 = vmatmul.mubr.bf16.gmra.mxu0 %v1424
        %v2809 = vpop.f32.mrf.mxu0
        %v2810 = vadd.f32 0.0, %v2809
        %v2811 = vpop.f32.mrf.mxu0
        %v2812 = vpop.f32.mrf.mxu0
        %v2813 = vadd.f32 0.0, %v2812
        %v2814 = vpop.f32.mrf.mxu0
        %2815 = vmatprep.mubr.bf16.mxu0 0
        %2816 = vmatmul.mubr.bf16.gmra.mxu0 %v1427
        %v2817 = vpop.f32.mrf.mxu0
        %v2818 = vadd.f32 0.0, %v2817
        %v2819 = vpop.f32.mrf.mxu0
        %v2820 = vpop.f32.mrf.mxu0
        %v2821 = vadd.f32 0.0, %v2820
        %v2822 = vpop.f32.mrf.mxu0
        %2823 = vmatprep.mubr.bf16.mxu0 0
        %2824 = vmatmul.mubr.bf16.gmra.mxu0 %v1430
        %v2825 = vpop.f32.mrf.mxu0
        %v2826 = vadd.f32 0.0, %v2825
        %v2827 = vpop.f32.mrf.mxu0
        %v2828 = vpop.f32.mrf.mxu0
        %v2829 = vadd.f32 0.0, %v2828
        %v2830 = vpop.f32.mrf.mxu0
        %2831 = vmatprep.mubr.bf16.mxu0 0
        %2832 = vmatmul.mubr.bf16.gmra.mxu0 %v1433
        %v2833 = vpop.f32.mrf.mxu0
        %v2834 = vadd.f32 0.0, %v2833
        %v2835 = vpop.f32.mrf.mxu0
        %v2836 = vpop.f32.mrf.mxu0
        %v2837 = vadd.f32 0.0, %v2836
        %v2838 = vpop.f32.mrf.mxu0
        %2839 = vmatprep.mubr.bf16.mxu0 0
        %2840 = vmatmul.mubr.bf16.gmra.mxu0 %v1436
        %v2841 = vpop.f32.mrf.mxu0
        %v2842 = vadd.f32 0.0, %v2841
        %v2843 = vpop.f32.mrf.mxu0
        %v2844 = vpop.f32.mrf.mxu0
        %v2845 = vadd.f32 0.0, %v2844
        %v2846 = vpop.f32.mrf.mxu0
        %2847 = vmatprep.mubr.bf16.mxu0 0
        %2848 = vmatmul.mubr.bf16.gmra.mxu0 %v1439
        %v2849 = vpop.f32.mrf.mxu0
        %v2850 = vadd.f32 0.0, %v2849
        %v2851 = vpop.f32.mrf.mxu0
        %v2852 = vpop.f32.mrf.mxu0
        %v2853 = vadd.f32 0.0, %v2852
        %v2854 = vpop.f32.mrf.mxu0
        %2855 = vmatprep.mubr.bf16.mxu0 0
        %2856 = vmatmul.mubr.bf16.gmra.mxu0 %v1442
        %v2857 = vpop.f32.mrf.mxu0
        %v2858 = vadd.f32 0.0, %v2857
        %v2859 = vpop.f32.mrf.mxu0
        %v2860 = vpop.f32.mrf.mxu0
        %v2861 = vadd.f32 0.0, %v2860
        %v2862 = vpop.f32.mrf.mxu0
        %2863 = vmatprep.mubr.bf16.mxu0 0
        %2864 = vmatmul.mubr.bf16.gmra.mxu0 %v1445
        %v2865 = vpop.f32.mrf.mxu0
        %v2866 = vadd.f32 0.0, %v2865
        %v2867 = vpop.f32.mrf.mxu0
        %v2868 = vpop.f32.mrf.mxu0
        %v2869 = vadd.f32 0.0, %v2868
        %v2870 = vpop.f32.mrf.mxu0
        %2871 = vmatprep.mubr.bf16.mxu0 0
        %2872 = vmatmul.mubr.bf16.gmra.mxu0 %v1448
        %v2873 = vpop.f32.mrf.mxu0
        %v2874 = vadd.f32 0.0, %v2873
        %v2875 = vpop.f32.mrf.mxu0
        %v2876 = vpop.f32.mrf.mxu0
        %v2877 = vadd.f32 0.0, %v2876
        %v2878 = vpop.f32.mrf.mxu0
        %2879 = vmatprep.mubr.bf16.mxu0 0
        %2880 = vmatmul.mubr.bf16.gmra.mxu0 %v1451
        %v2881 = vpop.f32.mrf.mxu0
        %v2882 = vadd.f32 0.0, %v2881
        %v2883 = vpop.f32.mrf.mxu0
        %v2884 = vpop.f32.mrf.mxu0
        %v2885 = vadd.f32 0.0, %v2884
        %v2886 = vpop.f32.mrf.mxu0
        %2887 = vmatprep.mubr.bf16.mxu0 0
        %2888 = vmatmul.mubr.bf16.gmra.mxu0 %v1454
        %v2889 = vpop.f32.mrf.mxu0
        %v2890 = vadd.f32 0.0, %v2889
        %v2891 = vpop.f32.mrf.mxu0
        %v2892 = vpop.f32.mrf.mxu0
        %v2893 = vadd.f32 0.0, %v2892
        %v2894 = vpop.f32.mrf.mxu0
        %2895 = vmatprep.mubr.bf16.mxu0 0
        %2896 = vmatmul.mubr.bf16.gmra.mxu0 %v1457
        %v2897 = vpop.f32.mrf.mxu0
        %v2898 = vadd.f32 0.0, %v2897
        %v2899 = vpop.f32.mrf.mxu0
        %v2900 = vpop.f32.mrf.mxu0
        %v2901 = vadd.f32 0.0, %v2900
        %v2902 = vpop.f32.mrf.mxu0
        %2903 = vmatprep.mubr.bf16.mxu0 0
        %2904 = vmatmul.mubr.bf16.gmra.mxu0 %v1460
        %v2905 = vpop.f32.mrf.mxu0
        %v2906 = vadd.f32 0.0, %v2905
        %v2907 = vpop.f32.mrf.mxu0
        %v2908 = vpop.f32.mrf.mxu0
        %v2909 = vadd.f32 0.0, %v2908
        %v2910 = vpop.f32.mrf.mxu0
        %2911 = vmatprep.mubr.bf16.mxu0 0
        %2912 = vmatmul.mubr.bf16.gmra.mxu0 %v2083
        %v2913 = vpop.f32.mrf.mxu0
        %v2914 = vadd.f32 0.0, %v2913
        %v2915 = vpop.f32.mrf.mxu0
        %v2916 = vpop.f32.mrf.mxu0
        %v2917 = vadd.f32 0.0, %v2916
        %v2918 = vpop.f32.mrf.mxu0
        %2919 = vmatprep.mubr.bf16.mxu0 0
        %2920 = vmatmul.mubr.bf16.gmra.mxu0 %v2765
        %v2921 = vpop.f32.mrf.mxu0
        %v2922 = vadd.f32 0.0, %v2921
        %v2923 = vpop.f32.mrf.mxu0
        %v2924 = vpop.f32.mrf.mxu0
        %v2925 = vadd.f32 0.0, %v2924
        %v2926 = vpop.f32.mrf.mxu0
        %2927 = vdwg.mxu0
        %v2928 = vadd.f32 %v2710, %v2802
        %v2929 = vadd.f32 %v2711, %v2805
        %v2930 = vadd.f32 %v2712, %v2810
        %v2931 = vadd.f32 %v2713, %v2813
        %v2932 = vadd.f32 %v2714, %v2818
        %v2933 = vadd.f32 %v2715, %v2821
        %v2934 = vadd.f32 %v2716, %v2826
        %v2935 = vadd.f32 %v2717, %v2829
        %v2936 = vadd.f32 %v2718, %v2834
        %v2937 = vadd.f32 %v2719, %v2837
        %v2938 = vadd.f32 %v2720, %v2842
        %v2939 = vadd.f32 %v2721, %v2845
        %v2940 = vadd.f32 %v2722, %v2850
        %v2941 = vadd.f32 %v2723, %v2853
        %v2942 = vadd.f32 %v2724, %v2858
        %v2943 = vadd.f32 %v2725, %v2861
        %v2944 = vadd.f32 %v2726, %v2866
        %v2945 = vadd.f32 %v2727, %v2869
        %v2946 = vadd.f32 %v2728, %v2874
        %v2947 = vadd.f32 %v2729, %v2877
        %v2948 = vadd.f32 %v2730, %v2882
        %v2949 = vadd.f32 %v2731, %v2885
        %v2950 = vadd.f32 %v2732, %v2890
        %v2951 = vadd.f32 %v2733, %v2893
        %v2952 = vadd.f32 %v2734, %v2898
        %v2953 = vadd.f32 %v2735, %v2901
        %v2954 = vadd.f32 %v2736, %v2906
        %v2955 = vadd.f32 %v2737, %v2909
        %v2956 = vadd.f32 %v2738, %v2914
        %v2957 = vadd.f32 %v2739, %v2917
        %v2958 = vadd.f32 %v2740, %v2922
        %v2959 = vadd.f32 %v2741, %v2925
        %v2961 = vshrl.u32 %v654, 16
        %v2963 = vrot.slane %v2961, 4
        %v2964 = vshll.u32 %v654, 16
        %v2966 = vrot.slane %v2964, 5
        %v2967 = vor.u32 %v2963, %v2966
        %v2968 = vrot.slane %v2967, 4
        %v2970 = vshll.u32 %v655, 16
        %v2972 = vrot.slane %v2970, 5
        %v2973 = vsel %vm663, %v2968, %v2972
        %v2974 = vshrl.u32 %v655, 16
        %v2976 = vrot.slane %v2974, 4
        %v2977 = vor.u32 %v2976, %v2972
        %v2978 = vrot.slane %v2977, 4
        %v2980 = vshll.u32 %v656, 16
        %v2982 = vrot.slane %v2980, 5
        %v2983 = vsel %vm663, %v2978, %v2982
        %s2984 = scalar_lea.vmem %s2, 112
        %v2985 = vld [vmem:[%s2984] sm:$0xf]
        %v2986 = vld [vmem:[%s2984 + $0x4] sm:$0xf]
        %v2987 = vld [vmem:[%s2984 + $0x8] sm:$0xf]
        %v2988 = vld [vmem:[%s2984 + $0xc] sm:$0xf]
        %v2989 = vunpack.c.l.b16 %v2973
        %v2990 = vunpack.c.l.b16 %v2983
        %v2991 = vpack.c.b16 %v2990, %v2989
        %v2996 = vunpack.c.l.b16 %v2985
        %v2997 = vunpack.c.l.b16 %v2986
        %v2998 = vunpack.c.l.b16 %v2987
        %v2999 = vunpack.c.l.b16 %v2988
        %v3000 = vpack.c.b16 %v2997, %v2996
        %v3001 = vpack.c.b16 %v2999, %v2998
        %v3005 = vsel %vm415, %v2991, 0
        %3007 = vmatprep.subr.bf16.mxu0 0
        %3008 = vmatpush1.bf16.msra.mxu0 0
        %3009 = vmatprep.subr.bf16.mxu0 0
        %3010 = vmatpush1.bf16.msra.mxu0 0
        %3011 = vmatprep.subr.bf16.mxu0 0
        %3012 = vmatpush1.bf16.msra.mxu0 0
        %3013 = vmatprep.subr.bf16.mxu0 0
        %3014 = vmatpush1.bf16.msra.mxu0 0
        %3015 = vmatprep.subr.bf16.mxu0 0
        %3016 = vmatpush1.bf16.msra.mxu0 0
        %3017 = vmatprep.subr.bf16.mxu0 0
        %3018 = vmatpush1.bf16.msra.mxu0 0
        %3019 = vmatprep.subr.bf16.mxu0 0
        %3020 = vmatpush1.bf16.msra.mxu0 %v3001
        %3021 = vmatprep.subr.bf16.mxu0 0
        %3022 = vmatpush1.bf16.msra.mxu0 %v3000
        %3023 = vmatprep.subr.bf16.mxu0 0
        %3024 = vmatpush2.bf16.msra.mxu0 0
        %3025 = vmatprep.subr.bf16.mxu0 0
        %3026 = vmatpush2.bf16.msra.mxu0 0
        %3027 = vmatprep.subr.bf16.mxu0 0
        %3028 = vmatpush2.bf16.msra.mxu0 0
        %3029 = vmatprep.subr.bf16.mxu0 0
        %3030 = vmatpush2.bf16.msra.mxu0 0
        %3031 = vmatprep.subr.bf16.mxu0 0
        %3032 = vmatpush2.bf16.msra.mxu0 0
        %3033 = vmatprep.subr.bf16.mxu0 0
        %3034 = vmatpush2.bf16.msra.mxu0 0
        %3035 = vmatprep.subr.bf16.mxu0 0
        %3036 = vmatpush2.bf16.msra.mxu0 0
        %3037 = vmatprep.subr.bf16.mxu0 0
        %3038 = vmatpush2.bf16.msra.mxu0 0
        %3039 = vmatprep.mubr.bf16.mxu0 0
        %3040 = vmatmul.mubr.bf16.gmra.mxu0 %v1120
        %v3041 = vpop.f32.mrf.mxu0
        %v3042 = vadd.f32 0.0, %v3041
        %v3043 = vpop.f32.mrf.mxu0
        %v3044 = vpop.f32.mrf.mxu0
        %v3045 = vadd.f32 0.0, %v3044
        %v3046 = vpop.f32.mrf.mxu0
        %3047 = vmatprep.mubr.bf16.mxu0 0
        %3048 = vmatmul.mubr.bf16.gmra.mxu0 %v1123
        %v3049 = vpop.f32.mrf.mxu0
        %v3050 = vadd.f32 0.0, %v3049
        %v3051 = vpop.f32.mrf.mxu0
        %v3052 = vpop.f32.mrf.mxu0
        %v3053 = vadd.f32 0.0, %v3052
        %v3054 = vpop.f32.mrf.mxu0
        %3055 = vmatprep.mubr.bf16.mxu0 0
        %3056 = vmatmul.mubr.bf16.gmra.mxu0 %v1126
        %v3057 = vpop.f32.mrf.mxu0
        %v3058 = vadd.f32 0.0, %v3057
        %v3059 = vpop.f32.mrf.mxu0
        %v3060 = vpop.f32.mrf.mxu0
        %v3061 = vadd.f32 0.0, %v3060
        %v3062 = vpop.f32.mrf.mxu0
        %3063 = vmatprep.mubr.bf16.mxu0 0
        %3064 = vmatmul.mubr.bf16.gmra.mxu0 %v1129
        %v3065 = vpop.f32.mrf.mxu0
        %v3066 = vadd.f32 0.0, %v3065
        %v3067 = vpop.f32.mrf.mxu0
        %v3068 = vpop.f32.mrf.mxu0
        %v3069 = vadd.f32 0.0, %v3068
        %v3070 = vpop.f32.mrf.mxu0
        %3071 = vmatprep.mubr.bf16.mxu0 0
        %3072 = vmatmul.mubr.bf16.gmra.mxu0 %v1132
        %v3073 = vpop.f32.mrf.mxu0
        %v3074 = vadd.f32 0.0, %v3073
        %v3075 = vpop.f32.mrf.mxu0
        %v3076 = vpop.f32.mrf.mxu0
        %v3077 = vadd.f32 0.0, %v3076
        %v3078 = vpop.f32.mrf.mxu0
        %3079 = vmatprep.mubr.bf16.mxu0 0
        %3080 = vmatmul.mubr.bf16.gmra.mxu0 %v1135
        %v3081 = vpop.f32.mrf.mxu0
        %v3082 = vadd.f32 0.0, %v3081
        %v3083 = vpop.f32.mrf.mxu0
        %v3084 = vpop.f32.mrf.mxu0
        %v3085 = vadd.f32 0.0, %v3084
        %v3086 = vpop.f32.mrf.mxu0
        %3087 = vmatprep.mubr.bf16.mxu0 0
        %3088 = vmatmul.mubr.bf16.gmra.mxu0 %v1138
        %v3089 = vpop.f32.mrf.mxu0
        %v3090 = vadd.f32 0.0, %v3089
        %v3091 = vpop.f32.mrf.mxu0
        %v3092 = vpop.f32.mrf.mxu0
        %v3093 = vadd.f32 0.0, %v3092
        %v3094 = vpop.f32.mrf.mxu0
        %3095 = vmatprep.mubr.bf16.mxu0 0
        %3096 = vmatmul.mubr.bf16.gmra.mxu0 %v1141
        %v3097 = vpop.f32.mrf.mxu0
        %v3098 = vadd.f32 0.0, %v3097
        %v3099 = vpop.f32.mrf.mxu0
        %v3100 = vpop.f32.mrf.mxu0
        %v3101 = vadd.f32 0.0, %v3100
        %v3102 = vpop.f32.mrf.mxu0
        %3103 = vmatprep.mubr.bf16.mxu0 0
        %3104 = vmatmul.mubr.bf16.gmra.mxu0 %v1144
        %v3105 = vpop.f32.mrf.mxu0
        %v3106 = vadd.f32 0.0, %v3105
        %v3107 = vpop.f32.mrf.mxu0
        %v3108 = vpop.f32.mrf.mxu0
        %v3109 = vadd.f32 0.0, %v3108
        %v3110 = vpop.f32.mrf.mxu0
        %3111 = vmatprep.mubr.bf16.mxu0 0
        %3112 = vmatmul.mubr.bf16.gmra.mxu0 %v1147
        %v3113 = vpop.f32.mrf.mxu0
        %v3114 = vadd.f32 0.0, %v3113
        %v3115 = vpop.f32.mrf.mxu0
        %v3116 = vpop.f32.mrf.mxu0
        %v3117 = vadd.f32 0.0, %v3116
        %v3118 = vpop.f32.mrf.mxu0
        %3119 = vmatprep.mubr.bf16.mxu0 0
        %3120 = vmatmul.mubr.bf16.gmra.mxu0 %v1150
        %v3121 = vpop.f32.mrf.mxu0
        %v3122 = vadd.f32 0.0, %v3121
        %v3123 = vpop.f32.mrf.mxu0
        %v3124 = vpop.f32.mrf.mxu0
        %v3125 = vadd.f32 0.0, %v3124
        %v3126 = vpop.f32.mrf.mxu0
        %3127 = vmatprep.mubr.bf16.mxu0 0
        %3128 = vmatmul.mubr.bf16.gmra.mxu0 %v1153
        %v3129 = vpop.f32.mrf.mxu0
        %v3130 = vadd.f32 0.0, %v3129
        %v3131 = vpop.f32.mrf.mxu0
        %v3132 = vpop.f32.mrf.mxu0
        %v3133 = vadd.f32 0.0, %v3132
        %v3134 = vpop.f32.mrf.mxu0
        %3135 = vmatprep.mubr.bf16.mxu0 0
        %3136 = vmatmul.mubr.bf16.gmra.mxu0 %v1156
        %v3137 = vpop.f32.mrf.mxu0
        %v3138 = vadd.f32 0.0, %v3137
        %v3139 = vpop.f32.mrf.mxu0
        %v3140 = vpop.f32.mrf.mxu0
        %v3141 = vadd.f32 0.0, %v3140
        %v3142 = vpop.f32.mrf.mxu0
        %3143 = vmatprep.mubr.bf16.mxu0 0
        %3144 = vmatmul.mubr.bf16.gmra.mxu0 %v1159
        %v3145 = vpop.f32.mrf.mxu0
        %v3146 = vadd.f32 0.0, %v3145
        %v3147 = vpop.f32.mrf.mxu0
        %v3148 = vpop.f32.mrf.mxu0
        %v3149 = vadd.f32 0.0, %v3148
        %v3150 = vpop.f32.mrf.mxu0
        %3151 = vmatprep.mubr.bf16.mxu0 0
        %3152 = vmatmul.mubr.bf16.gmra.mxu0 %v2323
        %v3153 = vpop.f32.mrf.mxu0
        %v3154 = vadd.f32 0.0, %v3153
        %v3155 = vpop.f32.mrf.mxu0
        %v3156 = vpop.f32.mrf.mxu0
        %v3157 = vadd.f32 0.0, %v3156
        %v3158 = vpop.f32.mrf.mxu0
        %3159 = vmatprep.mubr.bf16.mxu0 0
        %3160 = vmatmul.mubr.bf16.gmra.mxu0 %v3005
        %v3161 = vpop.f32.mrf.mxu0
        %v3162 = vadd.f32 0.0, %v3161
        %v3163 = vpop.f32.mrf.mxu0
        %v3164 = vpop.f32.mrf.mxu0
        %v3165 = vadd.f32 0.0, %v3164
        %v3166 = vpop.f32.mrf.mxu0
        %3167 = vdwg.mxu0
        %v3168 = vadd.f32 %v2928, %v3042
        %v3169 = vadd.f32 %v2929, %v3045
        %v3170 = vadd.f32 %v2930, %v3050
        %v3171 = vadd.f32 %v2931, %v3053
        %v3172 = vadd.f32 %v2932, %v3058
        %v3173 = vadd.f32 %v2933, %v3061
        %v3174 = vadd.f32 %v2934, %v3066
        %v3175 = vadd.f32 %v2935, %v3069
        %v3176 = vadd.f32 %v2936, %v3074
        %v3177 = vadd.f32 %v2937, %v3077
        %v3178 = vadd.f32 %v2938, %v3082
        %v3179 = vadd.f32 %v2939, %v3085
        %v3180 = vadd.f32 %v2940, %v3090
        %v3181 = vadd.f32 %v2941, %v3093
        %v3182 = vadd.f32 %v2942, %v3098
        %v3183 = vadd.f32 %v2943, %v3101
        %v3184 = vadd.f32 %v2944, %v3106
        %v3185 = vadd.f32 %v2945, %v3109
        %v3186 = vadd.f32 %v2946, %v3114
        %v3187 = vadd.f32 %v2947, %v3117
        %v3188 = vadd.f32 %v2948, %v3122
        %v3189 = vadd.f32 %v2949, %v3125
        %v3190 = vadd.f32 %v2950, %v3130
        %v3191 = vadd.f32 %v2951, %v3133
        %v3192 = vadd.f32 %v2952, %v3138
        %v3193 = vadd.f32 %v2953, %v3141
        %v3194 = vadd.f32 %v2954, %v3146
        %v3195 = vadd.f32 %v2955, %v3149
        %v3196 = vadd.f32 %v2956, %v3154
        %v3197 = vadd.f32 %v2957, %v3157
        %v3198 = vadd.f32 %v2958, %v3162
        %v3199 = vadd.f32 %v2959, %v3165
        %v3201 = vrot.slane %v654, 5
        %v3202 = vrot.slane %v3201, 4
        %v3203 = vrot.slane %v655, 5
        %v3204 = vsel %vm1641, %v3202, %v3203
        %v3205 = vrot.slane %v3203, 4
        %v3206 = vrot.slane %v656, 5
        %v3207 = vsel %vm1641, %v3205, %v3206
        %s3208 = scalar_lea.vmem %s2, 128
        %v3209 = vld [vmem:[%s3208] sm:$0xf]
        %v3210 = vld [vmem:[%s3208 + $0x4] sm:$0xf]
        %v3211 = vld [vmem:[%s3208 + $0x8] sm:$0xf]
        %v3212 = vld [vmem:[%s3208 + $0xc] sm:$0xf]
        %v3213 = vunpack.c.l.b16 %v3204
        %v3214 = vunpack.c.l.b16 %v3207
        %v3215 = vpack.c.b16 %v3214, %v3213
        %v3220 = vunpack.c.l.b16 %v3209
        %v3221 = vunpack.c.l.b16 %v3210
        %v3222 = vunpack.c.l.b16 %v3211
        %v3223 = vunpack.c.l.b16 %v3212
        %v3224 = vpack.c.b16 %v3221, %v3220
        %v3225 = vpack.c.b16 %v3223, %v3222
        %v3229 = vsel %vm415, %v3215, 0
        %3231 = vmatprep.subr.bf16.mxu0 0
        %3232 = vmatpush1.bf16.msra.mxu0 0
        %3233 = vmatprep.subr.bf16.mxu0 0
        %3234 = vmatpush1.bf16.msra.mxu0 0
        %3235 = vmatprep.subr.bf16.mxu0 0
        %3236 = vmatpush1.bf16.msra.mxu0 0
        %3237 = vmatprep.subr.bf16.mxu0 0
        %3238 = vmatpush1.bf16.msra.mxu0 0
        %3239 = vmatprep.subr.bf16.mxu0 0
        %3240 = vmatpush1.bf16.msra.mxu0 0
        %3241 = vmatprep.subr.bf16.mxu0 0
        %3242 = vmatpush1.bf16.msra.mxu0 0
        %3243 = vmatprep.subr.bf16.mxu0 0
        %3244 = vmatpush1.bf16.msra.mxu0 %v3225
        %3245 = vmatprep.subr.bf16.mxu0 0
        %3246 = vmatpush1.bf16.msra.mxu0 %v3224
        %3247 = vmatprep.subr.bf16.mxu0 0
        %3248 = vmatpush2.bf16.msra.mxu0 0
        %3249 = vmatprep.subr.bf16.mxu0 0
        %3250 = vmatpush2.bf16.msra.mxu0 0
        %3251 = vmatprep.subr.bf16.mxu0 0
        %3252 = vmatpush2.bf16.msra.mxu0 0
        %3253 = vmatprep.subr.bf16.mxu0 0
        %3254 = vmatpush2.bf16.msra.mxu0 0
        %3255 = vmatprep.subr.bf16.mxu0 0
        %3256 = vmatpush2.bf16.msra.mxu0 0
        %3257 = vmatprep.subr.bf16.mxu0 0
        %3258 = vmatpush2.bf16.msra.mxu0 0
        %3259 = vmatprep.subr.bf16.mxu0 0
        %3260 = vmatpush2.bf16.msra.mxu0 0
        %3261 = vmatprep.subr.bf16.mxu0 0
        %3262 = vmatpush2.bf16.msra.mxu0 0
        %3263 = vmatprep.mubr.bf16.mxu0 0
        %3264 = vmatmul.mubr.bf16.gmra.mxu0 %v1826
        %v3265 = vpop.f32.mrf.mxu0
        %v3266 = vadd.f32 0.0, %v3265
        %v3267 = vpop.f32.mrf.mxu0
        %v3268 = vpop.f32.mrf.mxu0
        %v3269 = vadd.f32 0.0, %v3268
        %v3270 = vpop.f32.mrf.mxu0
        %3271 = vmatprep.mubr.bf16.mxu0 0
        %3272 = vmatmul.mubr.bf16.gmra.mxu0 %v1829
        %v3273 = vpop.f32.mrf.mxu0
        %v3274 = vadd.f32 0.0, %v3273
        %v3275 = vpop.f32.mrf.mxu0
        %v3276 = vpop.f32.mrf.mxu0
        %v3277 = vadd.f32 0.0, %v3276
        %v3278 = vpop.f32.mrf.mxu0
        %3279 = vmatprep.mubr.bf16.mxu0 0
        %3280 = vmatmul.mubr.bf16.gmra.mxu0 %v1832
        %v3281 = vpop.f32.mrf.mxu0
        %v3282 = vadd.f32 0.0, %v3281
        %v3283 = vpop.f32.mrf.mxu0
        %v3284 = vpop.f32.mrf.mxu0
        %v3285 = vadd.f32 0.0, %v3284
        %v3286 = vpop.f32.mrf.mxu0
        %3287 = vmatprep.mubr.bf16.mxu0 0
        %3288 = vmatmul.mubr.bf16.gmra.mxu0 %v1835
        %v3289 = vpop.f32.mrf.mxu0
        %v3290 = vadd.f32 0.0, %v3289
        %v3291 = vpop.f32.mrf.mxu0
        %v3292 = vpop.f32.mrf.mxu0
        %v3293 = vadd.f32 0.0, %v3292
        %v3294 = vpop.f32.mrf.mxu0
        %3295 = vmatprep.mubr.bf16.mxu0 0
        %3296 = vmatmul.mubr.bf16.gmra.mxu0 %v1838
        %v3297 = vpop.f32.mrf.mxu0
        %v3298 = vadd.f32 0.0, %v3297
        %v3299 = vpop.f32.mrf.mxu0
        %v3300 = vpop.f32.mrf.mxu0
        %v3301 = vadd.f32 0.0, %v3300
        %v3302 = vpop.f32.mrf.mxu0
        %3303 = vmatprep.mubr.bf16.mxu0 0
        %3304 = vmatmul.mubr.bf16.gmra.mxu0 %v1841
        %v3305 = vpop.f32.mrf.mxu0
        %v3306 = vadd.f32 0.0, %v3305
        %v3307 = vpop.f32.mrf.mxu0
        %v3308 = vpop.f32.mrf.mxu0
        %v3309 = vadd.f32 0.0, %v3308
        %v3310 = vpop.f32.mrf.mxu0
        %3311 = vmatprep.mubr.bf16.mxu0 0
        %3312 = vmatmul.mubr.bf16.gmra.mxu0 %v1844
        %v3313 = vpop.f32.mrf.mxu0
        %v3314 = vadd.f32 0.0, %v3313
        %v3315 = vpop.f32.mrf.mxu0
        %v3316 = vpop.f32.mrf.mxu0
        %v3317 = vadd.f32 0.0, %v3316
        %v3318 = vpop.f32.mrf.mxu0
        %3319 = vmatprep.mubr.bf16.mxu0 0
        %3320 = vmatmul.mubr.bf16.gmra.mxu0 %v1847
        %v3321 = vpop.f32.mrf.mxu0
        %v3322 = vadd.f32 0.0, %v3321
        %v3323 = vpop.f32.mrf.mxu0
        %v3324 = vpop.f32.mrf.mxu0
        %v3325 = vadd.f32 0.0, %v3324
        %v3326 = vpop.f32.mrf.mxu0
        %3327 = vmatprep.mubr.bf16.mxu0 0
        %3328 = vmatmul.mubr.bf16.gmra.mxu0 %v1850
        %v3329 = vpop.f32.mrf.mxu0
        %v3330 = vadd.f32 0.0, %v3329
        %v3331 = vpop.f32.mrf.mxu0
        %v3332 = vpop.f32.mrf.mxu0
        %v3333 = vadd.f32 0.0, %v3332
        %v3334 = vpop.f32.mrf.mxu0
        %3335 = vmatprep.mubr.bf16.mxu0 0
        %3336 = vmatmul.mubr.bf16.gmra.mxu0 %v1853
        %v3337 = vpop.f32.mrf.mxu0
        %v3338 = vadd.f32 0.0, %v3337
        %v3339 = vpop.f32.mrf.mxu0
        %v3340 = vpop.f32.mrf.mxu0
        %v3341 = vadd.f32 0.0, %v3340
        %v3342 = vpop.f32.mrf.mxu0
        %3343 = vmatprep.mubr.bf16.mxu0 0
        %3344 = vmatmul.mubr.bf16.gmra.mxu0 %v1856
        %v3345 = vpop.f32.mrf.mxu0
        %v3346 = vadd.f32 0.0, %v3345
        %v3347 = vpop.f32.mrf.mxu0
        %v3348 = vpop.f32.mrf.mxu0
        %v3349 = vadd.f32 0.0, %v3348
        %v3350 = vpop.f32.mrf.mxu0
        %3351 = vmatprep.mubr.bf16.mxu0 0
        %3352 = vmatmul.mubr.bf16.gmra.mxu0 %v1859
        %v3353 = vpop.f32.mrf.mxu0
        %v3354 = vadd.f32 0.0, %v3353
        %v3355 = vpop.f32.mrf.mxu0
        %v3356 = vpop.f32.mrf.mxu0
        %v3357 = vadd.f32 0.0, %v3356
        %v3358 = vpop.f32.mrf.mxu0
        %3359 = vmatprep.mubr.bf16.mxu0 0
        %3360 = vmatmul.mubr.bf16.gmra.mxu0 %v1862
        %v3361 = vpop.f32.mrf.mxu0
        %v3362 = vadd.f32 0.0, %v3361
        %v3363 = vpop.f32.mrf.mxu0
        %v3364 = vpop.f32.mrf.mxu0
        %v3365 = vadd.f32 0.0, %v3364
        %v3366 = vpop.f32.mrf.mxu0
        %3367 = vmatprep.mubr.bf16.mxu0 0
        %3368 = vmatmul.mubr.bf16.gmra.mxu0 %v1865
        %v3369 = vpop.f32.mrf.mxu0
        %v3370 = vadd.f32 0.0, %v3369
        %v3371 = vpop.f32.mrf.mxu0
        %v3372 = vpop.f32.mrf.mxu0
        %v3373 = vadd.f32 0.0, %v3372
        %v3374 = vpop.f32.mrf.mxu0
        %3375 = vmatprep.mubr.bf16.mxu0 0
        %3376 = vmatmul.mubr.bf16.gmra.mxu0 %v2547
        %v3377 = vpop.f32.mrf.mxu0
        %v3378 = vadd.f32 0.0, %v3377
        %v3379 = vpop.f32.mrf.mxu0
        %v3380 = vpop.f32.mrf.mxu0
        %v3381 = vadd.f32 0.0, %v3380
        %v3382 = vpop.f32.mrf.mxu0
        %3383 = vmatprep.mubr.bf16.mxu0 0
        %3384 = vmatmul.mubr.bf16.gmra.mxu0 %v3229
        %v3385 = vpop.f32.mrf.mxu0
        %v3386 = vadd.f32 0.0, %v3385
        %v3387 = vpop.f32.mrf.mxu0
        %v3388 = vpop.f32.mrf.mxu0
        %v3389 = vadd.f32 0.0, %v3388
        %v3390 = vpop.f32.mrf.mxu0
        %3391 = vdwg.mxu0
        %v3392 = vadd.f32 %v3168, %v3266
        %v3393 = vadd.f32 %v3169, %v3269
        %v3394 = vadd.f32 %v3170, %v3274
        %v3395 = vadd.f32 %v3171, %v3277
        %v3396 = vadd.f32 %v3172, %v3282
        %v3397 = vadd.f32 %v3173, %v3285
        %v3398 = vadd.f32 %v3174, %v3290
        %v3399 = vadd.f32 %v3175, %v3293
        %v3400 = vadd.f32 %v3176, %v3298
        %v3401 = vadd.f32 %v3177, %v3301
        %v3402 = vadd.f32 %v3178, %v3306
        %v3403 = vadd.f32 %v3179, %v3309
        %v3404 = vadd.f32 %v3180, %v3314
        %v3405 = vadd.f32 %v3181, %v3317
        %v3406 = vadd.f32 %v3182, %v3322
        %v3407 = vadd.f32 %v3183, %v3325
        %v3408 = vadd.f32 %v3184, %v3330
        %v3409 = vadd.f32 %v3185, %v3333
        %v3410 = vadd.f32 %v3186, %v3338
        %v3411 = vadd.f32 %v3187, %v3341
        %v3412 = vadd.f32 %v3188, %v3346
        %v3413 = vadd.f32 %v3189, %v3349
        %v3414 = vadd.f32 %v3190, %v3354
        %v3415 = vadd.f32 %v3191, %v3357
        %v3416 = vadd.f32 %v3192, %v3362
        %v3417 = vadd.f32 %v3193, %v3365
        %v3418 = vadd.f32 %v3194, %v3370
        %v3419 = vadd.f32 %v3195, %v3373
        %v3420 = vadd.f32 %v3196, %v3378
        %v3421 = vadd.f32 %v3197, %v3381
        %v3422 = vadd.f32 %v3198, %v3386
        %v3423 = vadd.f32 %v3199, %v3389
        %v3424 = vld [vmem:[%s3] sm:$0x1]
        %v3426 = vlaneseq
        %v3427 = vshrl.u32 %v3426, 7
        %v3428 = vsub.s32 0, %v3427
        %v3429 = vrot.slane %v3424, %v3428
        %v3431 = vmul.f32 %v3392, %v3429
        %v3432 = vmul.f32 %v3393, %v3429
        %v3433 = vmul.f32 %v3394, %v3429
        %v3434 = vmul.f32 %v3395, %v3429
        %v3435 = vmul.f32 %v3396, %v3429
        %v3436 = vmul.f32 %v3397, %v3429
        %v3437 = vmul.f32 %v3398, %v3429
        %v3438 = vmul.f32 %v3399, %v3429
        %v3439 = vmul.f32 %v3400, %v3429
        %v3440 = vmul.f32 %v3401, %v3429
        %v3441 = vmul.f32 %v3402, %v3429
        %v3442 = vmul.f32 %v3403, %v3429
        %v3443 = vmul.f32 %v3404, %v3429
        %v3444 = vmul.f32 %v3405, %v3429
        %v3445 = vmul.f32 %v3406, %v3429
        %v3446 = vmul.f32 %v3407, %v3429
        %v3447 = vmul.f32 %v3408, %v3429
        %v3448 = vmul.f32 %v3409, %v3429
        %v3449 = vmul.f32 %v3410, %v3429
        %v3450 = vmul.f32 %v3411, %v3429
        %v3451 = vmul.f32 %v3412, %v3429
        %v3452 = vmul.f32 %v3413, %v3429
        %v3453 = vmul.f32 %v3414, %v3429
        %v3454 = vmul.f32 %v3415, %v3429
        %v3455 = vmul.f32 %v3416, %v3429
        %v3456 = vmul.f32 %v3417, %v3429
        %v3457 = vmul.f32 %v3418, %v3429
        %v3458 = vmul.f32 %v3419, %v3429
        %v3459 = vmul.f32 %v3420, %v3429
        %v3460 = vmul.f32 %v3421, %v3429
        %v3461 = vmul.f32 %v3422, %v3429
        %v3462 = vmul.f32 %v3423, %v3429
        %v3463 = vld [vmem:[%s4] sm:$0x1]
        %v3465 = vlaneseq
        %v3466 = vshrl.u32 %v3465, 7
        %v3467 = vsub.s32 0, %v3466
        %v3468 = vrot.slane %v3463, %v3467
        %v3470 = vadd.f32 %v3431, %v3468
        %v3471 = vadd.f32 %v3432, %v3468
        %v3472 = vadd.f32 %v3433, %v3468
        %v3473 = vadd.f32 %v3434, %v3468
        %v3474 = vadd.f32 %v3435, %v3468
        %v3475 = vadd.f32 %v3436, %v3468
        %v3476 = vadd.f32 %v3437, %v3468
        %v3477 = vadd.f32 %v3438, %v3468
        %v3478 = vadd.f32 %v3439, %v3468
        %v3479 = vadd.f32 %v3440, %v3468
        %v3480 = vadd.f32 %v3441, %v3468
        %v3481 = vadd.f32 %v3442, %v3468
        %v3482 = vadd.f32 %v3443, %v3468
        %v3483 = vadd.f32 %v3444, %v3468
        %v3484 = vadd.f32 %v3445, %v3468
        %v3485 = vadd.f32 %v3446, %v3468
        %v3486 = vadd.f32 %v3447, %v3468
        %v3487 = vadd.f32 %v3448, %v3468
        %v3488 = vadd.f32 %v3449, %v3468
        %v3489 = vadd.f32 %v3450, %v3468
        %v3490 = vadd.f32 %v3451, %v3468
        %v3491 = vadd.f32 %v3452, %v3468
        %v3492 = vadd.f32 %v3453, %v3468
        %v3493 = vadd.f32 %v3454, %v3468
        %v3494 = vadd.f32 %v3455, %v3468
        %v3495 = vadd.f32 %v3456, %v3468
        %v3496 = vadd.f32 %v3457, %v3468
        %v3497 = vadd.f32 %v3458, %v3468
        %v3498 = vadd.f32 %v3459, %v3468
        %v3499 = vadd.f32 %v3460, %v3468
        %v3500 = vadd.f32 %v3461, %v3468
        %v3501 = vadd.f32 %v3462, %v3468
        %v3502 = vmax.f32 %v3470, 0.0
        %v3503 = vmax.f32 %v3471, 0.0
        %v3504 = vmax.f32 %v3472, 0.0
        %v3505 = vmax.f32 %v3473, 0.0
        %v3506 = vmax.f32 %v3474, 0.0
        %v3507 = vmax.f32 %v3475, 0.0
        %v3508 = vmax.f32 %v3476, 0.0
        %v3509 = vmax.f32 %v3477, 0.0
        %v3510 = vmax.f32 %v3478, 0.0
        %v3511 = vmax.f32 %v3479, 0.0
        %v3512 = vmax.f32 %v3480, 0.0
        %v3513 = vmax.f32 %v3481, 0.0
        %v3514 = vmax.f32 %v3482, 0.0
        %v3515 = vmax.f32 %v3483, 0.0
        %v3516 = vmax.f32 %v3484, 0.0
        %v3517 = vmax.f32 %v3485, 0.0
        %v3518 = vmax.f32 %v3486, 0.0
        %v3519 = vmax.f32 %v3487, 0.0
        %v3520 = vmax.f32 %v3488, 0.0
        %v3521 = vmax.f32 %v3489, 0.0
        %v3522 = vmax.f32 %v3490, 0.0
        %v3523 = vmax.f32 %v3491, 0.0
        %v3524 = vmax.f32 %v3492, 0.0
        %v3525 = vmax.f32 %v3493, 0.0
        %v3526 = vmax.f32 %v3494, 0.0
        %v3527 = vmax.f32 %v3495, 0.0
        %v3528 = vmax.f32 %v3496, 0.0
        %v3529 = vmax.f32 %v3497, 0.0
        %v3530 = vmax.f32 %v3498, 0.0
        %v3531 = vmax.f32 %v3499, 0.0
        %v3532 = vmax.f32 %v3500, 0.0
        %v3533 = vmax.f32 %v3501, 0.0
        %v3534 = vlaneseq
        %v3535 = vshrl.u32 %v3534, 7
        %v3536 = vsub.s32 0, %v3535
        %v3537 = vrot.slane %v520, %v3536
        %v3538 = vmul.f32 %v3502, %v3537
        %v3539 = vmul.f32 %v3503, %v3537
        %v3540 = vmul.f32 %v3504, %v3537
        %v3541 = vmul.f32 %v3505, %v3537
        %v3542 = vmul.f32 %v3506, %v3537
        %v3543 = vmul.f32 %v3507, %v3537
        %v3544 = vmul.f32 %v3508, %v3537
        %v3545 = vmul.f32 %v3509, %v3537
        %v3546 = vmul.f32 %v3510, %v3537
        %v3547 = vmul.f32 %v3511, %v3537
        %v3548 = vmul.f32 %v3512, %v3537
        %v3549 = vmul.f32 %v3513, %v3537
        %v3550 = vmul.f32 %v3514, %v3537
        %v3551 = vmul.f32 %v3515, %v3537
        %v3552 = vmul.f32 %v3516, %v3537
        %v3553 = vmul.f32 %v3517, %v3537
        %v3554 = vmul.f32 %v3518, %v3537
        %v3555 = vmul.f32 %v3519, %v3537
        %v3556 = vmul.f32 %v3520, %v3537
        %v3557 = vmul.f32 %v3521, %v3537
        %v3558 = vmul.f32 %v3522, %v3537
        %v3559 = vmul.f32 %v3523, %v3537
        %v3560 = vmul.f32 %v3524, %v3537
        %v3561 = vmul.f32 %v3525, %v3537
        %v3562 = vmul.f32 %v3526, %v3537
        %v3563 = vmul.f32 %v3527, %v3537
        %v3564 = vmul.f32 %v3528, %v3537
        %v3565 = vmul.f32 %v3529, %v3537
        %v3566 = vmul.f32 %v3530, %v3537
        %v3567 = vmul.f32 %v3531, %v3537
        %v3568 = vmul.f32 %v3532, %v3537
        %v3569 = vmul.f32 %v3533, %v3537
        %v3570 = vmax.f32 %v3538, 0.0
        %v3571 = vmax.f32 %v3539, 0.0
        %v3572 = vmax.f32 %v3540, 0.0
        %v3573 = vmax.f32 %v3541, 0.0
        %v3574 = vmax.f32 %v3542, 0.0
        %v3575 = vmax.f32 %v3543, 0.0
        %v3576 = vmax.f32 %v3544, 0.0
        %v3577 = vmax.f32 %v3545, 0.0
        %v3578 = vmax.f32 %v3546, 0.0
        %v3579 = vmax.f32 %v3547, 0.0
        %v3580 = vmax.f32 %v3548, 0.0
        %v3581 = vmax.f32 %v3549, 0.0
        %v3582 = vmax.f32 %v3550, 0.0
        %v3583 = vmax.f32 %v3551, 0.0
        %v3584 = vmax.f32 %v3552, 0.0
        %v3585 = vmax.f32 %v3553, 0.0
        %v3586 = vmax.f32 %v3554, 0.0
        %v3587 = vmax.f32 %v3555, 0.0
        %v3588 = vmax.f32 %v3556, 0.0
        %v3589 = vmax.f32 %v3557, 0.0
        %v3590 = vmax.f32 %v3558, 0.0
        %v3591 = vmax.f32 %v3559, 0.0
        %v3592 = vmax.f32 %v3560, 0.0
        %v3593 = vmax.f32 %v3561, 0.0
        %v3594 = vmax.f32 %v3562, 0.0
        %v3595 = vmax.f32 %v3563, 0.0
        %v3596 = vmax.f32 %v3564, 0.0
        %v3597 = vmax.f32 %v3565, 0.0
        %v3598 = vmax.f32 %v3566, 0.0
        %v3599 = vmax.f32 %v3567, 0.0
        %v3600 = vmax.f32 %v3568, 0.0
        %v3601 = vmax.f32 %v3569, 0.0
        %v3602 = vlaneseq
        %v3603 = vshrl.u32 %v3602, 7
        %v3604 = vsub.s32 0, %v3603
        %v3605 = vrot.slane %v602, %v3604
        %v3606 = vadd.f32 %v3570, %v3605
        %v3607 = vadd.f32 %v3571, %v3605
        %v3608 = vadd.f32 %v3572, %v3605
        %v3609 = vadd.f32 %v3573, %v3605
        %v3610 = vadd.f32 %v3574, %v3605
        %v3611 = vadd.f32 %v3575, %v3605
        %v3612 = vadd.f32 %v3576, %v3605
        %v3613 = vadd.f32 %v3577, %v3605
        %v3614 = vadd.f32 %v3578, %v3605
        %v3615 = vadd.f32 %v3579, %v3605
        %v3616 = vadd.f32 %v3580, %v3605
        %v3617 = vadd.f32 %v3581, %v3605
        %v3618 = vadd.f32 %v3582, %v3605
        %v3619 = vadd.f32 %v3583, %v3605
        %v3620 = vadd.f32 %v3584, %v3605
        %v3621 = vadd.f32 %v3585, %v3605
        %v3622 = vadd.f32 %v3586, %v3605
        %v3623 = vadd.f32 %v3587, %v3605
        %v3624 = vadd.f32 %v3588, %v3605
        %v3625 = vadd.f32 %v3589, %v3605
        %v3626 = vadd.f32 %v3590, %v3605
        %v3627 = vadd.f32 %v3591, %v3605
        %v3628 = vadd.f32 %v3592, %v3605
        %v3629 = vadd.f32 %v3593, %v3605
        %v3630 = vadd.f32 %v3594, %v3605
        %v3631 = vadd.f32 %v3595, %v3605
        %v3632 = vadd.f32 %v3596, %v3605
        %v3633 = vadd.f32 %v3597, %v3605
        %v3634 = vadd.f32 %v3598, %v3605
        %v3635 = vadd.f32 %v3599, %v3605
        %v3636 = vadd.f32 %v3600, %v3605
        %v3637 = vadd.f32 %v3601, %v3605
        %v3638 = vmax.f32 %v3606, 0.0
        %v3639 = vmax.f32 %v3607, 0.0
        %v3640 = vmax.f32 %v3608, 0.0
        %v3641 = vmax.f32 %v3609, 0.0
        %v3642 = vmax.f32 %v3610, 0.0
        %v3643 = vmax.f32 %v3611, 0.0
        %v3644 = vmax.f32 %v3612, 0.0
        %v3645 = vmax.f32 %v3613, 0.0
        %v3646 = vmax.f32 %v3614, 0.0
        %v3647 = vmax.f32 %v3615, 0.0
        %v3648 = vmax.f32 %v3616, 0.0
        %v3649 = vmax.f32 %v3617, 0.0
        %v3650 = vmax.f32 %v3618, 0.0
        %v3651 = vmax.f32 %v3619, 0.0
        %v3652 = vmax.f32 %v3620, 0.0
        %v3653 = vmax.f32 %v3621, 0.0
        %v3654 = vmax.f32 %v3622, 0.0
        %v3655 = vmax.f32 %v3623, 0.0
        %v3656 = vmax.f32 %v3624, 0.0
        %v3657 = vmax.f32 %v3625, 0.0
        %v3658 = vmax.f32 %v3626, 0.0
        %v3659 = vmax.f32 %v3627, 0.0
        %v3660 = vmax.f32 %v3628, 0.0
        %v3661 = vmax.f32 %v3629, 0.0
        %v3662 = vmax.f32 %v3630, 0.0
        %v3663 = vmax.f32 %v3631, 0.0
        %v3664 = vmax.f32 %v3632, 0.0
        %v3665 = vmax.f32 %v3633, 0.0
        %v3666 = vmax.f32 %v3634, 0.0
        %v3667 = vmax.f32 %v3635, 0.0
        %v3668 = vmax.f32 %v3636, 0.0
        %v3669 = vmax.f32 %v3637, 0.0
        %3670 = vst.msk [vmem:[%s394] sm:$0xff] %vm415, %v3638
        %3671 = vst.msk [vmem:[%s394 + $0x8] sm:$0xff] %vm415, %v3639
        %3672 = vst.msk [vmem:[%s394 + $0x10] sm:$0xff] %vm415, %v3640
        %3673 = vst.msk [vmem:[%s394 + $0x18] sm:$0xff] %vm415, %v3641
        %3674 = vst.msk [vmem:[%s394 + $0x20] sm:$0xff] %vm415, %v3642
        %3675 = vst.msk [vmem:[%s394 + $0x28] sm:$0xff] %vm415, %v3643
        %3676 = vst.msk [vmem:[%s394 + $0x30] sm:$0xff] %vm415, %v3644
        %3677 = vst.msk [vmem:[%s394 + $0x38] sm:$0xff] %vm415, %v3645
        %3678 = vst.msk [vmem:[%s394 + $0x40] sm:$0xff] %vm415, %v3646
        %3679 = vst.msk [vmem:[%s394 + $0x48] sm:$0xff] %vm415, %v3647
        %3680 = vst.msk [vmem:[%s394 + $0x50] sm:$0xff] %vm415, %v3648
        %3681 = vst.msk [vmem:[%s394 + $0x58] sm:$0xff] %vm415, %v3649
        %3682 = vst.msk [vmem:[%s394 + $0x60] sm:$0xff] %vm415, %v3650
        %3683 = vst.msk [vmem:[%s394 + $0x68] sm:$0xff] %vm415, %v3651
        %3684 = vst.msk [vmem:[%s394 + $0x70] sm:$0xff] %vm415, %v3652
        %3685 = vst.msk [vmem:[%s394 + $0x78] sm:$0xff] %vm415, %v3653
        %3686 = vst.msk [vmem:[%s394 + $0x80] sm:$0xff] %vm415, %v3654
        %3687 = vst.msk [vmem:[%s394 + $0x88] sm:$0xff] %vm415, %v3655
        %3688 = vst.msk [vmem:[%s394 + $0x90] sm:$0xff] %vm415, %v3656
        %3689 = vst.msk [vmem:[%s394 + $0x98] sm:$0xff] %vm415, %v3657
        %3690 = vst.msk [vmem:[%s394 + $0xa0] sm:$0xff] %vm415, %v3658
        %3691 = vst.msk [vmem:[%s394 + $0xa8] sm:$0xff] %vm415, %v3659
        %3692 = vst.msk [vmem:[%s394 + $0xb0] sm:$0xff] %vm415, %v3660
        %3693 = vst.msk [vmem:[%s394 + $0xb8] sm:$0xff] %vm415, %v3661
        %3694 = vst.msk [vmem:[%s394 + $0xc0] sm:$0xff] %vm415, %v3662
        %3695 = vst.msk [vmem:[%s394 + $0xc8] sm:$0xff] %vm415, %v3663
        %3696 = vst.msk [vmem:[%s394 + $0xd0] sm:$0xff] %vm415, %v3664
        %3697 = vst.msk [vmem:[%s394 + $0xd8] sm:$0xff] %vm415, %v3665
        %3698 = vst.msk [vmem:[%s394 + $0xe0] sm:$0xff] %vm415, %v3666
        %3699 = vst.msk [vmem:[%s394 + $0xe8] sm:$0xff] %vm415, %v3667
        %3700 = vst.msk [vmem:[%s394 + $0xf0] sm:$0xff] %vm415, %v3668
        %3701 = vst.msk [vmem:[%s394 + $0xf8] sm:$0xff] %vm415, %v3669
        %s3702 = sand.u32 %s274, 1
        %s3703 = scalar_lea.sflag [#allocation3], %s3702
        %s3704 = sand.u32 %s274, 1
        %s3705 = smul.addr %s3704, 256
        %s3706 = scalar_lea.vmem [#allocation2], %s3705
        // Predicated region
        $region65: #{gau_forward.1} parent=63 // pred_check
          %p3707 = pneg %p284
        $region66: #{gau_forward.1} parent=63 // pred_check_branch
          %3709 = sbr.rel (%p3707) target = $region68
        $region67: #{gau_forward.1} parent=63 // pred_region
          %s3710 = smul.u32 32, %s25
          %s3712 = ssub.s32 4096, 4096
          %3713 = vsyncadd %s3703, %s3712
          %s3714 = smul.addr %s3710, 128
          %s3715 = scalar_lea.hbm %s11, %s3714
          %s3716 = sshll.u32 %s3706, 4
          %s3717 = int_to_ptr.vmem [resolvable:$true] %s3716
          %3722 = dma.vmem_to_hbm [thread:$0]  %s3717, 4096, %s3715, %s3703, 128, 128, 8
        $region68: #{gau_forward.1} parent=63 // pred_fallthru
          _
      $region64: #{gau_forward.1} parent=5 // pred_fallthru
        _
      %p3723 = scmp.le.s32.totalorder 2, %s20
      // Predicated region
      $region69: #{gau_forward.1} parent=5 // pred_check
        %p3724 = pneg %p3723
      $region70: #{gau_forward.1} parent=5 // pred_check_branch
        %3726 = sbr.rel (%p3724) target = $region72
      $region71: #{gau_forward.1} parent=5 // pred_region
        %s3727 = ssub.s32 %s20, 2
        // Predicated region
        $region73: #{gau_forward.1} parent=71 // pred_check
          %p3728 = pneg %p290
        $region74: #{gau_forward.1} parent=71 // pred_check_branch
          %3730 = sbr.rel (%p3728) target = $region76
        $region75: #{gau_forward.1} parent=71 // pred_region
          %s3731 = sand.u32 %s275, 1
          %s3732 = scalar_lea.sflag [#allocation3], %s3731
          %s3733 = sand.u32 %s275, 1
          %s3734 = smul.addr %s3733, 256
          %s3735 = scalar_lea.vmem [#allocation2], %s3734
          %3736 = dma.done %s3732, 4096
        $region76: #{gau_forward.1} parent=71 // pred_fallthru
          _
      $region72: #{gau_forward.1} parent=5 // pred_fallthru
        _
    $region6: #{gau_forward.1} parent=1 // loop_footer
      %s24 = sadd.s32 1, %s20
    $region7: #{gau_forward.1} parent=1 // loop_footer_branch
      %19 = sbr.rel target = $region3
    $region8: #{gau_forward.1} parent=1 // loop_exit
      _
    %3737 = vsyncpa [#allocation3], 1
    %s3738 = scalar_lea.sflag [#allocation3], 1
    %3739 = vsyncpa %s3738, 1

</llo_original>
